<compile_context>
chip_gen: v5e
topology: v5e:2x2
jax: 0.10.0
libtpu: 0.0.40
codegen_flags: <defaults>
</compile_context>

<pallas_src>
import jax
import jax.numpy as jnp
import numpy as np
from jax.experimental import pallas as pl
from jax.experimental.pallas import tpu as pltpu


# ----------------------------------------------------------------------------
# Parameter construction (packed; mirrors the module's __init__ shapes).
# Linear weights are stored transposed, i.e. (in_features, out_features).
# ----------------------------------------------------------------------------
def _uniform(key, shape, bound):
    return jax.random.uniform(key, shape, jnp.float32, -bound, bound)


def make_params(key, seq_len, pt_dim, hidden_dim, c_dim):
    H = hidden_dim
    dim = seq_len * pt_dim
    keys = jax.random.split(key, 8)

    b_in = 1.0 / np.sqrt(dim)
    # fc_pos: rows of W_pos^T ordered as the (l, d) concat -> reshape (L, d, 2H)
    w_pos = _uniform(keys[0], (dim, 2 * H), b_in).reshape(seq_len, pt_dim, 2 * H)
    b_pos = _uniform(keys[1], (1, 2 * H), b_in)

    b_2h = 1.0 / np.sqrt(2 * H)
    b_h = 1.0 / np.sqrt(H)
    k0 = jax.random.split(keys[2], 5)
    kb0 = jax.random.split(keys[3], 5)
    kb1 = jax.random.split(keys[4], 5)
    ks = jax.random.split(keys[5], 5)
    w0 = jnp.stack([_uniform(k, (2 * H, H), b_2h) for k in k0])      # (5, 2H, H)
    w1 = jnp.zeros((5, H, H), jnp.float32)                           # nn.init.zeros_(fc_1.weight)
    ws = jnp.stack([_uniform(k, (2 * H, H), b_2h) for k in ks])      # (5, 2H, H), no bias
    # biases: row 2*i = fc_0 bias of block i, row 2*i+1 = fc_1 bias of block i
    b_blk = jnp.stack(
        [jnp.stack([_uniform(kb0[i], (1, H), b_2h),
                    _uniform(kb1[i], (1, H), b_h)]) for i in range(5)]
    ).reshape(10, 1, H)

    w_c = _uniform(keys[6], (H, c_dim), b_h)
    b_c = _uniform(keys[7], (1, c_dim), b_h)
    return dict(w_pos=w_pos, b_pos=b_pos, w0=w0, w1=w1, ws=ws,
                b_blk=b_blk, w_c=w_c, b_c=b_c)


# ----------------------------------------------------------------------------
# Pallas kernel: one grid step processes `batch_tile` batch elements.
# ----------------------------------------------------------------------------
def _tpn_kernel(x_ref, wpos_ref, bpos_ref, w0_ref, w1_ref, ws_ref, bblk_ref,
                wc_ref, bc_ref, out_ref):
    L = wpos_ref.shape[0]
    Bt = x_ref.shape[0] // L
    N = x_ref.shape[1]
    H = w1_ref.shape[1]
    bf16 = jnp.bfloat16
    f32 = jnp.float32

    relu = lambda a: jnp.maximum(a, 0.0)
    mm = lambda a, w: jnp.dot(a, w, preferred_element_type=f32)   # bf16 in, f32 acc

    def batch_max(net):                      # (Bt*N, F) -> (Bt, F): max over points
        rows = [jnp.max(net[b * N:(b + 1) * N], axis=0, keepdims=True)
                for b in range(Bt)]
        return jnp.concatenate(rows, axis=0)

    def expand_rows(p, cols):                # (Bt, F) -> (Bt*N, F): repeat each row N times
        pieces = [jnp.broadcast_to(p[b:b + 1], (N, cols)) for b in range(Bt)]
        return jnp.concatenate(pieces, axis=0)

    # ---- fc_pos: transpose(1,2)+view(B,N,L*d) folded into a K-split sum ----
    per_batch = []
    for b in range(Bt):
        acc = None
        for l in range(L):
            c = mm(x_ref[b * L + l].astype(bf16), wpos_ref[l])   # (N, d)@(d, 2H)
            acc = c if acc is None else acc + c
        per_batch.append(acc)
    net = jnp.concatenate(per_batch, axis=0) + bpos_ref[...]     # (Bt*N, 2H) f32

    # ---- block_0 : ResnetBlockFC(2H -> H) on the full-width fc_pos output ---
    h = mm(relu(net).astype(bf16), w0_ref[0]) + bblk_ref[0]      # fc_0(actvn(x))
    dx = mm(relu(h).astype(bf16), w1_ref[0]) + bblk_ref[1]       # fc_1(actvn(net))
    net = mm(net.astype(bf16), ws_ref[0]) + dx                   # shortcut + dx

    # ---- blocks 1..4 : concat([net, pooled]) realized via split weights -----
    for i in range(1, 5):
        pooled = batch_max(net)                                  # (Bt, H) f32
        w0 = w0_ref[i]                                           # (2H, H) bf16
        ws = ws_ref[i]
        a_pt = relu(net).astype(bf16)                            # (Bt*N, H)
        a_pl = relu(pooled).astype(bf16)                         # (Bt, H)
        # fc_0(actvn(cat([net, pooled]))) = relu(net)@W0_top + relu(pooled)@W0_bot + b0
        h = (mm(a_pt, w0[:H])
             + expand_rows(mm(a_pl, w0[H:]), H)
             + bblk_ref[2 * i])
        dx = mm(relu(h).astype(bf16), w1_ref[i]) + bblk_ref[2 * i + 1]
        # shortcut(cat([net, pooled])) = net@Ws_top + pooled@Ws_bot
        sc = (mm(net.astype(bf16), ws[:H])
              + expand_rows(mm(pooled.astype(bf16), ws[H:]), H))
        net = sc + dx                                            # (Bt*N, H)

    # ---- global max pool over points + fc_c ---------------------------------
    gf = batch_max(net)                                          # (Bt, H)
    out = mm(relu(gf).astype(bf16), wc_ref[...]) + bc_ref[...]   # (Bt, c_pad)
    out_ref[0] = out                                             # lane-dense store


def temporal_resnet_pointnet(x, params, c_dim, batch_tile=None):
    """x: (B, L, N, d) float32. Returns (B, c_dim) float32."""
    B, L, N, d = x.shape
    H = params["w1"].shape[1]
    if batch_tile is None:
        # >= 2 grid steps when possible (keeps both v7x TensorCores busy) while
        # still batching several batch elements per step.
        batch_tile = B // 2 if (B >= 2 and B % 2 == 0) else B
    assert B % batch_tile == 0
    steps = B // batch_tile
    c_pad = ((c_dim + 127) // 128) * 128
    bf16 = jnp.bfloat16

    # Free reshape (no data movement): the (L, d) -> L*d concat happens inside
    # the kernel as a K-split matmul, so no HBM transpose round trip.
    x_flat = x.reshape(B * L, N, d)

    # Pad fc_c to a lane-dense width; extra columns are zero and sliced away.
    w_c = jnp.zeros((H, c_pad), bf16).at[:, :c_dim].set(params["w_c"].astype(bf16))
    b_c = jnp.zeros((1, c_pad), jnp.float32).at[:, :c_dim].set(params["b_c"])

    args = (
        x_flat,                            # (B*L, N, d)   f32
        params["w_pos"].astype(bf16),      # (L, d, 2H)    bf16
        params["b_pos"],                   # (1, 2H)       f32
        params["w0"].astype(bf16),         # (5, 2H, H)    bf16
        params["w1"].astype(bf16),         # (5, H, H)     bf16
        params["ws"].astype(bf16),         # (5, 2H, H)    bf16
        params["b_blk"],                   # (10, 1, H)    f32
        w_c,                               # (H, c_pad)    bf16
        b_c,                               # (1, c_pad)    f32
    )

    def full_spec(a):
        nd = a.ndim
        return pl.BlockSpec(a.shape, lambda s, _n=nd: (0,) * _n)

    in_specs = [pl.BlockSpec((batch_tile * L, N, d), lambda s: (s, 0, 0))]
    in_specs += [full_spec(a) for a in args[1:]]

    # NOTE: for very large N (esp. v7x's 64 MiB VMEM) an N-tiled two-pass
    # (pool, then reuse) structure would be needed; not required at these sizes.
    out = pl.pallas_call(
        _tpn_kernel,
        out_shape=jax.ShapeDtypeStruct((steps, batch_tile, c_pad), jnp.float32),
        grid=(steps,),
        in_specs=in_specs,
        out_specs=pl.BlockSpec((1, batch_tile, c_pad), lambda s: (s, 0, 0)),
        compiler_params=pltpu.CompilerParams(
            dimension_semantics=("parallel",)),
    )(*args)
    return out.reshape(B, c_pad)[:, :c_dim]


# ----------------------------------------------------------------------------
# Plain-JAX reference (same math, same bf16-matmul / f32-accumulate convention)
# ----------------------------------------------------------------------------
def reference_forward(x, params):
    B, L, N, d = x.shape
    H = params["w1"].shape[1]
    bf16 = jnp.bfloat16
    relu = lambda a: jnp.maximum(a, 0.0)
    mm = lambda a, w: jnp.dot(a.astype(bf16), w.astype(bf16),
                              preferred_element_type=jnp.float32)

    # PyTorch: x.transpose(1, 2).contiguous().view(B, N, -1)
    x2 = jnp.transpose(x, (0, 2, 1, 3)).reshape(B, N, L * d)
    w_pos = params["w_pos"].reshape(L * d, 2 * H)
    b_blk = params["b_blk"].reshape(5, 2, H)

    def resblock(inp, i):
        h = mm(relu(inp), params["w0"][i]) + b_blk[i, 0]
        dx = mm(relu(h), params["w1"][i]) + b_blk[i, 1]
        return mm(inp, params["ws"][i]) + dx

    net = mm(x2, w_pos) + params["b_pos"]
    net = resblock(net, 0)
    for i in range(1, 5):
        pooled = jnp.max(net, axis=1, keepdims=True)
        net = resblock(jnp.concatenate(
            [net, jnp.broadcast_to(pooled, net.shape)], axis=2), i)
    gf = jnp.max(net, axis=1)
    return mm(relu(gf), params["w_c"]) + params["b_c"]


if __name__ == "__main__":
    # Small shapes consistent with the module: sequence length L=4 of 3-D point
    # clouds (dim = 12), 64 points, hidden_dim=32, c_dim=16, batch=4.
    B, L, N, d = 4, 4, 64, 3
    hidden_dim, c_dim = 32, 16

    key = jax.random.PRNGKey(0)
    kx, kp = jax.random.split(key)
    x = jax.random.normal(kx, (B, L, N, d), jnp.float32)
    params = make_params(kp, L, d, hidden_dim, c_dim)

    out = temporal_resnet_pointnet(x, params, c_dim)
    out = jax.block_until_ready(out)
    assert out.shape == (B, c_dim)

    ref = reference_forward(x, params)
    np.testing.assert_allclose(np.asarray(out), np.asarray(ref),
                               rtol=1e-3, atol=1e-3)
    print("KERNEL_OK")
</pallas_src>

<mosaic_0001>
module attributes {stable_mosaic.version = 11 : i64} {
  func.func @_tpn_kernel(%arg0: i32, %arg1: memref<8x64x3xf32, #tpu.memory_space<vmem>>, %arg2: memref<4x3x64xbf16, #tpu.memory_space<vmem>>, %arg3: memref<1x64xf32, #tpu.memory_space<vmem>>, %arg4: memref<5x64x32xbf16, #tpu.memory_space<vmem>>, %arg5: memref<5x32x32xbf16, #tpu.memory_space<vmem>>, %arg6: memref<5x64x32xbf16, #tpu.memory_space<vmem>>, %arg7: memref<10x1x32xf32, #tpu.memory_space<vmem>>, %arg8: memref<32x128xbf16, #tpu.memory_space<vmem>>, %arg9: memref<1x128xf32, #tpu.memory_space<vmem>>, %arg10: memref<1x2x128xf32, #tpu.memory_space<vmem>>) attributes {dimension_semantics = [#tpu.dimension_semantics<parallel>], iteration_bounds = array<i64: 2>, scalar_prefetch = 0 : i64, scratch_operands = 0 : i64, tpu.core_type = #tpu.core_type<tc>, window_params = [{transform_indices = @transform_0, window_bounds = array<i64: 8, 64, 3>}, {pipeline_mode = #tpu.pipeline_mode<synchronous>, transform_indices = @transform_1, window_bounds = array<i64: 4, 3, 64>}, {pipeline_mode = #tpu.pipeline_mode<synchronous>, transform_indices = @transform_2, window_bounds = array<i64: 1, 64>}, {pipeline_mode = #tpu.pipeline_mode<synchronous>, transform_indices = @transform_3, window_bounds = array<i64: 5, 64, 32>}, {pipeline_mode = #tpu.pipeline_mode<synchronous>, transform_indices = @transform_4, window_bounds = array<i64: 5, 32, 32>}, {pipeline_mode = #tpu.pipeline_mode<synchronous>, transform_indices = @transform_5, window_bounds = array<i64: 5, 64, 32>}, {pipeline_mode = #tpu.pipeline_mode<synchronous>, transform_indices = @transform_6, window_bounds = array<i64: 10, 1, 32>}, {pipeline_mode = #tpu.pipeline_mode<synchronous>, transform_indices = @transform_7, window_bounds = array<i64: 32, 128>}, {pipeline_mode = #tpu.pipeline_mode<synchronous>, transform_indices = @transform_8, window_bounds = array<i64: 1, 128>}, {transform_indices = @transform_9, window_bounds = array<i64: 1, 2, 128>}]} {
    %c0 = arith.constant 0 : index
    %c0_0 = arith.constant 0 : index
    %c0_1 = arith.constant 0 : index
    %0 = vector.load %arg1[%c0, %c0_0, %c0_1] : memref<8x64x3xf32, #tpu.memory_space<vmem>>, vector<1x64x3xf32>
    %1 = vector.shape_cast %0 : vector<1x64x3xf32> to vector<64x3xf32>
    %2 = arith.truncf %1 : vector<64x3xf32> to vector<64x3xbf16>
    %c0_2 = arith.constant 0 : index
    %c0_3 = arith.constant 0 : index
    %c0_4 = arith.constant 0 : index
    %3 = vector.load %arg2[%c0_2, %c0_3, %c0_4] : memref<4x3x64xbf16, #tpu.memory_space<vmem>>, vector<1x3x64xbf16>
    %4 = vector.shape_cast %3 : vector<1x3x64xbf16> to vector<3x64xbf16>
    %cst = arith.constant dense<0.000000e+00> : vector<64x64xf32>
    %5 = tpu.matmul %2, %4, %cst {dimension_numbers = #tpu.dot_dimension_numbers<[1], [0], [0], [1], [0, 0, 1, 1], [], []>} : vector<64x3xbf16>, vector<3x64xbf16>, vector<64x64xf32> -> vector<64x64xf32>
    %c1 = arith.constant 1 : index
    %c0_5 = arith.constant 0 : index
    %c0_6 = arith.constant 0 : index
    %6 = vector.load %arg1[%c1, %c0_5, %c0_6] : memref<8x64x3xf32, #tpu.memory_space<vmem>>, vector<1x64x3xf32>
    %7 = vector.shape_cast %6 : vector<1x64x3xf32> to vector<64x3xf32>
    %8 = arith.truncf %7 : vector<64x3xf32> to vector<64x3xbf16>
    %c1_7 = arith.constant 1 : index
    %c0_8 = arith.constant 0 : index
    %c0_9 = arith.constant 0 : index
    %9 = vector.load %arg2[%c1_7, %c0_8, %c0_9] : memref<4x3x64xbf16, #tpu.memory_space<vmem>>, vector<1x3x64xbf16>
    %10 = vector.shape_cast %9 : vector<1x3x64xbf16> to vector<3x64xbf16>
    %cst_10 = arith.constant dense<0.000000e+00> : vector<64x64xf32>
    %11 = tpu.matmul %8, %10, %cst_10 {dimension_numbers = #tpu.dot_dimension_numbers<[1], [0], [0], [1], [0, 0, 1, 1], [], []>} : vector<64x3xbf16>, vector<3x64xbf16>, vector<64x64xf32> -> vector<64x64xf32>
    %12 = arith.addf %5, %11 : vector<64x64xf32>
    %c2 = arith.constant 2 : index
    %c0_11 = arith.constant 0 : index
    %c0_12 = arith.constant 0 : index
    %13 = vector.load %arg1[%c2, %c0_11, %c0_12] : memref<8x64x3xf32, #tpu.memory_space<vmem>>, vector<1x64x3xf32>
    %14 = vector.shape_cast %13 : vector<1x64x3xf32> to vector<64x3xf32>
    %15 = arith.truncf %14 : vector<64x3xf32> to vector<64x3xbf16>
    %c2_13 = arith.constant 2 : index
    %c0_14 = arith.constant 0 : index
    %c0_15 = arith.constant 0 : index
    %16 = vector.load %arg2[%c2_13, %c0_14, %c0_15] : memref<4x3x64xbf16, #tpu.memory_space<vmem>>, vector<1x3x64xbf16>
    %17 = vector.shape_cast %16 : vector<1x3x64xbf16> to vector<3x64xbf16>
    %cst_16 = arith.constant dense<0.000000e+00> : vector<64x64xf32>
    %18 = tpu.matmul %15, %17, %cst_16 {dimension_numbers = #tpu.dot_dimension_numbers<[1], [0], [0], [1], [0, 0, 1, 1], [], []>} : vector<64x3xbf16>, vector<3x64xbf16>, vector<64x64xf32> -> vector<64x64xf32>
    %19 = arith.addf %12, %18 : vector<64x64xf32>
    %c3 = arith.constant 3 : index
    %c0_17 = arith.constant 0 : index
    %c0_18 = arith.constant 0 : index
    %20 = vector.load %arg1[%c3, %c0_17, %c0_18] : memref<8x64x3xf32, #tpu.memory_space<vmem>>, vector<1x64x3xf32>
    %21 = vector.shape_cast %20 : vector<1x64x3xf32> to vector<64x3xf32>
    %22 = arith.truncf %21 : vector<64x3xf32> to vector<64x3xbf16>
    %c3_19 = arith.constant 3 : index
    %c0_20 = arith.constant 0 : index
    %c0_21 = arith.constant 0 : index
    %23 = vector.load %arg2[%c3_19, %c0_20, %c0_21] : memref<4x3x64xbf16, #tpu.memory_space<vmem>>, vector<1x3x64xbf16>
    %24 = vector.shape_cast %23 : vector<1x3x64xbf16> to vector<3x64xbf16>
    %cst_22 = arith.constant dense<0.000000e+00> : vector<64x64xf32>
    %25 = tpu.matmul %22, %24, %cst_22 {dimension_numbers = #tpu.dot_dimension_numbers<[1], [0], [0], [1], [0, 0, 1, 1], [], []>} : vector<64x3xbf16>, vector<3x64xbf16>, vector<64x64xf32> -> vector<64x64xf32>
    %26 = arith.addf %19, %25 : vector<64x64xf32>
    %c4 = arith.constant 4 : index
    %c0_23 = arith.constant 0 : index
    %c0_24 = arith.constant 0 : index
    %27 = vector.load %arg1[%c4, %c0_23, %c0_24] : memref<8x64x3xf32, #tpu.memory_space<vmem>>, vector<1x64x3xf32>
    %28 = vector.shape_cast %27 : vector<1x64x3xf32> to vector<64x3xf32>
    %29 = arith.truncf %28 : vector<64x3xf32> to vector<64x3xbf16>
    %c0_25 = arith.constant 0 : index
    %c0_26 = arith.constant 0 : index
    %c0_27 = arith.constant 0 : index
    %30 = vector.load %arg2[%c0_25, %c0_26, %c0_27] : memref<4x3x64xbf16, #tpu.memory_space<vmem>>, vector<1x3x64xbf16>
    %31 = vector.shape_cast %30 : vector<1x3x64xbf16> to vector<3x64xbf16>
    %cst_28 = arith.constant dense<0.000000e+00> : vector<64x64xf32>
    %32 = tpu.matmul %29, %31, %cst_28 {dimension_numbers = #tpu.dot_dimension_numbers<[1], [0], [0], [1], [0, 0, 1, 1], [], []>} : vector<64x3xbf16>, vector<3x64xbf16>, vector<64x64xf32> -> vector<64x64xf32>
    %c5 = arith.constant 5 : index
    %c0_29 = arith.constant 0 : index
    %c0_30 = arith.constant 0 : index
    %33 = vector.load %arg1[%c5, %c0_29, %c0_30] : memref<8x64x3xf32, #tpu.memory_space<vmem>>, vector<1x64x3xf32>
    %34 = vector.shape_cast %33 : vector<1x64x3xf32> to vector<64x3xf32>
    %35 = arith.truncf %34 : vector<64x3xf32> to vector<64x3xbf16>
    %c1_31 = arith.constant 1 : index
    %c0_32 = arith.constant 0 : index
    %c0_33 = arith.constant 0 : index
    %36 = vector.load %arg2[%c1_31, %c0_32, %c0_33] : memref<4x3x64xbf16, #tpu.memory_space<vmem>>, vector<1x3x64xbf16>
    %37 = vector.shape_cast %36 : vector<1x3x64xbf16> to vector<3x64xbf16>
    %cst_34 = arith.constant dense<0.000000e+00> : vector<64x64xf32>
    %38 = tpu.matmul %35, %37, %cst_34 {dimension_numbers = #tpu.dot_dimension_numbers<[1], [0], [0], [1], [0, 0, 1, 1], [], []>} : vector<64x3xbf16>, vector<3x64xbf16>, vector<64x64xf32> -> vector<64x64xf32>
    %39 = arith.addf %32, %38 : vector<64x64xf32>
    %c6 = arith.constant 6 : index
    %c0_35 = arith.constant 0 : index
    %c0_36 = arith.constant 0 : index
    %40 = vector.load %arg1[%c6, %c0_35, %c0_36] : memref<8x64x3xf32, #tpu.memory_space<vmem>>, vector<1x64x3xf32>
    %41 = vector.shape_cast %40 : vector<1x64x3xf32> to vector<64x3xf32>
    %42 = arith.truncf %41 : vector<64x3xf32> to vector<64x3xbf16>
    %c2_37 = arith.constant 2 : index
    %c0_38 = arith.constant 0 : index
    %c0_39 = arith.constant 0 : index
    %43 = vector.load %arg2[%c2_37, %c0_38, %c0_39] : memref<4x3x64xbf16, #tpu.memory_space<vmem>>, vector<1x3x64xbf16>
    %44 = vector.shape_cast %43 : vector<1x3x64xbf16> to vector<3x64xbf16>
    %cst_40 = arith.constant dense<0.000000e+00> : vector<64x64xf32>
    %45 = tpu.matmul %42, %44, %cst_40 {dimension_numbers = #tpu.dot_dimension_numbers<[1], [0], [0], [1], [0, 0, 1, 1], [], []>} : vector<64x3xbf16>, vector<3x64xbf16>, vector<64x64xf32> -> vector<64x64xf32>
    %46 = arith.addf %39, %45 : vector<64x64xf32>
    %c7 = arith.constant 7 : index
    %c0_41 = arith.constant 0 : index
    %c0_42 = arith.constant 0 : index
    %47 = vector.load %arg1[%c7, %c0_41, %c0_42] : memref<8x64x3xf32, #tpu.memory_space<vmem>>, vector<1x64x3xf32>
    %48 = vector.shape_cast %47 : vector<1x64x3xf32> to vector<64x3xf32>
    %49 = arith.truncf %48 : vector<64x3xf32> to vector<64x3xbf16>
    %c3_43 = arith.constant 3 : index
    %c0_44 = arith.constant 0 : index
    %c0_45 = arith.constant 0 : index
    %50 = vector.load %arg2[%c3_43, %c0_44, %c0_45] : memref<4x3x64xbf16, #tpu.memory_space<vmem>>, vector<1x3x64xbf16>
    %51 = vector.shape_cast %50 : vector<1x3x64xbf16> to vector<3x64xbf16>
    %cst_46 = arith.constant dense<0.000000e+00> : vector<64x64xf32>
    %52 = tpu.matmul %49, %51, %cst_46 {dimension_numbers = #tpu.dot_dimension_numbers<[1], [0], [0], [1], [0, 0, 1, 1], [], []>} : vector<64x3xbf16>, vector<3x64xbf16>, vector<64x64xf32> -> vector<64x64xf32>
    %53 = arith.addf %46, %52 : vector<64x64xf32>
    %54 = tpu.concatenate %26, %53 in 0 : vector<64x64xf32>, vector<64x64xf32> -> vector<128x64xf32>
    %c0_47 = arith.constant 0 : index
    %c0_48 = arith.constant 0 : index
    %55 = vector.load %arg3[%c0_47, %c0_48] : memref<1x64xf32, #tpu.memory_space<vmem>>, vector<1x64xf32>
    %56 = vector.broadcast %55 : vector<1x64xf32> to vector<128x64xf32>
    %57 = arith.addf %54, %56 : vector<128x64xf32>
    %cst_49 = arith.constant 0.000000e+00 : f32
    %58 = vector.broadcast %cst_49 : f32 to vector<128x64xf32>
    %59 = arith.maximumf %57, %58 : vector<128x64xf32>
    %60 = arith.truncf %59 : vector<128x64xf32> to vector<128x64xbf16>
    %c0_50 = arith.constant 0 : index
    %c0_51 = arith.constant 0 : index
    %c0_52 = arith.constant 0 : index
    %61 = vector.load %arg4[%c0_50, %c0_51, %c0_52] : memref<5x64x32xbf16, #tpu.memory_space<vmem>>, vector<1x64x32xbf16>
    %62 = vector.shape_cast %61 : vector<1x64x32xbf16> to vector<64x32xbf16>
    %cst_53 = arith.constant dense<0.000000e+00> : vector<128x32xf32>
    %63 = tpu.matmul %60, %62, %cst_53 {dimension_numbers = #tpu.dot_dimension_numbers<[1], [0], [0], [1], [0, 0, 1, 1], [], []>} : vector<128x64xbf16>, vector<64x32xbf16>, vector<128x32xf32> -> vector<128x32xf32>
    %c0_54 = arith.constant 0 : index
    %c0_55 = arith.constant 0 : index
    %c0_56 = arith.constant 0 : index
    %64 = vector.load %arg7[%c0_54, %c0_55, %c0_56] : memref<10x1x32xf32, #tpu.memory_space<vmem>>, vector<1x1x32xf32>
    %65 = vector.shape_cast %64 : vector<1x1x32xf32> to vector<1x32xf32>
    %66 = vector.broadcast %65 : vector<1x32xf32> to vector<128x32xf32>
    %67 = arith.addf %63, %66 : vector<128x32xf32>
    %cst_57 = arith.constant 0.000000e+00 : f32
    %68 = vector.broadcast %cst_57 : f32 to vector<128x32xf32>
    %69 = arith.maximumf %67, %68 : vector<128x32xf32>
    %70 = arith.truncf %69 : vector<128x32xf32> to vector<128x32xbf16>
    %c0_58 = arith.constant 0 : index
    %c0_59 = arith.constant 0 : index
    %c0_60 = arith.constant 0 : index
    %71 = vector.load %arg5[%c0_58, %c0_59, %c0_60] : memref<5x32x32xbf16, #tpu.memory_space<vmem>>, vector<1x32x32xbf16>
    %72 = vector.shape_cast %71 : vector<1x32x32xbf16> to vector<32x32xbf16>
    %cst_61 = arith.constant dense<0.000000e+00> : vector<128x32xf32>
    %73 = tpu.matmul %70, %72, %cst_61 {dimension_numbers = #tpu.dot_dimension_numbers<[1], [0], [0], [1], [0, 0, 1, 1], [], []>} : vector<128x32xbf16>, vector<32x32xbf16>, vector<128x32xf32> -> vector<128x32xf32>
    %c1_62 = arith.constant 1 : index
    %c0_63 = arith.constant 0 : index
    %c0_64 = arith.constant 0 : index
    %74 = vector.load %arg7[%c1_62, %c0_63, %c0_64] : memref<10x1x32xf32, #tpu.memory_space<vmem>>, vector<1x1x32xf32>
    %75 = vector.shape_cast %74 : vector<1x1x32xf32> to vector<1x32xf32>
    %76 = vector.broadcast %75 : vector<1x32xf32> to vector<128x32xf32>
    %77 = arith.addf %73, %76 : vector<128x32xf32>
    %78 = arith.truncf %57 : vector<128x64xf32> to vector<128x64xbf16>
    %c0_65 = arith.constant 0 : index
    %c0_66 = arith.constant 0 : index
    %c0_67 = arith.constant 0 : index
    %79 = vector.load %arg6[%c0_65, %c0_66, %c0_67] : memref<5x64x32xbf16, #tpu.memory_space<vmem>>, vector<1x64x32xbf16>
    %80 = vector.shape_cast %79 : vector<1x64x32xbf16> to vector<64x32xbf16>
    %cst_68 = arith.constant dense<0.000000e+00> : vector<128x32xf32>
    %81 = tpu.matmul %78, %80, %cst_68 {dimension_numbers = #tpu.dot_dimension_numbers<[1], [0], [0], [1], [0, 0, 1, 1], [], []>} : vector<128x64xbf16>, vector<64x32xbf16>, vector<128x32xf32> -> vector<128x32xf32>
    %82 = arith.addf %81, %77 : vector<128x32xf32>
    %83 = vector.extract_strided_slice %82 {offsets = [0, 0], sizes = [64, 32], strides = [1, 1]} : vector<128x32xf32> to vector<64x32xf32>
    %cst_69 = arith.constant dense<0xFF800000> : vector<32xf32>
    %84 = vector.multi_reduction <maximumf>, %83, %cst_69 [0] : vector<64x32xf32> to vector<32xf32>
    %85 = vector.shape_cast %84 : vector<32xf32> to vector<1x32xf32>
    %86 = vector.extract_strided_slice %82 {offsets = [64, 0], sizes = [64, 32], strides = [1, 1]} : vector<128x32xf32> to vector<64x32xf32>
    %cst_70 = arith.constant dense<0xFF800000> : vector<32xf32>
    %87 = vector.multi_reduction <maximumf>, %86, %cst_70 [0] : vector<64x32xf32> to vector<32xf32>
    %88 = vector.shape_cast %87 : vector<32xf32> to vector<1x32xf32>
    %89 = tpu.concatenate %85, %88 in 0 : vector<1x32xf32>, vector<1x32xf32> -> vector<2x32xf32>
    %c1_71 = arith.constant 1 : index
    %c0_72 = arith.constant 0 : index
    %c0_73 = arith.constant 0 : index
    %90 = vector.load %arg4[%c1_71, %c0_72, %c0_73] : memref<5x64x32xbf16, #tpu.memory_space<vmem>>, vector<1x64x32xbf16>
    %91 = vector.shape_cast %90 : vector<1x64x32xbf16> to vector<64x32xbf16>
    %c1_74 = arith.constant 1 : index
    %c0_75 = arith.constant 0 : index
    %c0_76 = arith.constant 0 : index
    %92 = vector.load %arg6[%c1_74, %c0_75, %c0_76] : memref<5x64x32xbf16, #tpu.memory_space<vmem>>, vector<1x64x32xbf16>
    %93 = vector.shape_cast %92 : vector<1x64x32xbf16> to vector<64x32xbf16>
    %cst_77 = arith.constant 0.000000e+00 : f32
    %94 = vector.broadcast %cst_77 : f32 to vector<128x32xf32>
    %95 = arith.maximumf %82, %94 : vector<128x32xf32>
    %96 = arith.truncf %95 : vector<128x32xf32> to vector<128x32xbf16>
    %cst_78 = arith.constant 0.000000e+00 : f32
    %97 = vector.broadcast %cst_78 : f32 to vector<2x32xf32>
    %98 = arith.maximumf %89, %97 : vector<2x32xf32>
    %99 = arith.truncf %98 : vector<2x32xf32> to vector<2x32xbf16>
    %100 = vector.extract_strided_slice %91 {offsets = [0, 0], sizes = [32, 32], strides = [1, 1]} : vector<64x32xbf16> to vector<32x32xbf16>
    %cst_79 = arith.constant dense<0.000000e+00> : vector<128x32xf32>
    %101 = tpu.matmul %96, %100, %cst_79 {dimension_numbers = #tpu.dot_dimension_numbers<[1], [0], [0], [1], [0, 0, 1, 1], [], []>} : vector<128x32xbf16>, vector<32x32xbf16>, vector<128x32xf32> -> vector<128x32xf32>
    %102 = vector.extract_strided_slice %91 {offsets = [32, 0], sizes = [32, 32], strides = [1, 1]} : vector<64x32xbf16> to vector<32x32xbf16>
    %cst_80 = arith.constant dense<0.000000e+00> : vector<2x32xf32>
    %103 = tpu.matmul %99, %102, %cst_80 {dimension_numbers = #tpu.dot_dimension_numbers<[1], [0], [0], [1], [0, 0, 1, 1], [], []>} : vector<2x32xbf16>, vector<32x32xbf16>, vector<2x32xf32> -> vector<2x32xf32>
    %104 = vector.extract_strided_slice %103 {offsets = [0, 0], sizes = [1, 32], strides = [1, 1]} : vector<2x32xf32> to vector<1x32xf32>
    %105 = vector.shape_cast %104 : vector<1x32xf32> to vector<1x32xf32>
    %106 = vector.broadcast %105 : vector<1x32xf32> to vector<64x32xf32>
    %107 = vector.extract_strided_slice %103 {offsets = [1, 0], sizes = [1, 32], strides = [1, 1]} : vector<2x32xf32> to vector<1x32xf32>
    %108 = vector.shape_cast %107 : vector<1x32xf32> to vector<1x32xf32>
    %109 = vector.broadcast %108 : vector<1x32xf32> to vector<64x32xf32>
    %110 = tpu.concatenate %106, %109 in 0 : vector<64x32xf32>, vector<64x32xf32> -> vector<128x32xf32>
    %111 = arith.addf %101, %110 : vector<128x32xf32>
    %c2_81 = arith.constant 2 : index
    %c0_82 = arith.constant 0 : index
    %c0_83 = arith.constant 0 : index
    %112 = vector.load %arg7[%c2_81, %c0_82, %c0_83] : memref<10x1x32xf32, #tpu.memory_space<vmem>>, vector<1x1x32xf32>
    %113 = vector.shape_cast %112 : vector<1x1x32xf32> to vector<1x32xf32>
    %114 = vector.broadcast %113 : vector<1x32xf32> to vector<128x32xf32>
    %115 = arith.addf %111, %114 : vector<128x32xf32>
    %cst_84 = arith.constant 0.000000e+00 : f32
    %116 = vector.broadcast %cst_84 : f32 to vector<128x32xf32>
    %117 = arith.maximumf %115, %116 : vector<128x32xf32>
    %118 = arith.truncf %117 : vector<128x32xf32> to vector<128x32xbf16>
    %c1_85 = arith.constant 1 : index
    %c0_86 = arith.constant 0 : index
    %c0_87 = arith.constant 0 : index
    %119 = vector.load %arg5[%c1_85, %c0_86, %c0_87] : memref<5x32x32xbf16, #tpu.memory_space<vmem>>, vector<1x32x32xbf16>
    %120 = vector.shape_cast %119 : vector<1x32x32xbf16> to vector<32x32xbf16>
    %cst_88 = arith.constant dense<0.000000e+00> : vector<128x32xf32>
    %121 = tpu.matmul %118, %120, %cst_88 {dimension_numbers = #tpu.dot_dimension_numbers<[1], [0], [0], [1], [0, 0, 1, 1], [], []>} : vector<128x32xbf16>, vector<32x32xbf16>, vector<128x32xf32> -> vector<128x32xf32>
    %c3_89 = arith.constant 3 : index
    %c0_90 = arith.constant 0 : index
    %c0_91 = arith.constant 0 : index
    %122 = vector.load %arg7[%c3_89, %c0_90, %c0_91] : memref<10x1x32xf32, #tpu.memory_space<vmem>>, vector<1x1x32xf32>
    %123 = vector.shape_cast %122 : vector<1x1x32xf32> to vector<1x32xf32>
    %124 = vector.broadcast %123 : vector<1x32xf32> to vector<128x32xf32>
    %125 = arith.addf %121, %124 : vector<128x32xf32>
    %126 = arith.truncf %82 : vector<128x32xf32> to vector<128x32xbf16>
    %127 = vector.extract_strided_slice %93 {offsets = [0, 0], sizes = [32, 32], strides = [1, 1]} : vector<64x32xbf16> to vector<32x32xbf16>
    %cst_92 = arith.constant dense<0.000000e+00> : vector<128x32xf32>
    %128 = tpu.matmul %126, %127, %cst_92 {dimension_numbers = #tpu.dot_dimension_numbers<[1], [0], [0], [1], [0, 0, 1, 1], [], []>} : vector<128x32xbf16>, vector<32x32xbf16>, vector<128x32xf32> -> vector<128x32xf32>
    %129 = arith.truncf %89 : vector<2x32xf32> to vector<2x32xbf16>
    %130 = vector.extract_strided_slice %93 {offsets = [32, 0], sizes = [32, 32], strides = [1, 1]} : vector<64x32xbf16> to vector<32x32xbf16>
    %cst_93 = arith.constant dense<0.000000e+00> : vector<2x32xf32>
    %131 = tpu.matmul %129, %130, %cst_93 {dimension_numbers = #tpu.dot_dimension_numbers<[1], [0], [0], [1], [0, 0, 1, 1], [], []>} : vector<2x32xbf16>, vector<32x32xbf16>, vector<2x32xf32> -> vector<2x32xf32>
    %132 = vector.extract_strided_slice %131 {offsets = [0, 0], sizes = [1, 32], strides = [1, 1]} : vector<2x32xf32> to vector<1x32xf32>
    %133 = vector.shape_cast %132 : vector<1x32xf32> to vector<1x32xf32>
    %134 = vector.broadcast %133 : vector<1x32xf32> to vector<64x32xf32>
    %135 = vector.extract_strided_slice %131 {offsets = [1, 0], sizes = [1, 32], strides = [1, 1]} : vector<2x32xf32> to vector<1x32xf32>
    %136 = vector.shape_cast %135 : vector<1x32xf32> to vector<1x32xf32>
    %137 = vector.broadcast %136 : vector<1x32xf32> to vector<64x32xf32>
    %138 = tpu.concatenate %134, %137 in 0 : vector<64x32xf32>, vector<64x32xf32> -> vector<128x32xf32>
    %139 = arith.addf %128, %138 : vector<128x32xf32>
    %140 = arith.addf %139, %125 : vector<128x32xf32>
    %141 = vector.extract_strided_slice %140 {offsets = [0, 0], sizes = [64, 32], strides = [1, 1]} : vector<128x32xf32> to vector<64x32xf32>
    %cst_94 = arith.constant dense<0xFF800000> : vector<32xf32>
    %142 = vector.multi_reduction <maximumf>, %141, %cst_94 [0] : vector<64x32xf32> to vector<32xf32>
    %143 = vector.shape_cast %142 : vector<32xf32> to vector<1x32xf32>
    %144 = vector.extract_strided_slice %140 {offsets = [64, 0], sizes = [64, 32], strides = [1, 1]} : vector<128x32xf32> to vector<64x32xf32>
    %cst_95 = arith.constant dense<0xFF800000> : vector<32xf32>
    %145 = vector.multi_reduction <maximumf>, %144, %cst_95 [0] : vector<64x32xf32> to vector<32xf32>
    %146 = vector.shape_cast %145 : vector<32xf32> to vector<1x32xf32>
    %147 = tpu.concatenate %143, %146 in 0 : vector<1x32xf32>, vector<1x32xf32> -> vector<2x32xf32>
    %c2_96 = arith.constant 2 : index
    %c0_97 = arith.constant 0 : index
    %c0_98 = arith.constant 0 : index
    %148 = vector.load %arg4[%c2_96, %c0_97, %c0_98] : memref<5x64x32xbf16, #tpu.memory_space<vmem>>, vector<1x64x32xbf16>
    %149 = vector.shape_cast %148 : vector<1x64x32xbf16> to vector<64x32xbf16>
    %c2_99 = arith.constant 2 : index
    %c0_100 = arith.constant 0 : index
    %c0_101 = arith.constant 0 : index
    %150 = vector.load %arg6[%c2_99, %c0_100, %c0_101] : memref<5x64x32xbf16, #tpu.memory_space<vmem>>, vector<1x64x32xbf16>
    %151 = vector.shape_cast %150 : vector<1x64x32xbf16> to vector<64x32xbf16>
    %cst_102 = arith.constant 0.000000e+00 : f32
    %152 = vector.broadcast %cst_102 : f32 to vector<128x32xf32>
    %153 = arith.maximumf %140, %152 : vector<128x32xf32>
    %154 = arith.truncf %153 : vector<128x32xf32> to vector<128x32xbf16>
    %cst_103 = arith.constant 0.000000e+00 : f32
    %155 = vector.broadcast %cst_103 : f32 to vector<2x32xf32>
    %156 = arith.maximumf %147, %155 : vector<2x32xf32>
    %157 = arith.truncf %156 : vector<2x32xf32> to vector<2x32xbf16>
    %158 = vector.extract_strided_slice %149 {offsets = [0, 0], sizes = [32, 32], strides = [1, 1]} : vector<64x32xbf16> to vector<32x32xbf16>
    %cst_104 = arith.constant dense<0.000000e+00> : vector<128x32xf32>
    %159 = tpu.matmul %154, %158, %cst_104 {dimension_numbers = #tpu.dot_dimension_numbers<[1], [0], [0], [1], [0, 0, 1, 1], [], []>} : vector<128x32xbf16>, vector<32x32xbf16>, vector<128x32xf32> -> vector<128x32xf32>
    %160 = vector.extract_strided_slice %149 {offsets = [32, 0], sizes = [32, 32], strides = [1, 1]} : vector<64x32xbf16> to vector<32x32xbf16>
    %cst_105 = arith.constant dense<0.000000e+00> : vector<2x32xf32>
    %161 = tpu.matmul %157, %160, %cst_105 {dimension_numbers = #tpu.dot_dimension_numbers<[1], [0], [0], [1], [0, 0, 1, 1], [], []>} : vector<2x32xbf16>, vector<32x32xbf16>, vector<2x32xf32> -> vector<2x32xf32>
    %162 = vector.extract_strided_slice %161 {offsets = [0, 0], sizes = [1, 32], strides = [1, 1]} : vector<2x32xf32> to vector<1x32xf32>
    %163 = vector.shape_cast %162 : vector<1x32xf32> to vector<1x32xf32>
    %164 = vector.broadcast %163 : vector<1x32xf32> to vector<64x32xf32>
    %165 = vector.extract_strided_slice %161 {offsets = [1, 0], sizes = [1, 32], strides = [1, 1]} : vector<2x32xf32> to vector<1x32xf32>
    %166 = vector.shape_cast %165 : vector<1x32xf32> to vector<1x32xf32>
    %167 = vector.broadcast %166 : vector<1x32xf32> to vector<64x32xf32>
    %168 = tpu.concatenate %164, %167 in 0 : vector<64x32xf32>, vector<64x32xf32> -> vector<128x32xf32>
    %169 = arith.addf %159, %168 : vector<128x32xf32>
    %c4_106 = arith.constant 4 : index
    %c0_107 = arith.constant 0 : index
    %c0_108 = arith.constant 0 : index
    %170 = vector.load %arg7[%c4_106, %c0_107, %c0_108] : memref<10x1x32xf32, #tpu.memory_space<vmem>>, vector<1x1x32xf32>
    %171 = vector.shape_cast %170 : vector<1x1x32xf32> to vector<1x32xf32>
    %172 = vector.broadcast %171 : vector<1x32xf32> to vector<128x32xf32>
    %173 = arith.addf %169, %172 : vector<128x32xf32>
    %cst_109 = arith.constant 0.000000e+00 : f32
    %174 = vector.broadcast %cst_109 : f32 to vector<128x32xf32>
    %175 = arith.maximumf %173, %174 : vector<128x32xf32>
    %176 = arith.truncf %175 : vector<128x32xf32> to vector<128x32xbf16>
    %c2_110 = arith.constant 2 : index
    %c0_111 = arith.constant 0 : index
    %c0_112 = arith.constant 0 : index
    %177 = vector.load %arg5[%c2_110, %c0_111, %c0_112] : memref<5x32x32xbf16, #tpu.memory_space<vmem>>, vector<1x32x32xbf16>
    %178 = vector.shape_cast %177 : vector<1x32x32xbf16> to vector<32x32xbf16>
    %cst_113 = arith.constant dense<0.000000e+00> : vector<128x32xf32>
    %179 = tpu.matmul %176, %178, %cst_113 {dimension_numbers = #tpu.dot_dimension_numbers<[1], [0], [0], [1], [0, 0, 1, 1], [], []>} : vector<128x32xbf16>, vector<32x32xbf16>, vector<128x32xf32> -> vector<128x32xf32>
    %c5_114 = arith.constant 5 : index
    %c0_115 = arith.constant 0 : index
    %c0_116 = arith.constant 0 : index
    %180 = vector.load %arg7[%c5_114, %c0_115, %c0_116] : memref<10x1x32xf32, #tpu.memory_space<vmem>>, vector<1x1x32xf32>
    %181 = vector.shape_cast %180 : vector<1x1x32xf32> to vector<1x32xf32>
    %182 = vector.broadcast %181 : vector<1x32xf32> to vector<128x32xf32>
    %183 = arith.addf %179, %182 : vector<128x32xf32>
    %184 = arith.truncf %140 : vector<128x32xf32> to vector<128x32xbf16>
    %185 = vector.extract_strided_slice %151 {offsets = [0, 0], sizes = [32, 32], strides = [1, 1]} : vector<64x32xbf16> to vector<32x32xbf16>
    %cst_117 = arith.constant dense<0.000000e+00> : vector<128x32xf32>
    %186 = tpu.matmul %184, %185, %cst_117 {dimension_numbers = #tpu.dot_dimension_numbers<[1], [0], [0], [1], [0, 0, 1, 1], [], []>} : vector<128x32xbf16>, vector<32x32xbf16>, vector<128x32xf32> -> vector<128x32xf32>
    %187 = arith.truncf %147 : vector<2x32xf32> to vector<2x32xbf16>
    %188 = vector.extract_strided_slice %151 {offsets = [32, 0], sizes = [32, 32], strides = [1, 1]} : vector<64x32xbf16> to vector<32x32xbf16>
    %cst_118 = arith.constant dense<0.000000e+00> : vector<2x32xf32>
    %189 = tpu.matmul %187, %188, %cst_118 {dimension_numbers = #tpu.dot_dimension_numbers<[1], [0], [0], [1], [0, 0, 1, 1], [], []>} : vector<2x32xbf16>, vector<32x32xbf16>, vector<2x32xf32> -> vector<2x32xf32>
    %190 = vector.extract_strided_slice %189 {offsets = [0, 0], sizes = [1, 32], strides = [1, 1]} : vector<2x32xf32> to vector<1x32xf32>
    %191 = vector.shape_cast %190 : vector<1x32xf32> to vector<1x32xf32>
    %192 = vector.broadcast %191 : vector<1x32xf32> to vector<64x32xf32>
    %193 = vector.extract_strided_slice %189 {offsets = [1, 0], sizes = [1, 32], strides = [1, 1]} : vector<2x32xf32> to vector<1x32xf32>
    %194 = vector.shape_cast %193 : vector<1x32xf32> to vector<1x32xf32>
    %195 = vector.broadcast %194 : vector<1x32xf32> to vector<64x32xf32>
    %196 = tpu.concatenate %192, %195 in 0 : vector<64x32xf32>, vector<64x32xf32> -> vector<128x32xf32>
    %197 = arith.addf %186, %196 : vector<128x32xf32>
    %198 = arith.addf %197, %183 : vector<128x32xf32>
    %199 = vector.extract_strided_slice %198 {offsets = [0, 0], sizes = [64, 32], strides = [1, 1]} : vector<128x32xf32> to vector<64x32xf32>
    %cst_119 = arith.constant dense<0xFF800000> : vector<32xf32>
    %200 = vector.multi_reduction <maximumf>, %199, %cst_119 [0] : vector<64x32xf32> to vector<32xf32>
    %201 = vector.shape_cast %200 : vector<32xf32> to vector<1x32xf32>
    %202 = vector.extract_strided_slice %198 {offsets = [64, 0], sizes = [64, 32], strides = [1, 1]} : vector<128x32xf32> to vector<64x32xf32>
    %cst_120 = arith.constant dense<0xFF800000> : vector<32xf32>
    %203 = vector.multi_reduction <maximumf>, %202, %cst_120 [0] : vector<64x32xf32> to vector<32xf32>
    %204 = vector.shape_cast %203 : vector<32xf32> to vector<1x32xf32>
    %205 = tpu.concatenate %201, %204 in 0 : vector<1x32xf32>, vector<1x32xf32> -> vector<2x32xf32>
    %c3_121 = arith.constant 3 : index
    %c0_122 = arith.constant 0 : index
    %c0_123 = arith.constant 0 : index
    %206 = vector.load %arg4[%c3_121, %c0_122, %c0_123] : memref<5x64x32xbf16, #tpu.memory_space<vmem>>, vector<1x64x32xbf16>
    %207 = vector.shape_cast %206 : vector<1x64x32xbf16> to vector<64x32xbf16>
    %c3_124 = arith.constant 3 : index
    %c0_125 = arith.constant 0 : index
    %c0_126 = arith.constant 0 : index
    %208 = vector.load %arg6[%c3_124, %c0_125, %c0_126] : memref<5x64x32xbf16, #tpu.memory_space<vmem>>, vector<1x64x32xbf16>
    %209 = vector.shape_cast %208 : vector<1x64x32xbf16> to vector<64x32xbf16>
    %cst_127 = arith.constant 0.000000e+00 : f32
    %210 = vector.broadcast %cst_127 : f32 to vector<128x32xf32>
    %211 = arith.maximumf %198, %210 : vector<128x32xf32>
    %212 = arith.truncf %211 : vector<128x32xf32> to vector<128x32xbf16>
    %cst_128 = arith.constant 0.000000e+00 : f32
    %213 = vector.broadcast %cst_128 : f32 to vector<2x32xf32>
    %214 = arith.maximumf %205, %213 : vector<2x32xf32>
    %215 = arith.truncf %214 : vector<2x32xf32> to vector<2x32xbf16>
    %216 = vector.extract_strided_slice %207 {offsets = [0, 0], sizes = [32, 32], strides = [1, 1]} : vector<64x32xbf16> to vector<32x32xbf16>
    %cst_129 = arith.constant dense<0.000000e+00> : vector<128x32xf32>
    %217 = tpu.matmul %212, %216, %cst_129 {dimension_numbers = #tpu.dot_dimension_numbers<[1], [0], [0], [1], [0, 0, 1, 1], [], []>} : vector<128x32xbf16>, vector<32x32xbf16>, vector<128x32xf32> -> vector<128x32xf32>
    %218 = vector.extract_strided_slice %207 {offsets = [32, 0], sizes = [32, 32], strides = [1, 1]} : vector<64x32xbf16> to vector<32x32xbf16>
    %cst_130 = arith.constant dense<0.000000e+00> : vector<2x32xf32>
    %219 = tpu.matmul %215, %218, %cst_130 {dimension_numbers = #tpu.dot_dimension_numbers<[1], [0], [0], [1], [0, 0, 1, 1], [], []>} : vector<2x32xbf16>, vector<32x32xbf16>, vector<2x32xf32> -> vector<2x32xf32>
    %220 = vector.extract_strided_slice %219 {offsets = [0, 0], sizes = [1, 32], strides = [1, 1]} : vector<2x32xf32> to vector<1x32xf32>
    %221 = vector.shape_cast %220 : vector<1x32xf32> to vector<1x32xf32>
    %222 = vector.broadcast %221 : vector<1x32xf32> to vector<64x32xf32>
    %223 = vector.extract_strided_slice %219 {offsets = [1, 0], sizes = [1, 32], strides = [1, 1]} : vector<2x32xf32> to vector<1x32xf32>
    %224 = vector.shape_cast %223 : vector<1x32xf32> to vector<1x32xf32>
    %225 = vector.broadcast %224 : vector<1x32xf32> to vector<64x32xf32>
    %226 = tpu.concatenate %222, %225 in 0 : vector<64x32xf32>, vector<64x32xf32> -> vector<128x32xf32>
    %227 = arith.addf %217, %226 : vector<128x32xf32>
    %c6_131 = arith.constant 6 : index
    %c0_132 = arith.constant 0 : index
    %c0_133 = arith.constant 0 : index
    %228 = vector.load %arg7[%c6_131, %c0_132, %c0_133] : memref<10x1x32xf32, #tpu.memory_space<vmem>>, vector<1x1x32xf32>
    %229 = vector.shape_cast %228 : vector<1x1x32xf32> to vector<1x32xf32>
    %230 = vector.broadcast %229 : vector<1x32xf32> to vector<128x32xf32>
    %231 = arith.addf %227, %230 : vector<128x32xf32>
    %cst_134 = arith.constant 0.000000e+00 : f32
    %232 = vector.broadcast %cst_134 : f32 to vector<128x32xf32>
    %233 = arith.maximumf %231, %232 : vector<128x32xf32>
    %234 = arith.truncf %233 : vector<128x32xf32> to vector<128x32xbf16>
    %c3_135 = arith.constant 3 : index
    %c0_136 = arith.constant 0 : index
    %c0_137 = arith.constant 0 : index
    %235 = vector.load %arg5[%c3_135, %c0_136, %c0_137] : memref<5x32x32xbf16, #tpu.memory_space<vmem>>, vector<1x32x32xbf16>
    %236 = vector.shape_cast %235 : vector<1x32x32xbf16> to vector<32x32xbf16>
    %cst_138 = arith.constant dense<0.000000e+00> : vector<128x32xf32>
    %237 = tpu.matmul %234, %236, %cst_138 {dimension_numbers = #tpu.dot_dimension_numbers<[1], [0], [0], [1], [0, 0, 1, 1], [], []>} : vector<128x32xbf16>, vector<32x32xbf16>, vector<128x32xf32> -> vector<128x32xf32>
    %c7_139 = arith.constant 7 : index
    %c0_140 = arith.constant 0 : index
    %c0_141 = arith.constant 0 : index
    %238 = vector.load %arg7[%c7_139, %c0_140, %c0_141] : memref<10x1x32xf32, #tpu.memory_space<vmem>>, vector<1x1x32xf32>
    %239 = vector.shape_cast %238 : vector<1x1x32xf32> to vector<1x32xf32>
    %240 = vector.broadcast %239 : vector<1x32xf32> to vector<128x32xf32>
    %241 = arith.addf %237, %240 : vector<128x32xf32>
    %242 = arith.truncf %198 : vector<128x32xf32> to vector<128x32xbf16>
    %243 = vector.extract_strided_slice %209 {offsets = [0, 0], sizes = [32, 32], strides = [1, 1]} : vector<64x32xbf16> to vector<32x32xbf16>
    %cst_142 = arith.constant dense<0.000000e+00> : vector<128x32xf32>
    %244 = tpu.matmul %242, %243, %cst_142 {dimension_numbers = #tpu.dot_dimension_numbers<[1], [0], [0], [1], [0, 0, 1, 1], [], []>} : vector<128x32xbf16>, vector<32x32xbf16>, vector<128x32xf32> -> vector<128x32xf32>
    %245 = arith.truncf %205 : vector<2x32xf32> to vector<2x32xbf16>
    %246 = vector.extract_strided_slice %209 {offsets = [32, 0], sizes = [32, 32], strides = [1, 1]} : vector<64x32xbf16> to vector<32x32xbf16>
    %cst_143 = arith.constant dense<0.000000e+00> : vector<2x32xf32>
    %247 = tpu.matmul %245, %246, %cst_143 {dimension_numbers = #tpu.dot_dimension_numbers<[1], [0], [0], [1], [0, 0, 1, 1], [], []>} : vector<2x32xbf16>, vector<32x32xbf16>, vector<2x32xf32> -> vector<2x32xf32>
    %248 = vector.extract_strided_slice %247 {offsets = [0, 0], sizes = [1, 32], strides = [1, 1]} : vector<2x32xf32> to vector<1x32xf32>
    %249 = vector.shape_cast %248 : vector<1x32xf32> to vector<1x32xf32>
    %250 = vector.broadcast %249 : vector<1x32xf32> to vector<64x32xf32>
    %251 = vector.extract_strided_slice %247 {offsets = [1, 0], sizes = [1, 32], strides = [1, 1]} : vector<2x32xf32> to vector<1x32xf32>
    %252 = vector.shape_cast %251 : vector<1x32xf32> to vector<1x32xf32>
    %253 = vector.broadcast %252 : vector<1x32xf32> to vector<64x32xf32>
    %254 = tpu.concatenate %250, %253 in 0 : vector<64x32xf32>, vector<64x32xf32> -> vector<128x32xf32>
    %255 = arith.addf %244, %254 : vector<128x32xf32>
    %256 = arith.addf %255, %241 : vector<128x32xf32>
    %257 = vector.extract_strided_slice %256 {offsets = [0, 0], sizes = [64, 32], strides = [1, 1]} : vector<128x32xf32> to vector<64x32xf32>
    %cst_144 = arith.constant dense<0xFF800000> : vector<32xf32>
    %258 = vector.multi_reduction <maximumf>, %257, %cst_144 [0] : vector<64x32xf32> to vector<32xf32>
    %259 = vector.shape_cast %258 : vector<32xf32> to vector<1x32xf32>
    %260 = vector.extract_strided_slice %256 {offsets = [64, 0], sizes = [64, 32], strides = [1, 1]} : vector<128x32xf32> to vector<64x32xf32>
    %cst_145 = arith.constant dense<0xFF800000> : vector<32xf32>
    %261 = vector.multi_reduction <maximumf>, %260, %cst_145 [0] : vector<64x32xf32> to vector<32xf32>
    %262 = vector.shape_cast %261 : vector<32xf32> to vector<1x32xf32>
    %263 = tpu.concatenate %259, %262 in 0 : vector<1x32xf32>, vector<1x32xf32> -> vector<2x32xf32>
    %c4_146 = arith.constant 4 : index
    %c0_147 = arith.constant 0 : index
    %c0_148 = arith.constant 0 : index
    %264 = vector.load %arg4[%c4_146, %c0_147, %c0_148] : memref<5x64x32xbf16, #tpu.memory_space<vmem>>, vector<1x64x32xbf16>
    %265 = vector.shape_cast %264 : vector<1x64x32xbf16> to vector<64x32xbf16>
    %c4_149 = arith.constant 4 : index
    %c0_150 = arith.constant 0 : index
    %c0_151 = arith.constant 0 : index
    %266 = vector.load %arg6[%c4_149, %c0_150, %c0_151] : memref<5x64x32xbf16, #tpu.memory_space<vmem>>, vector<1x64x32xbf16>
    %267 = vector.shape_cast %266 : vector<1x64x32xbf16> to vector<64x32xbf16>
    %cst_152 = arith.constant 0.000000e+00 : f32
    %268 = vector.broadcast %cst_152 : f32 to vector<128x32xf32>
    %269 = arith.maximumf %256, %268 : vector<128x32xf32>
    %270 = arith.truncf %269 : vector<128x32xf32> to vector<128x32xbf16>
    %cst_153 = arith.constant 0.000000e+00 : f32
    %271 = vector.broadcast %cst_153 : f32 to vector<2x32xf32>
    %272 = arith.maximumf %263, %271 : vector<2x32xf32>
    %273 = arith.truncf %272 : vector<2x32xf32> to vector<2x32xbf16>
    %274 = vector.extract_strided_slice %265 {offsets = [0, 0], sizes = [32, 32], strides = [1, 1]} : vector<64x32xbf16> to vector<32x32xbf16>
    %cst_154 = arith.constant dense<0.000000e+00> : vector<128x32xf32>
    %275 = tpu.matmul %270, %274, %cst_154 {dimension_numbers = #tpu.dot_dimension_numbers<[1], [0], [0], [1], [0, 0, 1, 1], [], []>} : vector<128x32xbf16>, vector<32x32xbf16>, vector<128x32xf32> -> vector<128x32xf32>
    %276 = vector.extract_strided_slice %265 {offsets = [32, 0], sizes = [32, 32], strides = [1, 1]} : vector<64x32xbf16> to vector<32x32xbf16>
    %cst_155 = arith.constant dense<0.000000e+00> : vector<2x32xf32>
    %277 = tpu.matmul %273, %276, %cst_155 {dimension_numbers = #tpu.dot_dimension_numbers<[1], [0], [0], [1], [0, 0, 1, 1], [], []>} : vector<2x32xbf16>, vector<32x32xbf16>, vector<2x32xf32> -> vector<2x32xf32>
    %278 = vector.extract_strided_slice %277 {offsets = [0, 0], sizes = [1, 32], strides = [1, 1]} : vector<2x32xf32> to vector<1x32xf32>
    %279 = vector.shape_cast %278 : vector<1x32xf32> to vector<1x32xf32>
    %280 = vector.broadcast %279 : vector<1x32xf32> to vector<64x32xf32>
    %281 = vector.extract_strided_slice %277 {offsets = [1, 0], sizes = [1, 32], strides = [1, 1]} : vector<2x32xf32> to vector<1x32xf32>
    %282 = vector.shape_cast %281 : vector<1x32xf32> to vector<1x32xf32>
    %283 = vector.broadcast %282 : vector<1x32xf32> to vector<64x32xf32>
    %284 = tpu.concatenate %280, %283 in 0 : vector<64x32xf32>, vector<64x32xf32> -> vector<128x32xf32>
    %285 = arith.addf %275, %284 : vector<128x32xf32>
    %c8 = arith.constant 8 : index
    %c0_156 = arith.constant 0 : index
    %c0_157 = arith.constant 0 : index
    %286 = vector.load %arg7[%c8, %c0_156, %c0_157] : memref<10x1x32xf32, #tpu.memory_space<vmem>>, vector<1x1x32xf32>
    %287 = vector.shape_cast %286 : vector<1x1x32xf32> to vector<1x32xf32>
    %288 = vector.broadcast %287 : vector<1x32xf32> to vector<128x32xf32>
    %289 = arith.addf %285, %288 : vector<128x32xf32>
    %cst_158 = arith.constant 0.000000e+00 : f32
    %290 = vector.broadcast %cst_158 : f32 to vector<128x32xf32>
    %291 = arith.maximumf %289, %290 : vector<128x32xf32>
    %292 = arith.truncf %291 : vector<128x32xf32> to vector<128x32xbf16>
    %c4_159 = arith.constant 4 : index
    %c0_160 = arith.constant 0 : index
    %c0_161 = arith.constant 0 : index
    %293 = vector.load %arg5[%c4_159, %c0_160, %c0_161] : memref<5x32x32xbf16, #tpu.memory_space<vmem>>, vector<1x32x32xbf16>
    %294 = vector.shape_cast %293 : vector<1x32x32xbf16> to vector<32x32xbf16>
    %cst_162 = arith.constant dense<0.000000e+00> : vector<128x32xf32>
    %295 = tpu.matmul %292, %294, %cst_162 {dimension_numbers = #tpu.dot_dimension_numbers<[1], [0], [0], [1], [0, 0, 1, 1], [], []>} : vector<128x32xbf16>, vector<32x32xbf16>, vector<128x32xf32> -> vector<128x32xf32>
    %c9 = arith.constant 9 : index
    %c0_163 = arith.constant 0 : index
    %c0_164 = arith.constant 0 : index
    %296 = vector.load %arg7[%c9, %c0_163, %c0_164] : memref<10x1x32xf32, #tpu.memory_space<vmem>>, vector<1x1x32xf32>
    %297 = vector.shape_cast %296 : vector<1x1x32xf32> to vector<1x32xf32>
    %298 = vector.broadcast %297 : vector<1x32xf32> to vector<128x32xf32>
    %299 = arith.addf %295, %298 : vector<128x32xf32>
    %300 = arith.truncf %256 : vector<128x32xf32> to vector<128x32xbf16>
    %301 = vector.extract_strided_slice %267 {offsets = [0, 0], sizes = [32, 32], strides = [1, 1]} : vector<64x32xbf16> to vector<32x32xbf16>
    %cst_165 = arith.constant dense<0.000000e+00> : vector<128x32xf32>
    %302 = tpu.matmul %300, %301, %cst_165 {dimension_numbers = #tpu.dot_dimension_numbers<[1], [0], [0], [1], [0, 0, 1, 1], [], []>} : vector<128x32xbf16>, vector<32x32xbf16>, vector<128x32xf32> -> vector<128x32xf32>
    %303 = arith.truncf %263 : vector<2x32xf32> to vector<2x32xbf16>
    %304 = vector.extract_strided_slice %267 {offsets = [32, 0], sizes = [32, 32], strides = [1, 1]} : vector<64x32xbf16> to vector<32x32xbf16>
    %cst_166 = arith.constant dense<0.000000e+00> : vector<2x32xf32>
    %305 = tpu.matmul %303, %304, %cst_166 {dimension_numbers = #tpu.dot_dimension_numbers<[1], [0], [0], [1], [0, 0, 1, 1], [], []>} : vector<2x32xbf16>, vector<32x32xbf16>, vector<2x32xf32> -> vector<2x32xf32>
    %306 = vector.extract_strided_slice %305 {offsets = [0, 0], sizes = [1, 32], strides = [1, 1]} : vector<2x32xf32> to vector<1x32xf32>
    %307 = vector.shape_cast %306 : vector<1x32xf32> to vector<1x32xf32>
    %308 = vector.broadcast %307 : vector<1x32xf32> to vector<64x32xf32>
    %309 = vector.extract_strided_slice %305 {offsets = [1, 0], sizes = [1, 32], strides = [1, 1]} : vector<2x32xf32> to vector<1x32xf32>
    %310 = vector.shape_cast %309 : vector<1x32xf32> to vector<1x32xf32>
    %311 = vector.broadcast %310 : vector<1x32xf32> to vector<64x32xf32>
    %312 = tpu.concatenate %308, %311 in 0 : vector<64x32xf32>, vector<64x32xf32> -> vector<128x32xf32>
    %313 = arith.addf %302, %312 : vector<128x32xf32>
    %314 = arith.addf %313, %299 : vector<128x32xf32>
    %315 = vector.extract_strided_slice %314 {offsets = [0, 0], sizes = [64, 32], strides = [1, 1]} : vector<128x32xf32> to vector<64x32xf32>
    %cst_167 = arith.constant dense<0xFF800000> : vector<32xf32>
    %316 = vector.multi_reduction <maximumf>, %315, %cst_167 [0] : vector<64x32xf32> to vector<32xf32>
    %317 = vector.shape_cast %316 : vector<32xf32> to vector<1x32xf32>
    %318 = vector.extract_strided_slice %314 {offsets = [64, 0], sizes = [64, 32], strides = [1, 1]} : vector<128x32xf32> to vector<64x32xf32>
    %cst_168 = arith.constant dense<0xFF800000> : vector<32xf32>
    %319 = vector.multi_reduction <maximumf>, %318, %cst_168 [0] : vector<64x32xf32> to vector<32xf32>
    %320 = vector.shape_cast %319 : vector<32xf32> to vector<1x32xf32>
    %321 = tpu.concatenate %317, %320 in 0 : vector<1x32xf32>, vector<1x32xf32> -> vector<2x32xf32>
    %cst_169 = arith.constant 0.000000e+00 : f32
    %322 = vector.broadcast %cst_169 : f32 to vector<2x32xf32>
    %323 = arith.maximumf %321, %322 : vector<2x32xf32>
    %324 = arith.truncf %323 : vector<2x32xf32> to vector<2x32xbf16>
    %c0_170 = arith.constant 0 : index
    %c0_171 = arith.constant 0 : index
    %325 = vector.load %arg8[%c0_170, %c0_171] : memref<32x128xbf16, #tpu.memory_space<vmem>>, vector<32x128xbf16>
    %cst_172 = arith.constant dense<0.000000e+00> : vector<2x128xf32>
    %326 = tpu.matmul %324, %325, %cst_172 {dimension_numbers = #tpu.dot_dimension_numbers<[1], [0], [0], [1], [0, 0, 1, 1], [], []>} : vector<2x32xbf16>, vector<32x128xbf16>, vector<2x128xf32> -> vector<2x128xf32>
    %c0_173 = arith.constant 0 : index
    %c0_174 = arith.constant 0 : index
    %327 = vector.load %arg9[%c0_173, %c0_174] : memref<1x128xf32, #tpu.memory_space<vmem>>, vector<1x128xf32>
    %328 = vector.broadcast %327 : vector<1x128xf32> to vector<2x128xf32>
    %329 = arith.addf %326, %328 : vector<2x128xf32>
    %c0_175 = arith.constant 0 : index
    %c0_176 = arith.constant 0 : index
    %c0_177 = arith.constant 0 : index
    %330 = vector.load %arg10[%c0_175, %c0_176, %c0_177] : memref<1x2x128xf32, #tpu.memory_space<vmem>>, vector<1x2x128xf32>
    %331 = vector.shape_cast %330 : vector<1x2x128xf32> to vector<2x128xf32>
    %332 = vector.shape_cast %329 : vector<2x128xf32> to vector<1x2x128xf32>
    tpu.vector_store %arg10[%c0_175, %c0_176, %c0_177], %332 {strides = array<i32>} : memref<1x2x128xf32, #tpu.memory_space<vmem>>, vector<1x2x128xf32>,
    return
  }
  func.func @transform_0(%arg0: i32) -> (i32, i32, i32) {
    %c0_i32 = arith.constant 0 : i32
    %c0_i32_0 = arith.constant 0 : i32
    %c0_i32_1 = arith.constant 0 : i32
    return %arg0, %c0_i32, %c0_i32_0 : i32, i32, i32
  }
  func.func @transform_1(%arg0: i32) -> (i32, i32, i32) {
    %c0_i32 = arith.constant 0 : i32
    %c0_i32_0 = arith.constant 0 : i32
    %c0_i32_1 = arith.constant 0 : i32
    %c0_i32_2 = arith.constant 0 : i32
    return %c0_i32, %c0_i32_0, %c0_i32_1 : i32, i32, i32
  }
  func.func @transform_2(%arg0: i32) -> (i32, i32) {
    %c0_i32 = arith.constant 0 : i32
    %c0_i32_0 = arith.constant 0 : i32
    %c0_i32_1 = arith.constant 0 : i32
    return %c0_i32, %c0_i32_0 : i32, i32
  }
  func.func @transform_3(%arg0: i32) -> (i32, i32, i32) {
    %c0_i32 = arith.constant 0 : i32
    %c0_i32_0 = arith.constant 0 : i32
    %c0_i32_1 = arith.constant 0 : i32
    %c0_i32_2 = arith.constant 0 : i32
    return %c0_i32, %c0_i32_0, %c0_i32_1 : i32, i32, i32
  }
  func.func @transform_4(%arg0: i32) -> (i32, i32, i32) {
    %c0_i32 = arith.constant 0 : i32
    %c0_i32_0 = arith.constant 0 : i32
    %c0_i32_1 = arith.constant 0 : i32
    %c0_i32_2 = arith.constant 0 : i32
    return %c0_i32, %c0_i32_0, %c0_i32_1 : i32, i32, i32
  }
  func.func @transform_5(%arg0: i32) -> (i32, i32, i32) {
    %c0_i32 = arith.constant 0 : i32
    %c0_i32_0 = arith.constant 0 : i32
    %c0_i32_1 = arith.constant 0 : i32
    %c0_i32_2 = arith.constant 0 : i32
    return %c0_i32, %c0_i32_0, %c0_i32_1 : i32, i32, i32
  }
  func.func @transform_6(%arg0: i32) -> (i32, i32, i32) {
    %c0_i32 = arith.constant 0 : i32
    %c0_i32_0 = arith.constant 0 : i32
    %c0_i32_1 = arith.constant 0 : i32
    %c0_i32_2 = arith.constant 0 : i32
    return %c0_i32, %c0_i32_0, %c0_i32_1 : i32, i32, i32
  }
  func.func @transform_7(%arg0: i32) -> (i32, i32) {
    %c0_i32 = arith.constant 0 : i32
    %c0_i32_0 = arith.constant 0 : i32
    %c0_i32_1 = arith.constant 0 : i32
    return %c0_i32, %c0_i32_0 : i32, i32
  }
  func.func @transform_8(%arg0: i32) -> (i32, i32) {
    %c0_i32 = arith.constant 0 : i32
    %c0_i32_0 = arith.constant 0 : i32
    %c0_i32_1 = arith.constant 0 : i32
    return %c0_i32, %c0_i32_0 : i32, i32
  }
  func.func @transform_9(%arg0: i32) -> (i32, i32, i32) {
    %c0_i32 = arith.constant 0 : i32
    %c0_i32_0 = arith.constant 0 : i32
    %c0_i32_1 = arith.constant 0 : i32
    return %arg0, %c0_i32, %c0_i32_0 : i32, i32, i32
  }
}

</mosaic_0001>

<llo_original>
// kernel: tpu_custom_call.1
$region0: #{tpu_custom_call.1}
  #allocation0 [shape = 'u32[]', space=smem, size = 0x4, offset = 0x4, fixed_abs, tag = 'smem constant byte address 0x4 - core index']
  #allocation1 [shape = 'u32[72,128]{1,0:T(1,128)}', space=vmem, size = 0x9000, scoped, tag = 'internal scratch']
  %s0 = inlined_call_operand.vmem [shape: f32[16,64,3], index: 0, kind: input, shape index: {}]
  %s1 = inlined_call_operand.vmem [shape: bf16[4,3,64], index: 1, kind: input, shape index: {}]
  %s2 = inlined_call_operand.vmem [shape: f32[1,64], index: 2, kind: input, shape index: {}]
  %s3 = inlined_call_operand.vmem [shape: bf16[5,64,32], index: 3, kind: input, shape index: {}]
  %s4 = inlined_call_operand.vmem [shape: bf16[5,32,32], index: 4, kind: input, shape index: {}]
  %s5 = inlined_call_operand.vmem [shape: bf16[5,64,32], index: 5, kind: input, shape index: {}]
  %s6 = inlined_call_operand.vmem [shape: f32[10,1,32], index: 6, kind: input, shape index: {}]
  %s7 = inlined_call_operand.vmem [shape: bf16[32,128], index: 7, kind: input, shape index: {}]
  %s8 = inlined_call_operand.vmem [shape: f32[1,128], index: 8, kind: input, shape index: {}]
  %s9 = inlined_call_operand.hbm [shape: f32[2,2,128], index: 9, kind: output, shape index: {}]
  %s10 = sld [smem:[#allocation0]]
  $region69: #{tpu_custom_call.1} parent=0
    _
  %s12 = ssub.s32 1, %s10
  %s13 = scalar_select 0, %s12, %s10
  $region1: #{tpu_custom_call.1} parent=0
    #allocation2 [shape = 'u8[2048]{0}', space=vmem, size = 0x800, scoped, tag = 'output window, operand 0']
    #allocation3 [shape = 's32[2]{0}', space=sflag, size = 0x8, scoped, tag = 'scoped memory for tpu_custom_call.1']
    %14 = vsyncpa [#allocation3], 0
    %s15 = scalar_lea.sflag [#allocation3], 1
    %16 = vsyncpa %s15, 0
    loop: start=0, step=1, limit=4
    $region2: #{tpu_custom_call.1} parent=1 // loop_pre_header
      _
    $region3: #{tpu_custom_call.1} parent=1 // loop_header
      %s18 = sphi 0, %s22
      %p19 = scmp.ge.s32.totalorder %s18, 4
      %s28 = sphi 0, %s30
      %s31 = sphi 0, %s28
      %s32 = sphi 0, %s31
      %s48 = sphi 0, %s32
      %s52 = sphi 0, %s52
      %s54 = sphi 0, %s52
      %s55 = sphi 0, %s54
      %s69 = sphi 0, %s55
      %s73 = sphi 0, %s73
      %s75 = sphi 0, %s73
      %s76 = sphi 0, %s75
      %s90 = sphi 0, %s76
      %s94 = sphi 0, %s94
      %s96 = sphi 0, %s94
      %s97 = sphi 0, %s96
      %s111 = sphi 0, %s97
      %s115 = sphi 0, %s115
      %s117 = sphi 0, %s115
      %s118 = sphi 0, %s117
      %s132 = sphi 0, %s118
      %s136 = sphi 0, %s136
      %s138 = sphi 0, %s136
      %s139 = sphi 0, %s138
      %s153 = sphi 0, %s139
      %s157 = sphi 0, %s157
      %s159 = sphi 0, %s157
      %s160 = sphi 0, %s159
      %s174 = sphi 0, %s160
      %s178 = sphi 0, %s178
      %s180 = sphi 0, %s178
      %s181 = sphi 0, %s180
      %s195 = sphi 0, %s181
      %s199 = sphi 0, %s199
      %s201 = sphi 0, %s199
      %s202 = sphi 0, %s201
      %s216 = sphi 0, %s202
      %s222 = sphi 0, %s224
      %s225 = sphi 0, %s222
      %s226 = sphi 0, %s225
      %s242 = sphi 0, %s226
    $region4: #{tpu_custom_call.1} parent=1 // loop_header_branch
      %21 = sbr.rel (%p19) target = $region8
    $region5: #{tpu_custom_call.1} parent=1 // loop_body
      %s23 = ssub.s32 %s18, 1
      %s24 = ssub.s32 %s18, 2
      %s25 = sadd.s32 %s18, 1
      %s26 = ssub.s32 %s18, %s25
      %p27 = scmp.eq.s32.totalorder %s26, 0
      %s29 = sadd.s32 %s28, 1
      %s30 = scalar_select %p27, %s28, %s29
      %p33 = pneg %p27
      %p34 = scmp.eq.s32.totalorder %s18, 1
      %p35 = por %p33, %p34
      %p36 = scmp.ne.s32.totalorder %s28, %s31
      %p37 = scmp.eq.s32.totalorder %s18, 0
      %p38 = por %p36, %p37
      %p39 = scmp.ne.s32.totalorder %s28, %s31
      %p40 = scmp.eq.s32.totalorder %s23, 1
      %p41 = por %p39, %p40
      %p42 = scmp.ne.s32.totalorder %s31, %s32
      %p43 = scmp.eq.s32.totalorder %s23, 0
      %p44 = por %p42, %p43
      %p45 = scmp.ne.s32.totalorder %s31, %s32
      %p46 = scmp.eq.s32.totalorder %s24, 1
      %p47 = por %p45, %p46
      %p49 = scmp.ne.s32.totalorder %s32, %s48
      %p50 = scmp.eq.s32.totalorder %s24, 0
      %p51 = por %p49, %p50
      %s53 = sadd.s32 %s52, 1
      %p56 = scmp.eq.s32.totalorder %s18, 1
      %p57 = scmp.ne.s32.totalorder %s52, %s54
      %p58 = scmp.eq.s32.totalorder %s18, 0
      %p59 = por %p57, %p58
      %p60 = scmp.ne.s32.totalorder %s52, %s54
      %p61 = scmp.eq.s32.totalorder %s23, 1
      %p62 = por %p60, %p61
      %p63 = scmp.ne.s32.totalorder %s54, %s55
      %p64 = scmp.eq.s32.totalorder %s23, 0
      %p65 = por %p63, %p64
      %p66 = scmp.ne.s32.totalorder %s54, %s55
      %p67 = scmp.eq.s32.totalorder %s24, 1
      %p68 = por %p66, %p67
      %p70 = scmp.ne.s32.totalorder %s55, %s69
      %p71 = scmp.eq.s32.totalorder %s24, 0
      %p72 = por %p70, %p71
      %s74 = sadd.s32 %s73, 1
      %p77 = scmp.eq.s32.totalorder %s18, 1
      %p78 = scmp.ne.s32.totalorder %s73, %s75
      %p79 = scmp.eq.s32.totalorder %s18, 0
      %p80 = por %p78, %p79
      %p81 = scmp.ne.s32.totalorder %s73, %s75
      %p82 = scmp.eq.s32.totalorder %s23, 1
      %p83 = por %p81, %p82
      %p84 = scmp.ne.s32.totalorder %s75, %s76
      %p85 = scmp.eq.s32.totalorder %s23, 0
      %p86 = por %p84, %p85
      %p87 = scmp.ne.s32.totalorder %s75, %s76
      %p88 = scmp.eq.s32.totalorder %s24, 1
      %p89 = por %p87, %p88
      %p91 = scmp.ne.s32.totalorder %s76, %s90
      %p92 = scmp.eq.s32.totalorder %s24, 0
      %p93 = por %p91, %p92
      %s95 = sadd.s32 %s94, 1
      %p98 = scmp.eq.s32.totalorder %s18, 1
      %p99 = scmp.ne.s32.totalorder %s94, %s96
      %p100 = scmp.eq.s32.totalorder %s18, 0
      %p101 = por %p99, %p100
      %p102 = scmp.ne.s32.totalorder %s94, %s96
      %p103 = scmp.eq.s32.totalorder %s23, 1
      %p104 = por %p102, %p103
      %p105 = scmp.ne.s32.totalorder %s96, %s97
      %p106 = scmp.eq.s32.totalorder %s23, 0
      %p107 = por %p105, %p106
      %p108 = scmp.ne.s32.totalorder %s96, %s97
      %p109 = scmp.eq.s32.totalorder %s24, 1
      %p110 = por %p108, %p109
      %p112 = scmp.ne.s32.totalorder %s97, %s111
      %p113 = scmp.eq.s32.totalorder %s24, 0
      %p114 = por %p112, %p113
      %s116 = sadd.s32 %s115, 1
      %p119 = scmp.eq.s32.totalorder %s18, 1
      %p120 = scmp.ne.s32.totalorder %s115, %s117
      %p121 = scmp.eq.s32.totalorder %s18, 0
      %p122 = por %p120, %p121
      %p123 = scmp.ne.s32.totalorder %s115, %s117
      %p124 = scmp.eq.s32.totalorder %s23, 1
      %p125 = por %p123, %p124
      %p126 = scmp.ne.s32.totalorder %s117, %s118
      %p127 = scmp.eq.s32.totalorder %s23, 0
      %p128 = por %p126, %p127
      %p129 = scmp.ne.s32.totalorder %s117, %s118
      %p130 = scmp.eq.s32.totalorder %s24, 1
      %p131 = por %p129, %p130
      %p133 = scmp.ne.s32.totalorder %s118, %s132
      %p134 = scmp.eq.s32.totalorder %s24, 0
      %p135 = por %p133, %p134
      %s137 = sadd.s32 %s136, 1
      %p140 = scmp.eq.s32.totalorder %s18, 1
      %p141 = scmp.ne.s32.totalorder %s136, %s138
      %p142 = scmp.eq.s32.totalorder %s18, 0
      %p143 = por %p141, %p142
      %p144 = scmp.ne.s32.totalorder %s136, %s138
      %p145 = scmp.eq.s32.totalorder %s23, 1
      %p146 = por %p144, %p145
      %p147 = scmp.ne.s32.totalorder %s138, %s139
      %p148 = scmp.eq.s32.totalorder %s23, 0
      %p149 = por %p147, %p148
      %p150 = scmp.ne.s32.totalorder %s138, %s139
      %p151 = scmp.eq.s32.totalorder %s24, 1
      %p152 = por %p150, %p151
      %p154 = scmp.ne.s32.totalorder %s139, %s153
      %p155 = scmp.eq.s32.totalorder %s24, 0
      %p156 = por %p154, %p155
      %s158 = sadd.s32 %s157, 1
      %p161 = scmp.eq.s32.totalorder %s18, 1
      %p162 = scmp.ne.s32.totalorder %s157, %s159
      %p163 = scmp.eq.s32.totalorder %s18, 0
      %p164 = por %p162, %p163
      %p165 = scmp.ne.s32.totalorder %s157, %s159
      %p166 = scmp.eq.s32.totalorder %s23, 1
      %p167 = por %p165, %p166
      %p168 = scmp.ne.s32.totalorder %s159, %s160
      %p169 = scmp.eq.s32.totalorder %s23, 0
      %p170 = por %p168, %p169
      %p171 = scmp.ne.s32.totalorder %s159, %s160
      %p172 = scmp.eq.s32.totalorder %s24, 1
      %p173 = por %p171, %p172
      %p175 = scmp.ne.s32.totalorder %s160, %s174
      %p176 = scmp.eq.s32.totalorder %s24, 0
      %p177 = por %p175, %p176
      %s179 = sadd.s32 %s178, 1
      %p182 = scmp.eq.s32.totalorder %s18, 1
      %p183 = scmp.ne.s32.totalorder %s178, %s180
      %p184 = scmp.eq.s32.totalorder %s18, 0
      %p185 = por %p183, %p184
      %p186 = scmp.ne.s32.totalorder %s178, %s180
      %p187 = scmp.eq.s32.totalorder %s23, 1
      %p188 = por %p186, %p187
      %p189 = scmp.ne.s32.totalorder %s180, %s181
      %p190 = scmp.eq.s32.totalorder %s23, 0
      %p191 = por %p189, %p190
      %p192 = scmp.ne.s32.totalorder %s180, %s181
      %p193 = scmp.eq.s32.totalorder %s24, 1
      %p194 = por %p192, %p193
      %p196 = scmp.ne.s32.totalorder %s181, %s195
      %p197 = scmp.eq.s32.totalorder %s24, 0
      %p198 = por %p196, %p197
      %s200 = sadd.s32 %s199, 1
      %p203 = scmp.eq.s32.totalorder %s18, 1
      %p204 = scmp.ne.s32.totalorder %s199, %s201
      %p205 = scmp.eq.s32.totalorder %s18, 0
      %p206 = por %p204, %p205
      %p207 = scmp.ne.s32.totalorder %s199, %s201
      %p208 = scmp.eq.s32.totalorder %s23, 1
      %p209 = por %p207, %p208
      %p210 = scmp.ne.s32.totalorder %s201, %s202
      %p211 = scmp.eq.s32.totalorder %s23, 0
      %p212 = por %p210, %p211
      %p213 = scmp.ne.s32.totalorder %s201, %s202
      %p214 = scmp.eq.s32.totalorder %s24, 1
      %p215 = por %p213, %p214
      %p217 = scmp.ne.s32.totalorder %s202, %s216
      %p218 = scmp.eq.s32.totalorder %s24, 0
      %p219 = por %p217, %p218
      %s220 = ssub.s32 %s18, %s25
      %p221 = scmp.eq.s32.totalorder %s220, 0
      %s223 = sadd.s32 %s222, 1
      %s224 = scalar_select %p221, %s222, %s223
      %p227 = pneg %p221
      %p228 = scmp.eq.s32.totalorder %s18, 1
      %p229 = por %p227, %p228
      %p230 = scmp.ne.s32.totalorder %s222, %s225
      %p231 = scmp.eq.s32.totalorder %s18, 0
      %p232 = por %p230, %p231
      %p233 = scmp.ne.s32.totalorder %s222, %s225
      %p234 = scmp.eq.s32.totalorder %s23, 1
      %p235 = por %p233, %p234
      %p236 = scmp.ne.s32.totalorder %s225, %s226
      %p237 = scmp.eq.s32.totalorder %s23, 0
      %p238 = por %p236, %p237
      %p239 = scmp.ne.s32.totalorder %s225, %s226
      %p240 = scmp.eq.s32.totalorder %s24, 1
      %p241 = por %p239, %p240
      %p243 = scmp.ne.s32.totalorder %s226, %s242
      %p244 = scmp.eq.s32.totalorder %s24, 0
      %p245 = por %p243, %p244
      %p246 = scmp.le.s32.totalorder 1, %s18
      %p247 = scmp.lt.s32.totalorder %s18, 3
      %p248 = pnand %p246, %p247
      %p249 = pneg %p248
      // Predicated region
      $region9: #{tpu_custom_call.1} parent=5 // pred_check
        _
      $region10: #{tpu_custom_call.1} parent=5 // pred_check_branch
        %251 = sbr.rel (%p248) target = $region12
      $region11: #{tpu_custom_call.1} parent=5 // pred_region
        %s252 = ssub.s32 %s18, 1
        // Predicated region
        $region13: #{tpu_custom_call.1} parent=11 // pred_check
          %p253 = pneg %p65
        $region14: #{tpu_custom_call.1} parent=11 // pred_check_branch
          %255 = sbr.rel (%p253) target = $region16
        $region15: #{tpu_custom_call.1} parent=11 // pred_region
          _
        $region16: #{tpu_custom_call.1} parent=11 // pred_fallthru
          _
        // Predicated region
        $region17: #{tpu_custom_call.1} parent=11 // pred_check
          %p256 = pneg %p86
        $region18: #{tpu_custom_call.1} parent=11 // pred_check_branch
          %258 = sbr.rel (%p256) target = $region20
        $region19: #{tpu_custom_call.1} parent=11 // pred_region
          _
        $region20: #{tpu_custom_call.1} parent=11 // pred_fallthru
          _
        // Predicated region
        $region21: #{tpu_custom_call.1} parent=11 // pred_check
          %p259 = pneg %p107
        $region22: #{tpu_custom_call.1} parent=11 // pred_check_branch
          %261 = sbr.rel (%p259) target = $region24
        $region23: #{tpu_custom_call.1} parent=11 // pred_region
          _
        $region24: #{tpu_custom_call.1} parent=11 // pred_fallthru
          _
        // Predicated region
        $region25: #{tpu_custom_call.1} parent=11 // pred_check
          %p262 = pneg %p128
        $region26: #{tpu_custom_call.1} parent=11 // pred_check_branch
          %264 = sbr.rel (%p262) target = $region28
        $region27: #{tpu_custom_call.1} parent=11 // pred_region
          _
        $region28: #{tpu_custom_call.1} parent=11 // pred_fallthru
          _
        // Predicated region
        $region29: #{tpu_custom_call.1} parent=11 // pred_check
          %p265 = pneg %p149
        $region30: #{tpu_custom_call.1} parent=11 // pred_check_branch
          %267 = sbr.rel (%p265) target = $region32
        $region31: #{tpu_custom_call.1} parent=11 // pred_region
          _
        $region32: #{tpu_custom_call.1} parent=11 // pred_fallthru
          _
        // Predicated region
        $region33: #{tpu_custom_call.1} parent=11 // pred_check
          %p268 = pneg %p170
        $region34: #{tpu_custom_call.1} parent=11 // pred_check_branch
          %270 = sbr.rel (%p268) target = $region36
        $region35: #{tpu_custom_call.1} parent=11 // pred_region
          _
        $region36: #{tpu_custom_call.1} parent=11 // pred_fallthru
          _
        // Predicated region
        $region37: #{tpu_custom_call.1} parent=11 // pred_check
          %p271 = pneg %p191
        $region38: #{tpu_custom_call.1} parent=11 // pred_check_branch
          %273 = sbr.rel (%p271) target = $region40
        $region39: #{tpu_custom_call.1} parent=11 // pred_region
          _
        $region40: #{tpu_custom_call.1} parent=11 // pred_fallthru
          _
        // Predicated region
        $region41: #{tpu_custom_call.1} parent=11 // pred_check
          %p274 = pneg %p212
        $region42: #{tpu_custom_call.1} parent=11 // pred_check_branch
          %276 = sbr.rel (%p274) target = $region44
        $region43: #{tpu_custom_call.1} parent=11 // pred_region
          _
        $region44: #{tpu_custom_call.1} parent=11 // pred_fallthru
          _
      $region12: #{tpu_custom_call.1} parent=5 // pred_fallthru
        _
      %p277 = scmp.lt.s32.totalorder %s18, 2
      // Predicated region
      $region45: #{tpu_custom_call.1} parent=5 // pred_check
        %p278 = pneg %p277
      $region46: #{tpu_custom_call.1} parent=5 // pred_check_branch
        %280 = sbr.rel (%p278) target = $region48
      $region47: #{tpu_custom_call.1} parent=5 // pred_region
        // Predicated region
        $region49: #{tpu_custom_call.1} parent=47 // pred_check
          %p281 = pneg %p38
        $region50: #{tpu_custom_call.1} parent=47 // pred_check_branch
          %283 = sbr.rel (%p281) target = $region52
        $region51: #{tpu_custom_call.1} parent=47 // pred_region
          %s284 = smul.u32 8, %s18
          %p285 = scmp.lt.s32.totalorder %s284, 15
          %s286 = scalar_select %p285, %s284, 15
          %s287 = smul.addr %s286, 8
          %s288 = smul.addr %s287, 8
          %s289 = scalar_lea.vmem %s0, %s288
          %s290 = smul.u32 8, %s18
        $region52: #{tpu_custom_call.1} parent=47 // pred_fallthru
          _
      $region48: #{tpu_custom_call.1} parent=5 // pred_fallthru
        _
      %p291 = scmp.le.s32.totalorder 1, %s18
      %p292 = scmp.lt.s32.totalorder %s18, 3
      %p293 = pnand %p291, %p292
      %p294 = pneg %p293
      // Predicated region
      $region53: #{tpu_custom_call.1} parent=5 // pred_check
        _
      $region54: #{tpu_custom_call.1} parent=5 // pred_check_branch
        %296 = sbr.rel (%p293) target = $region56
      $region55: #{tpu_custom_call.1} parent=5 // pred_region
        %s297 = ssub.s32 %s18, 1
        %s298 = smul.u32 8, %s23
        %p299 = scmp.lt.s32.totalorder %s298, 15
        %s300 = scalar_select %p299, %s298, 15
        %s301 = smul.addr %s300, 8
        %s302 = smul.addr %s301, 8
        %s303 = scalar_lea.vmem %s0, %s302
        %p304 = pneg %p44
        %p305 = pneg %p41
        %p306 = pneg %p65
        %p307 = pneg %p62
        %p308 = pneg %p86
        %p309 = pneg %p83
        %p310 = pneg %p107
        %p311 = pneg %p104
        %p312 = pneg %p128
        %p313 = pneg %p125
        %p314 = pneg %p149
        %p315 = pneg %p146
        %p316 = pneg %p170
        %p317 = pneg %p167
        %p318 = pneg %p191
        %p319 = pneg %p188
        %p320 = pneg %p212
        %p321 = pneg %p209
        %p322 = pneg %p238
        %p323 = pneg %p235
        %s324 = sand.u32 %s225, 1
        %s325 = scalar_lea.sflag [#allocation3], %s324
        %s326 = sand.u32 %s225, 1
        %s327 = smul.addr %s326, 2
        %s328 = scalar_lea.vmem [#allocation2], %s327
        %s329 = smul.u32 8, %s23
        %p330 = scmp.lt.s32.totalorder %s329, 15
        %s331 = scalar_select %p330, %s329, 15
        %s332 = smul.addr %s331, 8
        %s333 = smul.addr %s332, 8
        %s334 = scalar_lea.vmem %s0, %s333
        %s335 = smul.u32 8, %s23
        %v337 = vld [vmem:[%s334] sm:$0xff]
        %v338 = vld [vmem:[%s334 + $0x8] sm:$0xff]
        %v339 = vld [vmem:[%s334 + $0x10] sm:$0xff]
        %v340 = vld [vmem:[%s334 + $0x18] sm:$0xff]
        %v341 = vld [vmem:[%s334 + $0x20] sm:$0xff]
        %v342 = vld [vmem:[%s334 + $0x28] sm:$0xff]
        %v343 = vld [vmem:[%s334 + $0x30] sm:$0xff]
        %v344 = vld [vmem:[%s334 + $0x38] sm:$0xff]
        %v345 = vpack.c.bf16 %v338, %v337
        %v346 = vpack.c.bf16 %v340, %v339
        %v347 = vpack.c.bf16 %v342, %v341
        %v348 = vpack.c.bf16 %v344, %v343
        %v349 = vld [vmem:[%s1] sm:$0x3]
        %s350 = scalar_lea.vmem %s334, 64
        %v351 = vld [vmem:[%s350] sm:$0xff]
        %v352 = vld [vmem:[%s350 + $0x8] sm:$0xff]
        %v353 = vld [vmem:[%s350 + $0x10] sm:$0xff]
        %v354 = vld [vmem:[%s350 + $0x18] sm:$0xff]
        %v355 = vld [vmem:[%s350 + $0x20] sm:$0xff]
        %v356 = vld [vmem:[%s350 + $0x28] sm:$0xff]
        %v357 = vld [vmem:[%s350 + $0x30] sm:$0xff]
        %v358 = vld [vmem:[%s350 + $0x38] sm:$0xff]
        %v359 = vpack.c.bf16 %v352, %v351
        %v360 = vpack.c.bf16 %v354, %v353
        %v361 = vpack.c.bf16 %v356, %v355
        %v362 = vpack.c.bf16 %v358, %v357
        %s363 = scalar_lea.vmem %s1, 2
        %v364 = vld [vmem:[%s363] sm:$0x3]
        %vm365 = vcmask 23552
        %v367 = vsel %vm365, %v359, 0
        %v370 = vsel %vm365, %v360, 0
        %v373 = vsel %vm365, %v361, 0
        %v376 = vsel %vm365, %v362, 0
        %vm378 = vcmask 1040384
        %vm379 = vcmask 1041408
        %v380 = vsel %vm378, 4294967295, 65535
        %v381 = vsel %vm379, %v380, 0
        %v383 = vand.u32 %v364, %v381
        %385 = vmatpush.bf16.msra.mxu0 0
        %386 = vmatpush.bf16.msra.mxu0 0
        %387 = vmatpush.bf16.msra.mxu0 0
        %388 = vmatpush.bf16.msra.mxu0 0
        %389 = vmatpush.bf16.msra.mxu0 0
        %390 = vmatpush.bf16.msra.mxu0 0
        %391 = vmatpush.bf16.msra.mxu0 0
        %392 = vmatpush.bf16.msra.mxu0 %v383
        %393 = vmatmul.bf16.gmra.mxu0 %v367
        %v394 = vpop.f32.mrf.mxu0
        %v395 = vadd.f32 0.0, %v394
        %v396 = vpop.f32.mrf.mxu0
        %v397 = vadd.f32 0.0, %v396
        %398 = vmatmul.bf16.gmra.mxu0 %v370
        %v399 = vpop.f32.mrf.mxu0
        %v400 = vadd.f32 0.0, %v399
        %v401 = vpop.f32.mrf.mxu0
        %v402 = vadd.f32 0.0, %v401
        %403 = vmatmul.bf16.gmra.mxu0 %v373
        %v404 = vpop.f32.mrf.mxu0
        %v405 = vadd.f32 0.0, %v404
        %v406 = vpop.f32.mrf.mxu0
        %v407 = vadd.f32 0.0, %v406
        %408 = vmatmul.bf16.gmra.mxu0 %v376
        %v409 = vpop.f32.mrf.mxu0
        %v410 = vadd.f32 0.0, %v409
        %v411 = vpop.f32.mrf.mxu0
        %v412 = vadd.f32 0.0, %v411
        %413 = vdwg.mxu0
        %v415 = vsel %vm365, %v345, 0
        %v418 = vsel %vm365, %v346, 0
        %v421 = vsel %vm365, %v347, 0
        %v424 = vsel %vm365, %v348, 0
        %v427 = vand.u32 %v349, %v381
        %429 = vmatpush.bf16.msra.mxu0 0
        %430 = vmatpush.bf16.msra.mxu0 0
        %431 = vmatpush.bf16.msra.mxu0 0
        %432 = vmatpush.bf16.msra.mxu0 0
        %433 = vmatpush.bf16.msra.mxu0 0
        %434 = vmatpush.bf16.msra.mxu0 0
        %435 = vmatpush.bf16.msra.mxu0 0
        %436 = vmatpush.bf16.msra.mxu0 %v427
        %437 = vmatmul.bf16.gmra.mxu0 %v415
        %v438 = vpop.f32.mrf.mxu0
        %v439 = vadd.f32 %v395, %v438
        %v440 = vpop.f32.mrf.mxu0
        %v441 = vadd.f32 %v397, %v440
        %442 = vmatmul.bf16.gmra.mxu0 %v418
        %v443 = vpop.f32.mrf.mxu0
        %v444 = vadd.f32 %v400, %v443
        %v445 = vpop.f32.mrf.mxu0
        %v446 = vadd.f32 %v402, %v445
        %447 = vmatmul.bf16.gmra.mxu0 %v421
        %v448 = vpop.f32.mrf.mxu0
        %v449 = vadd.f32 %v405, %v448
        %v450 = vpop.f32.mrf.mxu0
        %v451 = vadd.f32 %v407, %v450
        %452 = vmatmul.bf16.gmra.mxu0 %v424
        %v453 = vpop.f32.mrf.mxu0
        %v454 = vadd.f32 %v410, %v453
        %v455 = vpop.f32.mrf.mxu0
        %v456 = vadd.f32 %v412, %v455
        %457 = vdwg.mxu0
        %s458 = scalar_lea.vmem %s334, 128
        %v459 = vld [vmem:[%s458] sm:$0xff]
        %v460 = vld [vmem:[%s458 + $0x8] sm:$0xff]
        %v461 = vld [vmem:[%s458 + $0x10] sm:$0xff]
        %v462 = vld [vmem:[%s458 + $0x18] sm:$0xff]
        %v463 = vld [vmem:[%s458 + $0x20] sm:$0xff]
        %v464 = vld [vmem:[%s458 + $0x28] sm:$0xff]
        %v465 = vld [vmem:[%s458 + $0x30] sm:$0xff]
        %v466 = vld [vmem:[%s458 + $0x38] sm:$0xff]
        %v467 = vpack.c.bf16 %v460, %v459
        %v468 = vpack.c.bf16 %v462, %v461
        %v469 = vpack.c.bf16 %v464, %v463
        %v470 = vpack.c.bf16 %v466, %v465
        %s471 = scalar_lea.vmem %s1, 4
        %v472 = vld [vmem:[%s471] sm:$0x3]
        %v474 = vsel %vm365, %v467, 0
        %v477 = vsel %vm365, %v468, 0
        %v480 = vsel %vm365, %v469, 0
        %v483 = vsel %vm365, %v470, 0
        %v486 = vand.u32 %v472, %v381
        %488 = vmatpush.bf16.msra.mxu0 0
        %489 = vmatpush.bf16.msra.mxu0 0
        %490 = vmatpush.bf16.msra.mxu0 0
        %491 = vmatpush.bf16.msra.mxu0 0
        %492 = vmatpush.bf16.msra.mxu0 0
        %493 = vmatpush.bf16.msra.mxu0 0
        %494 = vmatpush.bf16.msra.mxu0 0
        %495 = vmatpush.bf16.msra.mxu0 %v486
        %496 = vmatmul.bf16.gmra.mxu0 %v474
        %v497 = vpop.f32.mrf.mxu0
        %v498 = vadd.f32 0.0, %v497
        %v499 = vpop.f32.mrf.mxu0
        %v500 = vadd.f32 0.0, %v499
        %501 = vmatmul.bf16.gmra.mxu0 %v477
        %v502 = vpop.f32.mrf.mxu0
        %v503 = vadd.f32 0.0, %v502
        %v504 = vpop.f32.mrf.mxu0
        %v505 = vadd.f32 0.0, %v504
        %506 = vmatmul.bf16.gmra.mxu0 %v480
        %v507 = vpop.f32.mrf.mxu0
        %v508 = vadd.f32 0.0, %v507
        %v509 = vpop.f32.mrf.mxu0
        %v510 = vadd.f32 0.0, %v509
        %511 = vmatmul.bf16.gmra.mxu0 %v483
        %v512 = vpop.f32.mrf.mxu0
        %v513 = vadd.f32 0.0, %v512
        %v514 = vpop.f32.mrf.mxu0
        %v515 = vadd.f32 0.0, %v514
        %516 = vdwg.mxu0
        %v517 = vadd.f32 %v439, %v498
        %v518 = vadd.f32 %v441, %v500
        %v519 = vadd.f32 %v444, %v503
        %v520 = vadd.f32 %v446, %v505
        %v521 = vadd.f32 %v449, %v508
        %v522 = vadd.f32 %v451, %v510
        %v523 = vadd.f32 %v454, %v513
        %v524 = vadd.f32 %v456, %v515
        %s525 = scalar_lea.vmem %s334, 192
        %v526 = vld [vmem:[%s525] sm:$0xff]
        %v527 = vld [vmem:[%s525 + $0x8] sm:$0xff]
        %v528 = vld [vmem:[%s525 + $0x10] sm:$0xff]
        %v529 = vld [vmem:[%s525 + $0x18] sm:$0xff]
        %v530 = vld [vmem:[%s525 + $0x20] sm:$0xff]
        %v531 = vld [vmem:[%s525 + $0x28] sm:$0xff]
        %v532 = vld [vmem:[%s525 + $0x30] sm:$0xff]
        %v533 = vld [vmem:[%s525 + $0x38] sm:$0xff]
        %v534 = vpack.c.bf16 %v527, %v526
        %v535 = vpack.c.bf16 %v529, %v528
        %v536 = vpack.c.bf16 %v531, %v530
        %v537 = vpack.c.bf16 %v533, %v532
        %s538 = scalar_lea.vmem %s1, 6
        %v539 = vld [vmem:[%s538] sm:$0x3]
        %v541 = vsel %vm365, %v534, 0
        %v544 = vsel %vm365, %v535, 0
        %v547 = vsel %vm365, %v536, 0
        %v550 = vsel %vm365, %v537, 0
        %v553 = vand.u32 %v539, %v381
        %555 = vmatpush.bf16.msra.mxu0 0
        %556 = vmatpush.bf16.msra.mxu0 0
        %557 = vmatpush.bf16.msra.mxu0 0
        %558 = vmatpush.bf16.msra.mxu0 0
        %559 = vmatpush.bf16.msra.mxu0 0
        %560 = vmatpush.bf16.msra.mxu0 0
        %561 = vmatpush.bf16.msra.mxu0 0
        %562 = vmatpush.bf16.msra.mxu0 %v553
        %563 = vmatmul.bf16.gmra.mxu0 %v541
        %v564 = vpop.f32.mrf.mxu0
        %v565 = vadd.f32 0.0, %v564
        %v566 = vpop.f32.mrf.mxu0
        %v567 = vadd.f32 0.0, %v566
        %568 = vmatmul.bf16.gmra.mxu0 %v544
        %v569 = vpop.f32.mrf.mxu0
        %v570 = vadd.f32 0.0, %v569
        %v571 = vpop.f32.mrf.mxu0
        %v572 = vadd.f32 0.0, %v571
        %573 = vmatmul.bf16.gmra.mxu0 %v547
        %v574 = vpop.f32.mrf.mxu0
        %v575 = vadd.f32 0.0, %v574
        %v576 = vpop.f32.mrf.mxu0
        %v577 = vadd.f32 0.0, %v576
        %578 = vmatmul.bf16.gmra.mxu0 %v550
        %v579 = vpop.f32.mrf.mxu0
        %v580 = vadd.f32 0.0, %v579
        %v581 = vpop.f32.mrf.mxu0
        %v582 = vadd.f32 0.0, %v581
        %583 = vdwg.mxu0
        %v584 = vadd.f32 %v517, %v565
        %v585 = vadd.f32 %v518, %v567
        %v586 = vadd.f32 %v519, %v570
        %v587 = vadd.f32 %v520, %v572
        %v588 = vadd.f32 %v521, %v575
        %v589 = vadd.f32 %v522, %v577
        %v590 = vadd.f32 %v523, %v580
        %v591 = vadd.f32 %v524, %v582
        %s592 = scalar_lea.vmem %s334, 256
        %v593 = vld [vmem:[%s592] sm:$0xff]
        %v594 = vld [vmem:[%s592 + $0x8] sm:$0xff]
        %v595 = vld [vmem:[%s592 + $0x10] sm:$0xff]
        %v596 = vld [vmem:[%s592 + $0x18] sm:$0xff]
        %v597 = vld [vmem:[%s592 + $0x20] sm:$0xff]
        %v598 = vld [vmem:[%s592 + $0x28] sm:$0xff]
        %v599 = vld [vmem:[%s592 + $0x30] sm:$0xff]
        %v600 = vld [vmem:[%s592 + $0x38] sm:$0xff]
        %v601 = vpack.c.bf16 %v594, %v593
        %v602 = vpack.c.bf16 %v596, %v595
        %v603 = vpack.c.bf16 %v598, %v597
        %v604 = vpack.c.bf16 %v600, %v599
        %s605 = scalar_lea.vmem %s334, 320
        %v606 = vld [vmem:[%s605] sm:$0xff]
        %v607 = vld [vmem:[%s605 + $0x8] sm:$0xff]
        %v608 = vld [vmem:[%s605 + $0x10] sm:$0xff]
        %v609 = vld [vmem:[%s605 + $0x18] sm:$0xff]
        %v610 = vld [vmem:[%s605 + $0x20] sm:$0xff]
        %v611 = vld [vmem:[%s605 + $0x28] sm:$0xff]
        %v612 = vld [vmem:[%s605 + $0x30] sm:$0xff]
        %v613 = vld [vmem:[%s605 + $0x38] sm:$0xff]
        %v614 = vpack.c.bf16 %v607, %v606
        %v615 = vpack.c.bf16 %v609, %v608
        %v616 = vpack.c.bf16 %v611, %v610
        %v617 = vpack.c.bf16 %v613, %v612
        %v619 = vsel %vm365, %v614, 0
        %v622 = vsel %vm365, %v615, 0
        %v625 = vsel %vm365, %v616, 0
        %v628 = vsel %vm365, %v617, 0
        %630 = vmatpush.bf16.msra.mxu0 0
        %631 = vmatpush.bf16.msra.mxu0 0
        %632 = vmatpush.bf16.msra.mxu0 0
        %633 = vmatpush.bf16.msra.mxu0 0
        %634 = vmatpush.bf16.msra.mxu0 0
        %635 = vmatpush.bf16.msra.mxu0 0
        %636 = vmatpush.bf16.msra.mxu0 0
        %637 = vmatpush.bf16.msra.mxu0 %v383
        %638 = vmatmul.bf16.gmra.mxu0 %v619
        %v639 = vpop.f32.mrf.mxu0
        %v640 = vadd.f32 0.0, %v639
        %v641 = vpop.f32.mrf.mxu0
        %v642 = vadd.f32 0.0, %v641
        %643 = vmatmul.bf16.gmra.mxu0 %v622
        %v644 = vpop.f32.mrf.mxu0
        %v645 = vadd.f32 0.0, %v644
        %v646 = vpop.f32.mrf.mxu0
        %v647 = vadd.f32 0.0, %v646
        %648 = vmatmul.bf16.gmra.mxu0 %v625
        %v649 = vpop.f32.mrf.mxu0
        %v650 = vadd.f32 0.0, %v649
        %v651 = vpop.f32.mrf.mxu0
        %v652 = vadd.f32 0.0, %v651
        %653 = vmatmul.bf16.gmra.mxu0 %v628
        %v654 = vpop.f32.mrf.mxu0
        %v655 = vadd.f32 0.0, %v654
        %v656 = vpop.f32.mrf.mxu0
        %v657 = vadd.f32 0.0, %v656
        %658 = vdwg.mxu0
        %v660 = vsel %vm365, %v601, 0
        %v663 = vsel %vm365, %v602, 0
        %v666 = vsel %vm365, %v603, 0
        %v669 = vsel %vm365, %v604, 0
        %671 = vmatpush.bf16.msra.mxu0 0
        %672 = vmatpush.bf16.msra.mxu0 0
        %673 = vmatpush.bf16.msra.mxu0 0
        %674 = vmatpush.bf16.msra.mxu0 0
        %675 = vmatpush.bf16.msra.mxu0 0
        %676 = vmatpush.bf16.msra.mxu0 0
        %677 = vmatpush.bf16.msra.mxu0 0
        %678 = vmatpush.bf16.msra.mxu0 %v427
        %679 = vmatmul.bf16.gmra.mxu0 %v660
        %v680 = vpop.f32.mrf.mxu0
        %v681 = vadd.f32 %v640, %v680
        %v682 = vpop.f32.mrf.mxu0
        %v683 = vadd.f32 %v642, %v682
        %684 = vmatmul.bf16.gmra.mxu0 %v663
        %v685 = vpop.f32.mrf.mxu0
        %v686 = vadd.f32 %v645, %v685
        %v687 = vpop.f32.mrf.mxu0
        %v688 = vadd.f32 %v647, %v687
        %689 = vmatmul.bf16.gmra.mxu0 %v666
        %v690 = vpop.f32.mrf.mxu0
        %v691 = vadd.f32 %v650, %v690
        %v692 = vpop.f32.mrf.mxu0
        %v693 = vadd.f32 %v652, %v692
        %694 = vmatmul.bf16.gmra.mxu0 %v669
        %v695 = vpop.f32.mrf.mxu0
        %v696 = vadd.f32 %v655, %v695
        %v697 = vpop.f32.mrf.mxu0
        %v698 = vadd.f32 %v657, %v697
        %699 = vdwg.mxu0
        %s700 = scalar_lea.vmem %s334, 384
        %v701 = vld [vmem:[%s700] sm:$0xff]
        %v702 = vld [vmem:[%s700 + $0x8] sm:$0xff]
        %v703 = vld [vmem:[%s700 + $0x10] sm:$0xff]
        %v704 = vld [vmem:[%s700 + $0x18] sm:$0xff]
        %v705 = vld [vmem:[%s700 + $0x20] sm:$0xff]
        %v706 = vld [vmem:[%s700 + $0x28] sm:$0xff]
        %v707 = vld [vmem:[%s700 + $0x30] sm:$0xff]
        %v708 = vld [vmem:[%s700 + $0x38] sm:$0xff]
        %v709 = vpack.c.bf16 %v702, %v701
        %v710 = vpack.c.bf16 %v704, %v703
        %v711 = vpack.c.bf16 %v706, %v705
        %v712 = vpack.c.bf16 %v708, %v707
        %v714 = vsel %vm365, %v709, 0
        %v717 = vsel %vm365, %v710, 0
        %v720 = vsel %vm365, %v711, 0
        %v723 = vsel %vm365, %v712, 0
        %725 = vmatpush.bf16.msra.mxu0 0
        %726 = vmatpush.bf16.msra.mxu0 0
        %727 = vmatpush.bf16.msra.mxu0 0
        %728 = vmatpush.bf16.msra.mxu0 0
        %729 = vmatpush.bf16.msra.mxu0 0
        %730 = vmatpush.bf16.msra.mxu0 0
        %731 = vmatpush.bf16.msra.mxu0 0
        %732 = vmatpush.bf16.msra.mxu0 %v486
        %733 = vmatmul.bf16.gmra.mxu0 %v714
        %v734 = vpop.f32.mrf.mxu0
        %v735 = vadd.f32 0.0, %v734
        %v736 = vpop.f32.mrf.mxu0
        %v737 = vadd.f32 0.0, %v736
        %738 = vmatmul.bf16.gmra.mxu0 %v717
        %v739 = vpop.f32.mrf.mxu0
        %v740 = vadd.f32 0.0, %v739
        %v741 = vpop.f32.mrf.mxu0
        %v742 = vadd.f32 0.0, %v741
        %743 = vmatmul.bf16.gmra.mxu0 %v720
        %v744 = vpop.f32.mrf.mxu0
        %v745 = vadd.f32 0.0, %v744
        %v746 = vpop.f32.mrf.mxu0
        %v747 = vadd.f32 0.0, %v746
        %748 = vmatmul.bf16.gmra.mxu0 %v723
        %v749 = vpop.f32.mrf.mxu0
        %v750 = vadd.f32 0.0, %v749
        %v751 = vpop.f32.mrf.mxu0
        %v752 = vadd.f32 0.0, %v751
        %753 = vdwg.mxu0
        %v754 = vadd.f32 %v681, %v735
        %v755 = vadd.f32 %v683, %v737
        %v756 = vadd.f32 %v686, %v740
        %v757 = vadd.f32 %v688, %v742
        %v758 = vadd.f32 %v691, %v745
        %v759 = vadd.f32 %v693, %v747
        %v760 = vadd.f32 %v696, %v750
        %v761 = vadd.f32 %v698, %v752
        %s762 = scalar_lea.vmem %s334, 448
        %v763 = vld [vmem:[%s762] sm:$0xff]
        %v764 = vld [vmem:[%s762 + $0x8] sm:$0xff]
        %v765 = vld [vmem:[%s762 + $0x10] sm:$0xff]
        %v766 = vld [vmem:[%s762 + $0x18] sm:$0xff]
        %v767 = vld [vmem:[%s762 + $0x20] sm:$0xff]
        %v768 = vld [vmem:[%s762 + $0x28] sm:$0xff]
        %v769 = vld [vmem:[%s762 + $0x30] sm:$0xff]
        %v770 = vld [vmem:[%s762 + $0x38] sm:$0xff]
        %v771 = vpack.c.bf16 %v764, %v763
        %v772 = vpack.c.bf16 %v766, %v765
        %v773 = vpack.c.bf16 %v768, %v767
        %v774 = vpack.c.bf16 %v770, %v769
        %v776 = vsel %vm365, %v771, 0
        %v779 = vsel %vm365, %v772, 0
        %v782 = vsel %vm365, %v773, 0
        %v785 = vsel %vm365, %v774, 0
        %787 = vmatpush.bf16.msra.mxu0 0
        %788 = vmatpush.bf16.msra.mxu0 0
        %789 = vmatpush.bf16.msra.mxu0 0
        %790 = vmatpush.bf16.msra.mxu0 0
        %791 = vmatpush.bf16.msra.mxu0 0
        %792 = vmatpush.bf16.msra.mxu0 0
        %793 = vmatpush.bf16.msra.mxu0 0
        %794 = vmatpush.bf16.msra.mxu0 %v553
        %795 = vmatmul.bf16.gmra.mxu0 %v776
        %v796 = vpop.f32.mrf.mxu0
        %v797 = vadd.f32 0.0, %v796
        %v798 = vpop.f32.mrf.mxu0
        %v799 = vadd.f32 0.0, %v798
        %800 = vmatmul.bf16.gmra.mxu0 %v779
        %v801 = vpop.f32.mrf.mxu0
        %v802 = vadd.f32 0.0, %v801
        %v803 = vpop.f32.mrf.mxu0
        %v804 = vadd.f32 0.0, %v803
        %805 = vmatmul.bf16.gmra.mxu0 %v782
        %v806 = vpop.f32.mrf.mxu0
        %v807 = vadd.f32 0.0, %v806
        %v808 = vpop.f32.mrf.mxu0
        %v809 = vadd.f32 0.0, %v808
        %810 = vmatmul.bf16.gmra.mxu0 %v785
        %v811 = vpop.f32.mrf.mxu0
        %v812 = vadd.f32 0.0, %v811
        %v813 = vpop.f32.mrf.mxu0
        %v814 = vadd.f32 0.0, %v813
        %815 = vdwg.mxu0
        %v816 = vadd.f32 %v754, %v797
        %v817 = vadd.f32 %v755, %v799
        %v818 = vadd.f32 %v756, %v802
        %v819 = vadd.f32 %v757, %v804
        %v820 = vadd.f32 %v758, %v807
        %v821 = vadd.f32 %v759, %v809
        %v822 = vadd.f32 %v760, %v812
        %v823 = vadd.f32 %v761, %v814
        %v824 = vld [vmem:[%s2] sm:$0x1]
        %v826 = vperm.slane %v824, 0
        %v828 = vadd.f32 %v584, %v826
        %v829 = vadd.f32 %v585, %v826
        %v830 = vadd.f32 %v586, %v826
        %v831 = vadd.f32 %v587, %v826
        %v832 = vadd.f32 %v588, %v826
        %v833 = vadd.f32 %v589, %v826
        %v834 = vadd.f32 %v590, %v826
        %v835 = vadd.f32 %v591, %v826
        %v836 = vadd.f32 %v816, %v826
        %v837 = vadd.f32 %v817, %v826
        %v838 = vadd.f32 %v818, %v826
        %v839 = vadd.f32 %v819, %v826
        %v840 = vadd.f32 %v820, %v826
        %v841 = vadd.f32 %v821, %v826
        %v842 = vadd.f32 %v822, %v826
        %v843 = vadd.f32 %v823, %v826
        %v844 = vmax.f32 %v828, 0.0
        %v845 = vmax.f32 %v829, 0.0
        %v846 = vmax.f32 %v830, 0.0
        %v847 = vmax.f32 %v831, 0.0
        %v848 = vmax.f32 %v832, 0.0
        %v849 = vmax.f32 %v833, 0.0
        %v850 = vmax.f32 %v834, 0.0
        %v851 = vmax.f32 %v835, 0.0
        %v852 = vmax.f32 %v836, 0.0
        %v853 = vmax.f32 %v837, 0.0
        %v854 = vmax.f32 %v838, 0.0
        %v855 = vmax.f32 %v839, 0.0
        %v856 = vmax.f32 %v840, 0.0
        %v857 = vmax.f32 %v841, 0.0
        %v858 = vmax.f32 %v842, 0.0
        %v859 = vmax.f32 %v843, 0.0
        %v860 = vpack.c.bf16 %v845, %v844
        %v861 = vpack.c.bf16 %v847, %v846
        %v862 = vpack.c.bf16 %v849, %v848
        %v863 = vpack.c.bf16 %v851, %v850
        %v864 = vpack.c.bf16 %v853, %v852
        %v865 = vpack.c.bf16 %v855, %v854
        %v866 = vpack.c.bf16 %v857, %v856
        %v867 = vpack.c.bf16 %v859, %v858
        %v868 = vld [vmem:[%s3] sm:$0xf]
        %v869 = vld [vmem:[%s3 + $0x4] sm:$0xf]
        %v870 = vld [vmem:[%s3 + $0x8] sm:$0xf]
        %v871 = vld [vmem:[%s3 + $0xc] sm:$0xf]
        %v872 = vld [vmem:[%s3 + $0x10] sm:$0xf]
        %v873 = vld [vmem:[%s3 + $0x14] sm:$0xf]
        %v874 = vld [vmem:[%s3 + $0x18] sm:$0xf]
        %v875 = vld [vmem:[%s3 + $0x1c] sm:$0xf]
        %v876 = vld [vmem:[%s6] sm:$0x1]
        %v878 = vperm.slane %v876, 0
        %v888 = vunpack.c.l.b16 %v868
        %v889 = vunpack.c.l.b16 %v869
        %v890 = vunpack.c.l.b16 %v870
        %v891 = vunpack.c.l.b16 %v871
        %v892 = vunpack.c.l.b16 %v872
        %v893 = vunpack.c.l.b16 %v873
        %v894 = vunpack.c.l.b16 %v874
        %v895 = vunpack.c.l.b16 %v875
        %v896 = vpack.c.b16 %v889, %v888
        %v897 = vpack.c.b16 %v891, %v890
        %v898 = vpack.c.b16 %v893, %v892
        %v899 = vpack.c.b16 %v895, %v894
        %vm904 = vcmask 523264
        %v906 = vsel %vm904, %v860, 0
        %v909 = vsel %vm904, %v861, 0
        %v912 = vsel %vm904, %v862, 0
        %v915 = vsel %vm904, %v863, 0
        %v918 = vsel %vm904, %v864, 0
        %v921 = vsel %vm904, %v865, 0
        %v924 = vsel %vm904, %v866, 0
        %v927 = vsel %vm904, %v867, 0
        %929 = vmatpush.bf16.msra.mxu0 0
        %930 = vmatpush.bf16.msra.mxu0 0
        %931 = vmatpush.bf16.msra.mxu0 0
        %932 = vmatpush.bf16.msra.mxu0 0
        %933 = vmatpush.bf16.msra.mxu0 %v899
        %934 = vmatpush.bf16.msra.mxu0 %v898
        %935 = vmatpush.bf16.msra.mxu0 %v897
        %936 = vmatpush.bf16.msra.mxu0 %v896
        %937 = vmatmul.bf16.gmra.mxu0 %v906
        %v938 = vpop.f32.mrf.mxu0
        %v939 = vadd.f32 %v878, %v938
        %v940 = vpop.f32.mrf.mxu0
        %v941 = vadd.f32 %v878, %v940
        %942 = vmatmul.bf16.gmra.mxu0 %v909
        %v943 = vpop.f32.mrf.mxu0
        %v944 = vadd.f32 %v878, %v943
        %v945 = vpop.f32.mrf.mxu0
        %v946 = vadd.f32 %v878, %v945
        %947 = vmatmul.bf16.gmra.mxu0 %v912
        %v948 = vpop.f32.mrf.mxu0
        %v949 = vadd.f32 %v878, %v948
        %v950 = vpop.f32.mrf.mxu0
        %v951 = vadd.f32 %v878, %v950
        %952 = vmatmul.bf16.gmra.mxu0 %v915
        %v953 = vpop.f32.mrf.mxu0
        %v954 = vadd.f32 %v878, %v953
        %v955 = vpop.f32.mrf.mxu0
        %v956 = vadd.f32 %v878, %v955
        %957 = vmatmul.bf16.gmra.mxu0 %v918
        %v958 = vpop.f32.mrf.mxu0
        %v959 = vadd.f32 %v878, %v958
        %v960 = vpop.f32.mrf.mxu0
        %v961 = vadd.f32 %v878, %v960
        %962 = vmatmul.bf16.gmra.mxu0 %v921
        %v963 = vpop.f32.mrf.mxu0
        %v964 = vadd.f32 %v878, %v963
        %v965 = vpop.f32.mrf.mxu0
        %v966 = vadd.f32 %v878, %v965
        %967 = vmatmul.bf16.gmra.mxu0 %v924
        %v968 = vpop.f32.mrf.mxu0
        %v969 = vadd.f32 %v878, %v968
        %v970 = vpop.f32.mrf.mxu0
        %v971 = vadd.f32 %v878, %v970
        %972 = vmatmul.bf16.gmra.mxu0 %v927
        %v973 = vpop.f32.mrf.mxu0
        %v974 = vadd.f32 %v878, %v973
        %v975 = vpop.f32.mrf.mxu0
        %v976 = vadd.f32 %v878, %v975
        %977 = vdwg.mxu0
        %v978 = vmax.f32 %v939, 0.0
        %v979 = vmax.f32 %v941, 0.0
        %v980 = vmax.f32 %v944, 0.0
        %v981 = vmax.f32 %v946, 0.0
        %v982 = vmax.f32 %v949, 0.0
        %v983 = vmax.f32 %v951, 0.0
        %v984 = vmax.f32 %v954, 0.0
        %v985 = vmax.f32 %v956, 0.0
        %v986 = vmax.f32 %v959, 0.0
        %v987 = vmax.f32 %v961, 0.0
        %v988 = vmax.f32 %v964, 0.0
        %v989 = vmax.f32 %v966, 0.0
        %v990 = vmax.f32 %v969, 0.0
        %v991 = vmax.f32 %v971, 0.0
        %v992 = vmax.f32 %v974, 0.0
        %v993 = vmax.f32 %v976, 0.0
        %v994 = vpack.c.bf16 %v979, %v978
        %v995 = vpack.c.bf16 %v981, %v980
        %v996 = vpack.c.bf16 %v983, %v982
        %v997 = vpack.c.bf16 %v985, %v984
        %v998 = vpack.c.bf16 %v987, %v986
        %v999 = vpack.c.bf16 %v989, %v988
        %v1000 = vpack.c.bf16 %v991, %v990
        %v1001 = vpack.c.bf16 %v993, %v992
        %v1002 = vld [vmem:[%s4] sm:$0xf]
        %v1003 = vld [vmem:[%s4 + $0x4] sm:$0xf]
        %v1004 = vld [vmem:[%s4 + $0x8] sm:$0xf]
        %v1005 = vld [vmem:[%s4 + $0xc] sm:$0xf]
        %s1006 = scalar_lea.vmem %s6, 1
        %v1007 = vld [vmem:[%s1006] sm:$0x1]
        %v1009 = vperm.slane %v1007, 0
        %v1015 = vunpack.c.l.b16 %v1002
        %v1016 = vunpack.c.l.b16 %v1003
        %v1017 = vunpack.c.l.b16 %v1004
        %v1018 = vunpack.c.l.b16 %v1005
        %v1019 = vpack.c.b16 %v1016, %v1015
        %v1020 = vpack.c.b16 %v1018, %v1017
        %vm1023 = vcmask 261120
        %v1025 = vsel %vm1023, %v994, 0
        %v1028 = vsel %vm1023, %v995, 0
        %v1031 = vsel %vm1023, %v996, 0
        %v1034 = vsel %vm1023, %v997, 0
        %v1037 = vsel %vm1023, %v998, 0
        %v1040 = vsel %vm1023, %v999, 0
        %v1043 = vsel %vm1023, %v1000, 0
        %v1046 = vsel %vm1023, %v1001, 0
        %1048 = vmatpush.bf16.msra.mxu0 0
        %1049 = vmatpush.bf16.msra.mxu0 0
        %1050 = vmatpush.bf16.msra.mxu0 0
        %1051 = vmatpush.bf16.msra.mxu0 0
        %1052 = vmatpush.bf16.msra.mxu0 0
        %1053 = vmatpush.bf16.msra.mxu0 0
        %1054 = vmatpush.bf16.msra.mxu0 %v1020
        %1055 = vmatpush.bf16.msra.mxu0 %v1019
        %1056 = vmatmul.bf16.gmra.mxu0 %v1025
        %v1057 = vpop.f32.mrf.mxu0
        %v1058 = vadd.f32 %v1009, %v1057
        %v1059 = vpop.f32.mrf.mxu0
        %v1060 = vadd.f32 %v1009, %v1059
        %1061 = vmatmul.bf16.gmra.mxu0 %v1028
        %v1062 = vpop.f32.mrf.mxu0
        %v1063 = vadd.f32 %v1009, %v1062
        %v1064 = vpop.f32.mrf.mxu0
        %v1065 = vadd.f32 %v1009, %v1064
        %1066 = vmatmul.bf16.gmra.mxu0 %v1031
        %v1067 = vpop.f32.mrf.mxu0
        %v1068 = vadd.f32 %v1009, %v1067
        %v1069 = vpop.f32.mrf.mxu0
        %v1070 = vadd.f32 %v1009, %v1069
        %1071 = vmatmul.bf16.gmra.mxu0 %v1034
        %v1072 = vpop.f32.mrf.mxu0
        %v1073 = vadd.f32 %v1009, %v1072
        %v1074 = vpop.f32.mrf.mxu0
        %v1075 = vadd.f32 %v1009, %v1074
        %1076 = vmatmul.bf16.gmra.mxu0 %v1037
        %v1077 = vpop.f32.mrf.mxu0
        %v1078 = vadd.f32 %v1009, %v1077
        %v1079 = vpop.f32.mrf.mxu0
        %v1080 = vadd.f32 %v1009, %v1079
        %1081 = vmatmul.bf16.gmra.mxu0 %v1040
        %v1082 = vpop.f32.mrf.mxu0
        %v1083 = vadd.f32 %v1009, %v1082
        %v1084 = vpop.f32.mrf.mxu0
        %v1085 = vadd.f32 %v1009, %v1084
        %1086 = vmatmul.bf16.gmra.mxu0 %v1043
        %v1087 = vpop.f32.mrf.mxu0
        %v1088 = vadd.f32 %v1009, %v1087
        %v1089 = vpop.f32.mrf.mxu0
        %v1090 = vadd.f32 %v1009, %v1089
        %1091 = vmatmul.bf16.gmra.mxu0 %v1046
        %v1092 = vpop.f32.mrf.mxu0
        %v1093 = vadd.f32 %v1009, %v1092
        %v1094 = vpop.f32.mrf.mxu0
        %v1095 = vadd.f32 %v1009, %v1094
        %1096 = vdwg.mxu0
        %v1097 = vpack.c.bf16 %v829, %v828
        %v1098 = vpack.c.bf16 %v831, %v830
        %v1099 = vpack.c.bf16 %v833, %v832
        %v1100 = vpack.c.bf16 %v835, %v834
        %v1101 = vpack.c.bf16 %v837, %v836
        %v1102 = vpack.c.bf16 %v839, %v838
        %v1103 = vpack.c.bf16 %v841, %v840
        %v1104 = vpack.c.bf16 %v843, %v842
        %v1105 = vld [vmem:[%s5] sm:$0xf]
        %v1106 = vld [vmem:[%s5 + $0x4] sm:$0xf]
        %v1107 = vld [vmem:[%s5 + $0x8] sm:$0xf]
        %v1108 = vld [vmem:[%s5 + $0xc] sm:$0xf]
        %v1109 = vld [vmem:[%s5 + $0x10] sm:$0xf]
        %v1110 = vld [vmem:[%s5 + $0x14] sm:$0xf]
        %v1111 = vld [vmem:[%s5 + $0x18] sm:$0xf]
        %v1112 = vld [vmem:[%s5 + $0x1c] sm:$0xf]
        %v1121 = vunpack.c.l.b16 %v1105
        %v1122 = vunpack.c.l.b16 %v1106
        %v1123 = vunpack.c.l.b16 %v1107
        %v1124 = vunpack.c.l.b16 %v1108
        %v1125 = vunpack.c.l.b16 %v1109
        %v1126 = vunpack.c.l.b16 %v1110
        %v1127 = vunpack.c.l.b16 %v1111
        %v1128 = vunpack.c.l.b16 %v1112
        %v1129 = vpack.c.b16 %v1122, %v1121
        %v1130 = vpack.c.b16 %v1124, %v1123
        %v1131 = vpack.c.b16 %v1126, %v1125
        %v1132 = vpack.c.b16 %v1128, %v1127
        %v1138 = vsel %vm904, %v1097, 0
        %v1141 = vsel %vm904, %v1098, 0
        %v1144 = vsel %vm904, %v1099, 0
        %v1147 = vsel %vm904, %v1100, 0
        %v1150 = vsel %vm904, %v1101, 0
        %v1153 = vsel %vm904, %v1102, 0
        %v1156 = vsel %vm904, %v1103, 0
        %v1159 = vsel %vm904, %v1104, 0
        %1161 = vmatpush.bf16.msra.mxu0 0
        %1162 = vmatpush.bf16.msra.mxu0 0
        %1163 = vmatpush.bf16.msra.mxu0 0
        %1164 = vmatpush.bf16.msra.mxu0 0
        %1165 = vmatpush.bf16.msra.mxu0 %v1132
        %1166 = vmatpush.bf16.msra.mxu0 %v1131
        %1167 = vmatpush.bf16.msra.mxu0 %v1130
        %1168 = vmatpush.bf16.msra.mxu0 %v1129
        %1169 = vmatmul.bf16.gmra.mxu0 %v1138
        %v1170 = vpop.f32.mrf.mxu0
        %v1171 = vadd.f32 %v1058, %v1170
        %v1172 = vpop.f32.mrf.mxu0
        %v1173 = vadd.f32 %v1060, %v1172
        %1174 = vmatmul.bf16.gmra.mxu0 %v1141
        %v1175 = vpop.f32.mrf.mxu0
        %v1176 = vadd.f32 %v1063, %v1175
        %v1177 = vpop.f32.mrf.mxu0
        %v1178 = vadd.f32 %v1065, %v1177
        %1179 = vmatmul.bf16.gmra.mxu0 %v1144
        %v1180 = vpop.f32.mrf.mxu0
        %v1181 = vadd.f32 %v1068, %v1180
        %v1182 = vpop.f32.mrf.mxu0
        %v1183 = vadd.f32 %v1070, %v1182
        %1184 = vmatmul.bf16.gmra.mxu0 %v1147
        %v1185 = vpop.f32.mrf.mxu0
        %v1186 = vadd.f32 %v1073, %v1185
        %v1187 = vpop.f32.mrf.mxu0
        %v1188 = vadd.f32 %v1075, %v1187
        %1189 = vmatmul.bf16.gmra.mxu0 %v1150
        %v1190 = vpop.f32.mrf.mxu0
        %v1191 = vadd.f32 %v1078, %v1190
        %v1192 = vpop.f32.mrf.mxu0
        %v1193 = vadd.f32 %v1080, %v1192
        %1194 = vmatmul.bf16.gmra.mxu0 %v1153
        %v1195 = vpop.f32.mrf.mxu0
        %v1196 = vadd.f32 %v1083, %v1195
        %v1197 = vpop.f32.mrf.mxu0
        %v1198 = vadd.f32 %v1085, %v1197
        %1199 = vmatmul.bf16.gmra.mxu0 %v1156
        %v1200 = vpop.f32.mrf.mxu0
        %v1201 = vadd.f32 %v1088, %v1200
        %v1202 = vpop.f32.mrf.mxu0
        %v1203 = vadd.f32 %v1090, %v1202
        %1204 = vmatmul.bf16.gmra.mxu0 %v1159
        %v1205 = vpop.f32.mrf.mxu0
        %v1206 = vadd.f32 %v1093, %v1205
        %v1207 = vpop.f32.mrf.mxu0
        %v1208 = vadd.f32 %v1095, %v1207
        %1209 = vdwg.mxu0
        %v1210 = vsel %vm1023, %v1171, -inf
        %v1211 = vsel %vm1023, %v1173, -inf
        %v1212 = vsel %vm1023, %v1176, -inf
        %v1213 = vsel %vm1023, %v1178, -inf
        %v1214 = vsel %vm1023, %v1181, -inf
        %v1215 = vmax.f32 %v1210, %v1214
        %v1216 = vsel %vm1023, %v1183, -inf
        %v1217 = vmax.f32 %v1211, %v1216
        %v1218 = vsel %vm1023, %v1186, -inf
        %v1219 = vmax.f32 %v1212, %v1218
        %v1220 = vsel %vm1023, %v1188, -inf
        %v1221 = vmax.f32 %v1213, %v1220
        %v1222 = vmax.f32 %v1215, %v1217
        %v1223 = vmax.f32 %v1219, %v1221
        %v1224 = vmax.f32 %v1222, %v1223
        %v1225 = vrot.slane %v1224, 4
        %v1226 = vmax.f32 %v1224, %v1225
        %v1227 = vrot.slane %v1226, 2
        %v1228 = vmax.f32 %v1226, %v1227
        %v1229 = vrot.slane %v1228, 1
        %v1230 = vmax.f32 %v1228, %v1229
        %v1231 = vsel %vm1023, %v1191, -inf
        %v1232 = vsel %vm1023, %v1193, -inf
        %v1233 = vsel %vm1023, %v1196, -inf
        %v1234 = vsel %vm1023, %v1198, -inf
        %v1235 = vsel %vm1023, %v1201, -inf
        %v1236 = vmax.f32 %v1231, %v1235
        %v1237 = vsel %vm1023, %v1203, -inf
        %v1238 = vmax.f32 %v1232, %v1237
        %v1239 = vsel %vm1023, %v1206, -inf
        %v1240 = vmax.f32 %v1233, %v1239
        %v1241 = vsel %vm1023, %v1208, -inf
        %v1242 = vmax.f32 %v1234, %v1241
        %v1243 = vmax.f32 %v1236, %v1238
        %v1244 = vmax.f32 %v1240, %v1242
        %v1245 = vmax.f32 %v1243, %v1244
        %v1246 = vrot.slane %v1245, 4
        %v1247 = vmax.f32 %v1245, %v1246
        %v1248 = vrot.slane %v1247, 2
        %v1249 = vmax.f32 %v1247, %v1248
        %v1250 = vrot.slane %v1249, 1
        %v1251 = vmax.f32 %v1249, %v1250
        %v1252 = vsel %vm378, %v1230, %v1251
        %s1253 = scalar_lea.vmem %s3, 32
        %v1254 = vld [vmem:[%s1253] sm:$0xf]
        %v1255 = vld [vmem:[%s1253 + $0x4] sm:$0xf]
        %v1256 = vld [vmem:[%s1253 + $0x8] sm:$0xf]
        %v1257 = vld [vmem:[%s1253 + $0xc] sm:$0xf]
        %v1258 = vld [vmem:[%s1253 + $0x10] sm:$0xf]
        %v1259 = vld [vmem:[%s1253 + $0x14] sm:$0xf]
        %v1260 = vld [vmem:[%s1253 + $0x18] sm:$0xf]
        %v1261 = vld [vmem:[%s1253 + $0x1c] sm:$0xf]
        %s1262 = scalar_lea.vmem %s5, 32
        %v1263 = vld [vmem:[%s1262] sm:$0xf]
        %v1264 = vld [vmem:[%s1262 + $0x4] sm:$0xf]
        %v1265 = vld [vmem:[%s1262 + $0x8] sm:$0xf]
        %v1266 = vld [vmem:[%s1262 + $0xc] sm:$0xf]
        %v1267 = vld [vmem:[%s1262 + $0x10] sm:$0xf]
        %v1268 = vld [vmem:[%s1262 + $0x14] sm:$0xf]
        %v1269 = vld [vmem:[%s1262 + $0x18] sm:$0xf]
        %v1270 = vld [vmem:[%s1262 + $0x1c] sm:$0xf]
        %v1271 = vmax.f32 %v1171, 0.0
        %v1272 = vmax.f32 %v1173, 0.0
        %v1273 = vmax.f32 %v1176, 0.0
        %v1274 = vmax.f32 %v1178, 0.0
        %v1275 = vmax.f32 %v1181, 0.0
        %v1276 = vmax.f32 %v1183, 0.0
        %v1277 = vmax.f32 %v1186, 0.0
        %v1278 = vmax.f32 %v1188, 0.0
        %v1279 = vmax.f32 %v1191, 0.0
        %v1280 = vmax.f32 %v1193, 0.0
        %v1281 = vmax.f32 %v1196, 0.0
        %v1282 = vmax.f32 %v1198, 0.0
        %v1283 = vmax.f32 %v1201, 0.0
        %v1284 = vmax.f32 %v1203, 0.0
        %v1285 = vmax.f32 %v1206, 0.0
        %v1286 = vmax.f32 %v1208, 0.0
        %v1287 = vpack.c.bf16 %v1272, %v1271
        %v1288 = vpack.c.bf16 %v1274, %v1273
        %v1289 = vpack.c.bf16 %v1276, %v1275
        %v1290 = vpack.c.bf16 %v1278, %v1277
        %v1291 = vpack.c.bf16 %v1280, %v1279
        %v1292 = vpack.c.bf16 %v1282, %v1281
        %v1293 = vpack.c.bf16 %v1284, %v1283
        %v1294 = vpack.c.bf16 %v1286, %v1285
        %v1295 = vmax.f32 %v1252, 0.0
        %v1296 = vpack.c.bf16 %v1295, %v1295
        %v1301 = vunpack.c.l.b16 %v1258
        %v1302 = vunpack.c.l.b16 %v1259
        %v1303 = vunpack.c.l.b16 %v1260
        %v1304 = vunpack.c.l.b16 %v1261
        %v1305 = vpack.c.b16 %v1302, %v1301
        %v1306 = vpack.c.b16 %v1304, %v1303
        %v1310 = vsel %vm1023, %v1296, 0
        %1312 = vmatpush.bf16.msra.mxu0 0
        %1313 = vmatpush.bf16.msra.mxu0 0
        %1314 = vmatpush.bf16.msra.mxu0 0
        %1315 = vmatpush.bf16.msra.mxu0 0
        %1316 = vmatpush.bf16.msra.mxu0 0
        %1317 = vmatpush.bf16.msra.mxu0 0
        %1318 = vmatpush.bf16.msra.mxu0 %v1306
        %1319 = vmatpush.bf16.msra.mxu0 %v1305
        %1320 = vmatmul.bf16.gmra.mxu0 %v1310
        %v1321 = vpop.f32.mrf.mxu0
        %v1322 = vadd.f32 0.0, %v1321
        %v1323 = vpop.f32.mrf.mxu0
        %1324 = vdwg.mxu0
        %v1325 = vperm.slane %v1322, 0
        %v1326 = vperm.slane %v1322, 1
        %v1331 = vunpack.c.l.b16 %v1254
        %v1332 = vunpack.c.l.b16 %v1255
        %v1333 = vunpack.c.l.b16 %v1256
        %v1334 = vunpack.c.l.b16 %v1257
        %v1335 = vpack.c.b16 %v1332, %v1331
        %v1336 = vpack.c.b16 %v1334, %v1333
        %v1340 = vsel %vm1023, %v1287, 0
        %v1343 = vsel %vm1023, %v1288, 0
        %v1346 = vsel %vm1023, %v1289, 0
        %v1349 = vsel %vm1023, %v1290, 0
        %v1352 = vsel %vm1023, %v1291, 0
        %v1355 = vsel %vm1023, %v1292, 0
        %v1358 = vsel %vm1023, %v1293, 0
        %v1361 = vsel %vm1023, %v1294, 0
        %1363 = vmatpush.bf16.msra.mxu0 0
        %1364 = vmatpush.bf16.msra.mxu0 0
        %1365 = vmatpush.bf16.msra.mxu0 0
        %1366 = vmatpush.bf16.msra.mxu0 0
        %1367 = vmatpush.bf16.msra.mxu0 0
        %1368 = vmatpush.bf16.msra.mxu0 0
        %1369 = vmatpush.bf16.msra.mxu0 %v1336
        %1370 = vmatpush.bf16.msra.mxu0 %v1335
        %1371 = vmatmul.bf16.gmra.mxu0 %v1340
        %v1372 = vpop.f32.mrf.mxu0
        %v1373 = vadd.f32 %v1325, %v1372
        %v1374 = vpop.f32.mrf.mxu0
        %v1375 = vadd.f32 %v1325, %v1374
        %1376 = vmatmul.bf16.gmra.mxu0 %v1343
        %v1377 = vpop.f32.mrf.mxu0
        %v1378 = vadd.f32 %v1325, %v1377
        %v1379 = vpop.f32.mrf.mxu0
        %v1380 = vadd.f32 %v1325, %v1379
        %1381 = vmatmul.bf16.gmra.mxu0 %v1346
        %v1382 = vpop.f32.mrf.mxu0
        %v1383 = vadd.f32 %v1325, %v1382
        %v1384 = vpop.f32.mrf.mxu0
        %v1385 = vadd.f32 %v1325, %v1384
        %1386 = vmatmul.bf16.gmra.mxu0 %v1349
        %v1387 = vpop.f32.mrf.mxu0
        %v1388 = vadd.f32 %v1325, %v1387
        %v1389 = vpop.f32.mrf.mxu0
        %v1390 = vadd.f32 %v1325, %v1389
        %1391 = vmatmul.bf16.gmra.mxu0 %v1352
        %v1392 = vpop.f32.mrf.mxu0
        %v1393 = vadd.f32 %v1326, %v1392
        %v1394 = vpop.f32.mrf.mxu0
        %v1395 = vadd.f32 %v1326, %v1394
        %1396 = vmatmul.bf16.gmra.mxu0 %v1355
        %v1397 = vpop.f32.mrf.mxu0
        %v1398 = vadd.f32 %v1326, %v1397
        %v1399 = vpop.f32.mrf.mxu0
        %v1400 = vadd.f32 %v1326, %v1399
        %1401 = vmatmul.bf16.gmra.mxu0 %v1358
        %v1402 = vpop.f32.mrf.mxu0
        %v1403 = vadd.f32 %v1326, %v1402
        %v1404 = vpop.f32.mrf.mxu0
        %v1405 = vadd.f32 %v1326, %v1404
        %1406 = vmatmul.bf16.gmra.mxu0 %v1361
        %v1407 = vpop.f32.mrf.mxu0
        %v1408 = vadd.f32 %v1326, %v1407
        %v1409 = vpop.f32.mrf.mxu0
        %v1410 = vadd.f32 %v1326, %v1409
        %1411 = vdwg.mxu0
        %s1412 = scalar_lea.vmem %s6, 2
        %v1413 = vld [vmem:[%s1412] sm:$0x1]
        %v1415 = vperm.slane %v1413, 0
        %v1417 = vadd.f32 %v1373, %v1415
        %v1418 = vadd.f32 %v1375, %v1415
        %v1419 = vadd.f32 %v1378, %v1415
        %v1420 = vadd.f32 %v1380, %v1415
        %v1421 = vadd.f32 %v1383, %v1415
        %v1422 = vadd.f32 %v1385, %v1415
        %v1423 = vadd.f32 %v1388, %v1415
        %v1424 = vadd.f32 %v1390, %v1415
        %v1425 = vadd.f32 %v1393, %v1415
        %v1426 = vadd.f32 %v1395, %v1415
        %v1427 = vadd.f32 %v1398, %v1415
        %v1428 = vadd.f32 %v1400, %v1415
        %v1429 = vadd.f32 %v1403, %v1415
        %v1430 = vadd.f32 %v1405, %v1415
        %v1431 = vadd.f32 %v1408, %v1415
        %v1432 = vadd.f32 %v1410, %v1415
        %v1433 = vmax.f32 %v1417, 0.0
        %v1434 = vmax.f32 %v1418, 0.0
        %v1435 = vmax.f32 %v1419, 0.0
        %v1436 = vmax.f32 %v1420, 0.0
        %v1437 = vmax.f32 %v1421, 0.0
        %v1438 = vmax.f32 %v1422, 0.0
        %v1439 = vmax.f32 %v1423, 0.0
        %v1440 = vmax.f32 %v1424, 0.0
        %v1441 = vmax.f32 %v1425, 0.0
        %v1442 = vmax.f32 %v1426, 0.0
        %v1443 = vmax.f32 %v1427, 0.0
        %v1444 = vmax.f32 %v1428, 0.0
        %v1445 = vmax.f32 %v1429, 0.0
        %v1446 = vmax.f32 %v1430, 0.0
        %v1447 = vmax.f32 %v1431, 0.0
        %v1448 = vmax.f32 %v1432, 0.0
        %v1449 = vpack.c.bf16 %v1434, %v1433
        %v1450 = vpack.c.bf16 %v1436, %v1435
        %v1451 = vpack.c.bf16 %v1438, %v1437
        %v1452 = vpack.c.bf16 %v1440, %v1439
        %v1453 = vpack.c.bf16 %v1442, %v1441
        %v1454 = vpack.c.bf16 %v1444, %v1443
        %v1455 = vpack.c.bf16 %v1446, %v1445
        %v1456 = vpack.c.bf16 %v1448, %v1447
        %s1457 = scalar_lea.vmem %s4, 16
        %v1458 = vld [vmem:[%s1457] sm:$0xf]
        %v1459 = vld [vmem:[%s1457 + $0x4] sm:$0xf]
        %v1460 = vld [vmem:[%s1457 + $0x8] sm:$0xf]
        %v1461 = vld [vmem:[%s1457 + $0xc] sm:$0xf]
        %s1462 = scalar_lea.vmem %s6, 3
        %v1463 = vld [vmem:[%s1462] sm:$0x1]
        %v1465 = vperm.slane %v1463, 0
        %v1471 = vunpack.c.l.b16 %v1458
        %v1472 = vunpack.c.l.b16 %v1459
        %v1473 = vunpack.c.l.b16 %v1460
        %v1474 = vunpack.c.l.b16 %v1461
        %v1475 = vpack.c.b16 %v1472, %v1471
        %v1476 = vpack.c.b16 %v1474, %v1473
        %v1480 = vsel %vm1023, %v1449, 0
        %v1483 = vsel %vm1023, %v1450, 0
        %v1486 = vsel %vm1023, %v1451, 0
        %v1489 = vsel %vm1023, %v1452, 0
        %v1492 = vsel %vm1023, %v1453, 0
        %v1495 = vsel %vm1023, %v1454, 0
        %v1498 = vsel %vm1023, %v1455, 0
        %v1501 = vsel %vm1023, %v1456, 0
        %1503 = vmatpush.bf16.msra.mxu0 0
        %1504 = vmatpush.bf16.msra.mxu0 0
        %1505 = vmatpush.bf16.msra.mxu0 0
        %1506 = vmatpush.bf16.msra.mxu0 0
        %1507 = vmatpush.bf16.msra.mxu0 0
        %1508 = vmatpush.bf16.msra.mxu0 0
        %1509 = vmatpush.bf16.msra.mxu0 %v1476
        %1510 = vmatpush.bf16.msra.mxu0 %v1475
        %1511 = vmatmul.bf16.gmra.mxu0 %v1480
        %v1512 = vpop.f32.mrf.mxu0
        %v1513 = vadd.f32 %v1465, %v1512
        %v1514 = vpop.f32.mrf.mxu0
        %v1515 = vadd.f32 %v1465, %v1514
        %1516 = vmatmul.bf16.gmra.mxu0 %v1483
        %v1517 = vpop.f32.mrf.mxu0
        %v1518 = vadd.f32 %v1465, %v1517
        %v1519 = vpop.f32.mrf.mxu0
        %v1520 = vadd.f32 %v1465, %v1519
        %1521 = vmatmul.bf16.gmra.mxu0 %v1486
        %v1522 = vpop.f32.mrf.mxu0
        %v1523 = vadd.f32 %v1465, %v1522
        %v1524 = vpop.f32.mrf.mxu0
        %v1525 = vadd.f32 %v1465, %v1524
        %1526 = vmatmul.bf16.gmra.mxu0 %v1489
        %v1527 = vpop.f32.mrf.mxu0
        %v1528 = vadd.f32 %v1465, %v1527
        %v1529 = vpop.f32.mrf.mxu0
        %v1530 = vadd.f32 %v1465, %v1529
        %1531 = vmatmul.bf16.gmra.mxu0 %v1492
        %v1532 = vpop.f32.mrf.mxu0
        %v1533 = vadd.f32 %v1465, %v1532
        %v1534 = vpop.f32.mrf.mxu0
        %v1535 = vadd.f32 %v1465, %v1534
        %1536 = vmatmul.bf16.gmra.mxu0 %v1495
        %v1537 = vpop.f32.mrf.mxu0
        %v1538 = vadd.f32 %v1465, %v1537
        %v1539 = vpop.f32.mrf.mxu0
        %v1540 = vadd.f32 %v1465, %v1539
        %1541 = vmatmul.bf16.gmra.mxu0 %v1498
        %v1542 = vpop.f32.mrf.mxu0
        %v1543 = vadd.f32 %v1465, %v1542
        %v1544 = vpop.f32.mrf.mxu0
        %v1545 = vadd.f32 %v1465, %v1544
        %1546 = vmatmul.bf16.gmra.mxu0 %v1501
        %v1547 = vpop.f32.mrf.mxu0
        %v1548 = vadd.f32 %v1465, %v1547
        %v1549 = vpop.f32.mrf.mxu0
        %v1550 = vadd.f32 %v1465, %v1549
        %1551 = vdwg.mxu0
        %v1552 = vpack.c.bf16 %v1173, %v1171
        %v1553 = vpack.c.bf16 %v1178, %v1176
        %v1554 = vpack.c.bf16 %v1183, %v1181
        %v1555 = vpack.c.bf16 %v1188, %v1186
        %v1556 = vpack.c.bf16 %v1193, %v1191
        %v1557 = vpack.c.bf16 %v1198, %v1196
        %v1558 = vpack.c.bf16 %v1203, %v1201
        %v1559 = vpack.c.bf16 %v1208, %v1206
        %v1560 = vpack.c.bf16 %v1252, %v1252
        %v1565 = vunpack.c.l.b16 %v1267
        %v1566 = vunpack.c.l.b16 %v1268
        %v1567 = vunpack.c.l.b16 %v1269
        %v1568 = vunpack.c.l.b16 %v1270
        %v1569 = vpack.c.b16 %v1566, %v1565
        %v1570 = vpack.c.b16 %v1568, %v1567
        %v1574 = vsel %vm1023, %v1560, 0
        %1576 = vmatpush.bf16.msra.mxu0 0
        %1577 = vmatpush.bf16.msra.mxu0 0
        %1578 = vmatpush.bf16.msra.mxu0 0
        %1579 = vmatpush.bf16.msra.mxu0 0
        %1580 = vmatpush.bf16.msra.mxu0 0
        %1581 = vmatpush.bf16.msra.mxu0 0
        %1582 = vmatpush.bf16.msra.mxu0 %v1570
        %1583 = vmatpush.bf16.msra.mxu0 %v1569
        %1584 = vmatmul.bf16.gmra.mxu0 %v1574
        %v1585 = vpop.f32.mrf.mxu0
        %v1586 = vadd.f32 0.0, %v1585
        %v1587 = vpop.f32.mrf.mxu0
        %1588 = vdwg.mxu0
        %v1589 = vperm.slane %v1586, 0
        %v1590 = vperm.slane %v1586, 1
        %v1595 = vunpack.c.l.b16 %v1263
        %v1596 = vunpack.c.l.b16 %v1264
        %v1597 = vunpack.c.l.b16 %v1265
        %v1598 = vunpack.c.l.b16 %v1266
        %v1599 = vpack.c.b16 %v1596, %v1595
        %v1600 = vpack.c.b16 %v1598, %v1597
        %v1604 = vsel %vm1023, %v1552, 0
        %v1607 = vsel %vm1023, %v1553, 0
        %v1610 = vsel %vm1023, %v1554, 0
        %v1613 = vsel %vm1023, %v1555, 0
        %v1616 = vsel %vm1023, %v1556, 0
        %v1619 = vsel %vm1023, %v1557, 0
        %v1622 = vsel %vm1023, %v1558, 0
        %v1625 = vsel %vm1023, %v1559, 0
        %1627 = vmatpush.bf16.msra.mxu0 0
        %1628 = vmatpush.bf16.msra.mxu0 0
        %1629 = vmatpush.bf16.msra.mxu0 0
        %1630 = vmatpush.bf16.msra.mxu0 0
        %1631 = vmatpush.bf16.msra.mxu0 0
        %1632 = vmatpush.bf16.msra.mxu0 0
        %1633 = vmatpush.bf16.msra.mxu0 %v1600
        %1634 = vmatpush.bf16.msra.mxu0 %v1599
        %1635 = vmatmul.bf16.gmra.mxu0 %v1604
        %v1636 = vpop.f32.mrf.mxu0
        %v1637 = vadd.f32 %v1589, %v1636
        %v1638 = vpop.f32.mrf.mxu0
        %v1639 = vadd.f32 %v1589, %v1638
        %1640 = vmatmul.bf16.gmra.mxu0 %v1607
        %v1641 = vpop.f32.mrf.mxu0
        %v1642 = vadd.f32 %v1589, %v1641
        %v1643 = vpop.f32.mrf.mxu0
        %v1644 = vadd.f32 %v1589, %v1643
        %1645 = vmatmul.bf16.gmra.mxu0 %v1610
        %v1646 = vpop.f32.mrf.mxu0
        %v1647 = vadd.f32 %v1589, %v1646
        %v1648 = vpop.f32.mrf.mxu0
        %v1649 = vadd.f32 %v1589, %v1648
        %1650 = vmatmul.bf16.gmra.mxu0 %v1613
        %v1651 = vpop.f32.mrf.mxu0
        %v1652 = vadd.f32 %v1589, %v1651
        %v1653 = vpop.f32.mrf.mxu0
        %v1654 = vadd.f32 %v1589, %v1653
        %1655 = vmatmul.bf16.gmra.mxu0 %v1616
        %v1656 = vpop.f32.mrf.mxu0
        %v1657 = vadd.f32 %v1590, %v1656
        %v1658 = vpop.f32.mrf.mxu0
        %v1659 = vadd.f32 %v1590, %v1658
        %1660 = vmatmul.bf16.gmra.mxu0 %v1619
        %v1661 = vpop.f32.mrf.mxu0
        %v1662 = vadd.f32 %v1590, %v1661
        %v1663 = vpop.f32.mrf.mxu0
        %v1664 = vadd.f32 %v1590, %v1663
        %1665 = vmatmul.bf16.gmra.mxu0 %v1622
        %v1666 = vpop.f32.mrf.mxu0
        %v1667 = vadd.f32 %v1590, %v1666
        %v1668 = vpop.f32.mrf.mxu0
        %v1669 = vadd.f32 %v1590, %v1668
        %1670 = vmatmul.bf16.gmra.mxu0 %v1625
        %v1671 = vpop.f32.mrf.mxu0
        %v1672 = vadd.f32 %v1590, %v1671
        %v1673 = vpop.f32.mrf.mxu0
        %v1674 = vadd.f32 %v1590, %v1673
        %1675 = vdwg.mxu0
        %v1676 = vadd.f32 %v1637, %v1513
        %v1677 = vadd.f32 %v1639, %v1515
        %v1678 = vadd.f32 %v1642, %v1518
        %v1679 = vadd.f32 %v1644, %v1520
        %v1680 = vadd.f32 %v1647, %v1523
        %v1681 = vadd.f32 %v1649, %v1525
        %v1682 = vadd.f32 %v1652, %v1528
        %v1683 = vadd.f32 %v1654, %v1530
        %v1684 = vadd.f32 %v1657, %v1533
        %v1685 = vadd.f32 %v1659, %v1535
        %v1686 = vadd.f32 %v1662, %v1538
        %v1687 = vadd.f32 %v1664, %v1540
        %v1688 = vadd.f32 %v1667, %v1543
        %v1689 = vadd.f32 %v1669, %v1545
        %v1690 = vadd.f32 %v1672, %v1548
        %v1691 = vadd.f32 %v1674, %v1550
        %v1692 = vsel %vm1023, %v1676, -inf
        %v1693 = vsel %vm1023, %v1677, -inf
        %v1694 = vsel %vm1023, %v1678, -inf
        %v1695 = vsel %vm1023, %v1679, -inf
        %v1696 = vsel %vm1023, %v1680, -inf
        %v1697 = vmax.f32 %v1692, %v1696
        %v1698 = vsel %vm1023, %v1681, -inf
        %v1699 = vmax.f32 %v1693, %v1698
        %v1700 = vsel %vm1023, %v1682, -inf
        %v1701 = vmax.f32 %v1694, %v1700
        %v1702 = vsel %vm1023, %v1683, -inf
        %v1703 = vmax.f32 %v1695, %v1702
        %v1704 = vmax.f32 %v1697, %v1699
        %v1705 = vmax.f32 %v1701, %v1703
        %v1706 = vmax.f32 %v1704, %v1705
        %v1707 = vrot.slane %v1706, 4
        %v1708 = vmax.f32 %v1706, %v1707
        %v1709 = vrot.slane %v1708, 2
        %v1710 = vmax.f32 %v1708, %v1709
        %v1711 = vrot.slane %v1710, 1
        %v1712 = vmax.f32 %v1710, %v1711
        %v1713 = vsel %vm1023, %v1684, -inf
        %v1714 = vsel %vm1023, %v1685, -inf
        %v1715 = vsel %vm1023, %v1686, -inf
        %v1716 = vsel %vm1023, %v1687, -inf
        %v1717 = vsel %vm1023, %v1688, -inf
        %v1718 = vmax.f32 %v1713, %v1717
        %v1719 = vsel %vm1023, %v1689, -inf
        %v1720 = vmax.f32 %v1714, %v1719
        %v1721 = vsel %vm1023, %v1690, -inf
        %v1722 = vmax.f32 %v1715, %v1721
        %v1723 = vsel %vm1023, %v1691, -inf
        %v1724 = vmax.f32 %v1716, %v1723
        %v1725 = vmax.f32 %v1718, %v1720
        %v1726 = vmax.f32 %v1722, %v1724
        %v1727 = vmax.f32 %v1725, %v1726
        %v1728 = vrot.slane %v1727, 4
        %v1729 = vmax.f32 %v1727, %v1728
        %v1730 = vrot.slane %v1729, 2
        %v1731 = vmax.f32 %v1729, %v1730
        %v1732 = vrot.slane %v1731, 1
        %v1733 = vmax.f32 %v1731, %v1732
        %v1734 = vsel %vm378, %v1712, %v1733
        %s1735 = scalar_lea.vmem %s3, 64
        %v1736 = vld [vmem:[%s1735] sm:$0xf]
        %v1737 = vld [vmem:[%s1735 + $0x4] sm:$0xf]
        %v1738 = vld [vmem:[%s1735 + $0x8] sm:$0xf]
        %v1739 = vld [vmem:[%s1735 + $0xc] sm:$0xf]
        %v1740 = vld [vmem:[%s1735 + $0x10] sm:$0xf]
        %v1741 = vld [vmem:[%s1735 + $0x14] sm:$0xf]
        %v1742 = vld [vmem:[%s1735 + $0x18] sm:$0xf]
        %v1743 = vld [vmem:[%s1735 + $0x1c] sm:$0xf]
        %s1744 = scalar_lea.vmem %s5, 64
        %v1745 = vld [vmem:[%s1744] sm:$0xf]
        %v1746 = vld [vmem:[%s1744 + $0x4] sm:$0xf]
        %v1747 = vld [vmem:[%s1744 + $0x8] sm:$0xf]
        %v1748 = vld [vmem:[%s1744 + $0xc] sm:$0xf]
        %v1749 = vld [vmem:[%s1744 + $0x10] sm:$0xf]
        %v1750 = vld [vmem:[%s1744 + $0x14] sm:$0xf]
        %v1751 = vld [vmem:[%s1744 + $0x18] sm:$0xf]
        %v1752 = vld [vmem:[%s1744 + $0x1c] sm:$0xf]
        %v1753 = vmax.f32 %v1676, 0.0
        %v1754 = vmax.f32 %v1677, 0.0
        %v1755 = vmax.f32 %v1678, 0.0
        %v1756 = vmax.f32 %v1679, 0.0
        %v1757 = vmax.f32 %v1680, 0.0
        %v1758 = vmax.f32 %v1681, 0.0
        %v1759 = vmax.f32 %v1682, 0.0
        %v1760 = vmax.f32 %v1683, 0.0
        %v1761 = vmax.f32 %v1684, 0.0
        %v1762 = vmax.f32 %v1685, 0.0
        %v1763 = vmax.f32 %v1686, 0.0
        %v1764 = vmax.f32 %v1687, 0.0
        %v1765 = vmax.f32 %v1688, 0.0
        %v1766 = vmax.f32 %v1689, 0.0
        %v1767 = vmax.f32 %v1690, 0.0
        %v1768 = vmax.f32 %v1691, 0.0
        %v1769 = vpack.c.bf16 %v1754, %v1753
        %v1770 = vpack.c.bf16 %v1756, %v1755
        %v1771 = vpack.c.bf16 %v1758, %v1757
        %v1772 = vpack.c.bf16 %v1760, %v1759
        %v1773 = vpack.c.bf16 %v1762, %v1761
        %v1774 = vpack.c.bf16 %v1764, %v1763
        %v1775 = vpack.c.bf16 %v1766, %v1765
        %v1776 = vpack.c.bf16 %v1768, %v1767
        %v1777 = vmax.f32 %v1734, 0.0
        %v1778 = vpack.c.bf16 %v1777, %v1777
        %v1783 = vunpack.c.l.b16 %v1740
        %v1784 = vunpack.c.l.b16 %v1741
        %v1785 = vunpack.c.l.b16 %v1742
        %v1786 = vunpack.c.l.b16 %v1743
        %v1787 = vpack.c.b16 %v1784, %v1783
        %v1788 = vpack.c.b16 %v1786, %v1785
        %v1792 = vsel %vm1023, %v1778, 0
        %1794 = vmatpush.bf16.msra.mxu0 0
        %1795 = vmatpush.bf16.msra.mxu0 0
        %1796 = vmatpush.bf16.msra.mxu0 0
        %1797 = vmatpush.bf16.msra.mxu0 0
        %1798 = vmatpush.bf16.msra.mxu0 0
        %1799 = vmatpush.bf16.msra.mxu0 0
        %1800 = vmatpush.bf16.msra.mxu0 %v1788
        %1801 = vmatpush.bf16.msra.mxu0 %v1787
        %1802 = vmatmul.bf16.gmra.mxu0 %v1792
        %v1803 = vpop.f32.mrf.mxu0
        %v1804 = vadd.f32 0.0, %v1803
        %v1805 = vpop.f32.mrf.mxu0
        %1806 = vdwg.mxu0
        %v1807 = vperm.slane %v1804, 0
        %v1808 = vperm.slane %v1804, 1
        %v1813 = vunpack.c.l.b16 %v1736
        %v1814 = vunpack.c.l.b16 %v1737
        %v1815 = vunpack.c.l.b16 %v1738
        %v1816 = vunpack.c.l.b16 %v1739
        %v1817 = vpack.c.b16 %v1814, %v1813
        %v1818 = vpack.c.b16 %v1816, %v1815
        %v1822 = vsel %vm1023, %v1769, 0
        %v1825 = vsel %vm1023, %v1770, 0
        %v1828 = vsel %vm1023, %v1771, 0
        %v1831 = vsel %vm1023, %v1772, 0
        %v1834 = vsel %vm1023, %v1773, 0
        %v1837 = vsel %vm1023, %v1774, 0
        %v1840 = vsel %vm1023, %v1775, 0
        %v1843 = vsel %vm1023, %v1776, 0
        %1845 = vmatpush.bf16.msra.mxu0 0
        %1846 = vmatpush.bf16.msra.mxu0 0
        %1847 = vmatpush.bf16.msra.mxu0 0
        %1848 = vmatpush.bf16.msra.mxu0 0
        %1849 = vmatpush.bf16.msra.mxu0 0
        %1850 = vmatpush.bf16.msra.mxu0 0
        %1851 = vmatpush.bf16.msra.mxu0 %v1818
        %1852 = vmatpush.bf16.msra.mxu0 %v1817
        %1853 = vmatmul.bf16.gmra.mxu0 %v1822
        %v1854 = vpop.f32.mrf.mxu0
        %v1855 = vadd.f32 %v1807, %v1854
        %v1856 = vpop.f32.mrf.mxu0
        %v1857 = vadd.f32 %v1807, %v1856
        %1858 = vmatmul.bf16.gmra.mxu0 %v1825
        %v1859 = vpop.f32.mrf.mxu0
        %v1860 = vadd.f32 %v1807, %v1859
        %v1861 = vpop.f32.mrf.mxu0
        %v1862 = vadd.f32 %v1807, %v1861
        %1863 = vmatmul.bf16.gmra.mxu0 %v1828
        %v1864 = vpop.f32.mrf.mxu0
        %v1865 = vadd.f32 %v1807, %v1864
        %v1866 = vpop.f32.mrf.mxu0
        %v1867 = vadd.f32 %v1807, %v1866
        %1868 = vmatmul.bf16.gmra.mxu0 %v1831
        %v1869 = vpop.f32.mrf.mxu0
        %v1870 = vadd.f32 %v1807, %v1869
        %v1871 = vpop.f32.mrf.mxu0
        %v1872 = vadd.f32 %v1807, %v1871
        %1873 = vmatmul.bf16.gmra.mxu0 %v1834
        %v1874 = vpop.f32.mrf.mxu0
        %v1875 = vadd.f32 %v1808, %v1874
        %v1876 = vpop.f32.mrf.mxu0
        %v1877 = vadd.f32 %v1808, %v1876
        %1878 = vmatmul.bf16.gmra.mxu0 %v1837
        %v1879 = vpop.f32.mrf.mxu0
        %v1880 = vadd.f32 %v1808, %v1879
        %v1881 = vpop.f32.mrf.mxu0
        %v1882 = vadd.f32 %v1808, %v1881
        %1883 = vmatmul.bf16.gmra.mxu0 %v1840
        %v1884 = vpop.f32.mrf.mxu0
        %v1885 = vadd.f32 %v1808, %v1884
        %v1886 = vpop.f32.mrf.mxu0
        %v1887 = vadd.f32 %v1808, %v1886
        %1888 = vmatmul.bf16.gmra.mxu0 %v1843
        %v1889 = vpop.f32.mrf.mxu0
        %v1890 = vadd.f32 %v1808, %v1889
        %v1891 = vpop.f32.mrf.mxu0
        %v1892 = vadd.f32 %v1808, %v1891
        %1893 = vdwg.mxu0
        %s1894 = scalar_lea.vmem %s6, 4
        %v1895 = vld [vmem:[%s1894] sm:$0x1]
        %v1897 = vperm.slane %v1895, 0
        %v1899 = vadd.f32 %v1855, %v1897
        %v1900 = vadd.f32 %v1857, %v1897
        %v1901 = vadd.f32 %v1860, %v1897
        %v1902 = vadd.f32 %v1862, %v1897
        %v1903 = vadd.f32 %v1865, %v1897
        %v1904 = vadd.f32 %v1867, %v1897
        %v1905 = vadd.f32 %v1870, %v1897
        %v1906 = vadd.f32 %v1872, %v1897
        %v1907 = vadd.f32 %v1875, %v1897
        %v1908 = vadd.f32 %v1877, %v1897
        %v1909 = vadd.f32 %v1880, %v1897
        %v1910 = vadd.f32 %v1882, %v1897
        %v1911 = vadd.f32 %v1885, %v1897
        %v1912 = vadd.f32 %v1887, %v1897
        %v1913 = vadd.f32 %v1890, %v1897
        %v1914 = vadd.f32 %v1892, %v1897
        %v1915 = vmax.f32 %v1899, 0.0
        %v1916 = vmax.f32 %v1900, 0.0
        %v1917 = vmax.f32 %v1901, 0.0
        %v1918 = vmax.f32 %v1902, 0.0
        %v1919 = vmax.f32 %v1903, 0.0
        %v1920 = vmax.f32 %v1904, 0.0
        %v1921 = vmax.f32 %v1905, 0.0
        %v1922 = vmax.f32 %v1906, 0.0
        %v1923 = vmax.f32 %v1907, 0.0
        %v1924 = vmax.f32 %v1908, 0.0
        %v1925 = vmax.f32 %v1909, 0.0
        %v1926 = vmax.f32 %v1910, 0.0
        %v1927 = vmax.f32 %v1911, 0.0
        %v1928 = vmax.f32 %v1912, 0.0
        %v1929 = vmax.f32 %v1913, 0.0
        %v1930 = vmax.f32 %v1914, 0.0
        %v1931 = vpack.c.bf16 %v1916, %v1915
        %v1932 = vpack.c.bf16 %v1918, %v1917
        %v1933 = vpack.c.bf16 %v1920, %v1919
        %v1934 = vpack.c.bf16 %v1922, %v1921
        %v1935 = vpack.c.bf16 %v1924, %v1923
        %v1936 = vpack.c.bf16 %v1926, %v1925
        %v1937 = vpack.c.bf16 %v1928, %v1927
        %v1938 = vpack.c.bf16 %v1930, %v1929
        %s1939 = scalar_lea.vmem %s4, 32
        %v1940 = vld [vmem:[%s1939] sm:$0xf]
        %v1941 = vld [vmem:[%s1939 + $0x4] sm:$0xf]
        %v1942 = vld [vmem:[%s1939 + $0x8] sm:$0xf]
        %v1943 = vld [vmem:[%s1939 + $0xc] sm:$0xf]
        %s1944 = scalar_lea.vmem %s6, 5
        %v1945 = vld [vmem:[%s1944] sm:$0x1]
        %v1947 = vperm.slane %v1945, 0
        %v1953 = vunpack.c.l.b16 %v1940
        %v1954 = vunpack.c.l.b16 %v1941
        %v1955 = vunpack.c.l.b16 %v1942
        %v1956 = vunpack.c.l.b16 %v1943
        %v1957 = vpack.c.b16 %v1954, %v1953
        %v1958 = vpack.c.b16 %v1956, %v1955
        %v1962 = vsel %vm1023, %v1931, 0
        %v1965 = vsel %vm1023, %v1932, 0
        %v1968 = vsel %vm1023, %v1933, 0
        %v1971 = vsel %vm1023, %v1934, 0
        %v1974 = vsel %vm1023, %v1935, 0
        %v1977 = vsel %vm1023, %v1936, 0
        %v1980 = vsel %vm1023, %v1937, 0
        %v1983 = vsel %vm1023, %v1938, 0
        %1985 = vmatpush.bf16.msra.mxu0 0
        %1986 = vmatpush.bf16.msra.mxu0 0
        %1987 = vmatpush.bf16.msra.mxu0 0
        %1988 = vmatpush.bf16.msra.mxu0 0
        %1989 = vmatpush.bf16.msra.mxu0 0
        %1990 = vmatpush.bf16.msra.mxu0 0
        %1991 = vmatpush.bf16.msra.mxu0 %v1958
        %1992 = vmatpush.bf16.msra.mxu0 %v1957
        %1993 = vmatmul.bf16.gmra.mxu0 %v1962
        %v1994 = vpop.f32.mrf.mxu0
        %v1995 = vadd.f32 %v1947, %v1994
        %v1996 = vpop.f32.mrf.mxu0
        %v1997 = vadd.f32 %v1947, %v1996
        %1998 = vmatmul.bf16.gmra.mxu0 %v1965
        %v1999 = vpop.f32.mrf.mxu0
        %v2000 = vadd.f32 %v1947, %v1999
        %v2001 = vpop.f32.mrf.mxu0
        %v2002 = vadd.f32 %v1947, %v2001
        %2003 = vmatmul.bf16.gmra.mxu0 %v1968
        %v2004 = vpop.f32.mrf.mxu0
        %v2005 = vadd.f32 %v1947, %v2004
        %v2006 = vpop.f32.mrf.mxu0
        %v2007 = vadd.f32 %v1947, %v2006
        %2008 = vmatmul.bf16.gmra.mxu0 %v1971
        %v2009 = vpop.f32.mrf.mxu0
        %v2010 = vadd.f32 %v1947, %v2009
        %v2011 = vpop.f32.mrf.mxu0
        %v2012 = vadd.f32 %v1947, %v2011
        %2013 = vmatmul.bf16.gmra.mxu0 %v1974
        %v2014 = vpop.f32.mrf.mxu0
        %v2015 = vadd.f32 %v1947, %v2014
        %v2016 = vpop.f32.mrf.mxu0
        %v2017 = vadd.f32 %v1947, %v2016
        %2018 = vmatmul.bf16.gmra.mxu0 %v1977
        %v2019 = vpop.f32.mrf.mxu0
        %v2020 = vadd.f32 %v1947, %v2019
        %v2021 = vpop.f32.mrf.mxu0
        %v2022 = vadd.f32 %v1947, %v2021
        %2023 = vmatmul.bf16.gmra.mxu0 %v1980
        %v2024 = vpop.f32.mrf.mxu0
        %v2025 = vadd.f32 %v1947, %v2024
        %v2026 = vpop.f32.mrf.mxu0
        %v2027 = vadd.f32 %v1947, %v2026
        %2028 = vmatmul.bf16.gmra.mxu0 %v1983
        %v2029 = vpop.f32.mrf.mxu0
        %v2030 = vadd.f32 %v1947, %v2029
        %v2031 = vpop.f32.mrf.mxu0
        %v2032 = vadd.f32 %v1947, %v2031
        %2033 = vdwg.mxu0
        %v2034 = vpack.c.bf16 %v1677, %v1676
        %v2035 = vpack.c.bf16 %v1679, %v1678
        %v2036 = vpack.c.bf16 %v1681, %v1680
        %v2037 = vpack.c.bf16 %v1683, %v1682
        %v2038 = vpack.c.bf16 %v1685, %v1684
        %v2039 = vpack.c.bf16 %v1687, %v1686
        %v2040 = vpack.c.bf16 %v1689, %v1688
        %v2041 = vpack.c.bf16 %v1691, %v1690
        %v2042 = vpack.c.bf16 %v1734, %v1734
        %v2047 = vunpack.c.l.b16 %v1749
        %v2048 = vunpack.c.l.b16 %v1750
        %v2049 = vunpack.c.l.b16 %v1751
        %v2050 = vunpack.c.l.b16 %v1752
        %v2051 = vpack.c.b16 %v2048, %v2047
        %v2052 = vpack.c.b16 %v2050, %v2049
        %v2056 = vsel %vm1023, %v2042, 0
        %2058 = vmatpush.bf16.msra.mxu0 0
        %2059 = vmatpush.bf16.msra.mxu0 0
        %2060 = vmatpush.bf16.msra.mxu0 0
        %2061 = vmatpush.bf16.msra.mxu0 0
        %2062 = vmatpush.bf16.msra.mxu0 0
        %2063 = vmatpush.bf16.msra.mxu0 0
        %2064 = vmatpush.bf16.msra.mxu0 %v2052
        %2065 = vmatpush.bf16.msra.mxu0 %v2051
        %2066 = vmatmul.bf16.gmra.mxu0 %v2056
        %v2067 = vpop.f32.mrf.mxu0
        %v2068 = vadd.f32 0.0, %v2067
        %v2069 = vpop.f32.mrf.mxu0
        %2070 = vdwg.mxu0
        %v2071 = vperm.slane %v2068, 0
        %v2072 = vperm.slane %v2068, 1
        %v2077 = vunpack.c.l.b16 %v1745
        %v2078 = vunpack.c.l.b16 %v1746
        %v2079 = vunpack.c.l.b16 %v1747
        %v2080 = vunpack.c.l.b16 %v1748
        %v2081 = vpack.c.b16 %v2078, %v2077
        %v2082 = vpack.c.b16 %v2080, %v2079
        %v2086 = vsel %vm1023, %v2034, 0
        %v2089 = vsel %vm1023, %v2035, 0
        %v2092 = vsel %vm1023, %v2036, 0
        %v2095 = vsel %vm1023, %v2037, 0
        %v2098 = vsel %vm1023, %v2038, 0
        %v2101 = vsel %vm1023, %v2039, 0
        %v2104 = vsel %vm1023, %v2040, 0
        %v2107 = vsel %vm1023, %v2041, 0
        %2109 = vmatpush.bf16.msra.mxu0 0
        %2110 = vmatpush.bf16.msra.mxu0 0
        %2111 = vmatpush.bf16.msra.mxu0 0
        %2112 = vmatpush.bf16.msra.mxu0 0
        %2113 = vmatpush.bf16.msra.mxu0 0
        %2114 = vmatpush.bf16.msra.mxu0 0
        %2115 = vmatpush.bf16.msra.mxu0 %v2082
        %2116 = vmatpush.bf16.msra.mxu0 %v2081
        %2117 = vmatmul.bf16.gmra.mxu0 %v2086
        %v2118 = vpop.f32.mrf.mxu0
        %v2119 = vadd.f32 %v2071, %v2118
        %v2120 = vpop.f32.mrf.mxu0
        %v2121 = vadd.f32 %v2071, %v2120
        %2122 = vmatmul.bf16.gmra.mxu0 %v2089
        %v2123 = vpop.f32.mrf.mxu0
        %v2124 = vadd.f32 %v2071, %v2123
        %v2125 = vpop.f32.mrf.mxu0
        %v2126 = vadd.f32 %v2071, %v2125
        %2127 = vmatmul.bf16.gmra.mxu0 %v2092
        %v2128 = vpop.f32.mrf.mxu0
        %v2129 = vadd.f32 %v2071, %v2128
        %v2130 = vpop.f32.mrf.mxu0
        %v2131 = vadd.f32 %v2071, %v2130
        %2132 = vmatmul.bf16.gmra.mxu0 %v2095
        %v2133 = vpop.f32.mrf.mxu0
        %v2134 = vadd.f32 %v2071, %v2133
        %v2135 = vpop.f32.mrf.mxu0
        %v2136 = vadd.f32 %v2071, %v2135
        %2137 = vmatmul.bf16.gmra.mxu0 %v2098
        %v2138 = vpop.f32.mrf.mxu0
        %v2139 = vadd.f32 %v2072, %v2138
        %v2140 = vpop.f32.mrf.mxu0
        %v2141 = vadd.f32 %v2072, %v2140
        %2142 = vmatmul.bf16.gmra.mxu0 %v2101
        %v2143 = vpop.f32.mrf.mxu0
        %v2144 = vadd.f32 %v2072, %v2143
        %v2145 = vpop.f32.mrf.mxu0
        %v2146 = vadd.f32 %v2072, %v2145
        %2147 = vmatmul.bf16.gmra.mxu0 %v2104
        %v2148 = vpop.f32.mrf.mxu0
        %v2149 = vadd.f32 %v2072, %v2148
        %v2150 = vpop.f32.mrf.mxu0
        %v2151 = vadd.f32 %v2072, %v2150
        %2152 = vmatmul.bf16.gmra.mxu0 %v2107
        %v2153 = vpop.f32.mrf.mxu0
        %v2154 = vadd.f32 %v2072, %v2153
        %v2155 = vpop.f32.mrf.mxu0
        %v2156 = vadd.f32 %v2072, %v2155
        %2157 = vdwg.mxu0
        %v2158 = vadd.f32 %v2119, %v1995
        %v2159 = vadd.f32 %v2121, %v1997
        %v2160 = vadd.f32 %v2124, %v2000
        %v2161 = vadd.f32 %v2126, %v2002
        %v2162 = vadd.f32 %v2129, %v2005
        %v2163 = vadd.f32 %v2131, %v2007
        %v2164 = vadd.f32 %v2134, %v2010
        %v2165 = vadd.f32 %v2136, %v2012
        %v2166 = vadd.f32 %v2139, %v2015
        %v2167 = vadd.f32 %v2141, %v2017
        %v2168 = vadd.f32 %v2144, %v2020
        %v2169 = vadd.f32 %v2146, %v2022
        %v2170 = vadd.f32 %v2149, %v2025
        %v2171 = vadd.f32 %v2151, %v2027
        %v2172 = vadd.f32 %v2154, %v2030
        %v2173 = vadd.f32 %v2156, %v2032
        %v2174 = vsel %vm1023, %v2158, -inf
        %v2175 = vsel %vm1023, %v2159, -inf
        %v2176 = vsel %vm1023, %v2160, -inf
        %v2177 = vsel %vm1023, %v2161, -inf
        %v2178 = vsel %vm1023, %v2162, -inf
        %v2179 = vmax.f32 %v2174, %v2178
        %v2180 = vsel %vm1023, %v2163, -inf
        %v2181 = vmax.f32 %v2175, %v2180
        %v2182 = vsel %vm1023, %v2164, -inf
        %v2183 = vmax.f32 %v2176, %v2182
        %v2184 = vsel %vm1023, %v2165, -inf
        %v2185 = vmax.f32 %v2177, %v2184
        %v2186 = vmax.f32 %v2179, %v2181
        %v2187 = vmax.f32 %v2183, %v2185
        %v2188 = vmax.f32 %v2186, %v2187
        %v2189 = vrot.slane %v2188, 4
        %v2190 = vmax.f32 %v2188, %v2189
        %v2191 = vrot.slane %v2190, 2
        %v2192 = vmax.f32 %v2190, %v2191
        %v2193 = vrot.slane %v2192, 1
        %v2194 = vmax.f32 %v2192, %v2193
        %v2195 = vsel %vm1023, %v2166, -inf
        %v2196 = vsel %vm1023, %v2167, -inf
        %v2197 = vsel %vm1023, %v2168, -inf
        %v2198 = vsel %vm1023, %v2169, -inf
        %v2199 = vsel %vm1023, %v2170, -inf
        %v2200 = vmax.f32 %v2195, %v2199
        %v2201 = vsel %vm1023, %v2171, -inf
        %v2202 = vmax.f32 %v2196, %v2201
        %v2203 = vsel %vm1023, %v2172, -inf
        %v2204 = vmax.f32 %v2197, %v2203
        %v2205 = vsel %vm1023, %v2173, -inf
        %v2206 = vmax.f32 %v2198, %v2205
        %v2207 = vmax.f32 %v2200, %v2202
        %v2208 = vmax.f32 %v2204, %v2206
        %v2209 = vmax.f32 %v2207, %v2208
        %v2210 = vrot.slane %v2209, 4
        %v2211 = vmax.f32 %v2209, %v2210
        %v2212 = vrot.slane %v2211, 2
        %v2213 = vmax.f32 %v2211, %v2212
        %v2214 = vrot.slane %v2213, 1
        %v2215 = vmax.f32 %v2213, %v2214
        %v2216 = vsel %vm378, %v2194, %v2215
        %s2217 = scalar_lea.vmem %s3, 96
        %v2218 = vld [vmem:[%s2217] sm:$0xf]
        %v2219 = vld [vmem:[%s2217 + $0x4] sm:$0xf]
        %v2220 = vld [vmem:[%s2217 + $0x8] sm:$0xf]
        %v2221 = vld [vmem:[%s2217 + $0xc] sm:$0xf]
        %v2222 = vld [vmem:[%s2217 + $0x10] sm:$0xf]
        %v2223 = vld [vmem:[%s2217 + $0x14] sm:$0xf]
        %v2224 = vld [vmem:[%s2217 + $0x18] sm:$0xf]
        %v2225 = vld [vmem:[%s2217 + $0x1c] sm:$0xf]
        %s2226 = scalar_lea.vmem %s5, 96
        %v2227 = vld [vmem:[%s2226] sm:$0xf]
        %v2228 = vld [vmem:[%s2226 + $0x4] sm:$0xf]
        %v2229 = vld [vmem:[%s2226 + $0x8] sm:$0xf]
        %v2230 = vld [vmem:[%s2226 + $0xc] sm:$0xf]
        %v2231 = vld [vmem:[%s2226 + $0x10] sm:$0xf]
        %v2232 = vld [vmem:[%s2226 + $0x14] sm:$0xf]
        %v2233 = vld [vmem:[%s2226 + $0x18] sm:$0xf]
        %v2234 = vld [vmem:[%s2226 + $0x1c] sm:$0xf]
        %v2235 = vmax.f32 %v2158, 0.0
        %v2236 = vmax.f32 %v2159, 0.0
        %v2237 = vmax.f32 %v2160, 0.0
        %v2238 = vmax.f32 %v2161, 0.0
        %v2239 = vmax.f32 %v2162, 0.0
        %v2240 = vmax.f32 %v2163, 0.0
        %v2241 = vmax.f32 %v2164, 0.0
        %v2242 = vmax.f32 %v2165, 0.0
        %v2243 = vmax.f32 %v2166, 0.0
        %v2244 = vmax.f32 %v2167, 0.0
        %v2245 = vmax.f32 %v2168, 0.0
        %v2246 = vmax.f32 %v2169, 0.0
        %v2247 = vmax.f32 %v2170, 0.0
        %v2248 = vmax.f32 %v2171, 0.0
        %v2249 = vmax.f32 %v2172, 0.0
        %v2250 = vmax.f32 %v2173, 0.0
        %v2251 = vpack.c.bf16 %v2236, %v2235
        %v2252 = vpack.c.bf16 %v2238, %v2237
        %v2253 = vpack.c.bf16 %v2240, %v2239
        %v2254 = vpack.c.bf16 %v2242, %v2241
        %v2255 = vpack.c.bf16 %v2244, %v2243
        %v2256 = vpack.c.bf16 %v2246, %v2245
        %v2257 = vpack.c.bf16 %v2248, %v2247
        %v2258 = vpack.c.bf16 %v2250, %v2249
        %v2259 = vmax.f32 %v2216, 0.0
        %v2260 = vpack.c.bf16 %v2259, %v2259
        %v2265 = vunpack.c.l.b16 %v2222
        %v2266 = vunpack.c.l.b16 %v2223
        %v2267 = vunpack.c.l.b16 %v2224
        %v2268 = vunpack.c.l.b16 %v2225
        %v2269 = vpack.c.b16 %v2266, %v2265
        %v2270 = vpack.c.b16 %v2268, %v2267
        %v2274 = vsel %vm1023, %v2260, 0
        %2276 = vmatpush.bf16.msra.mxu0 0
        %2277 = vmatpush.bf16.msra.mxu0 0
        %2278 = vmatpush.bf16.msra.mxu0 0
        %2279 = vmatpush.bf16.msra.mxu0 0
        %2280 = vmatpush.bf16.msra.mxu0 0
        %2281 = vmatpush.bf16.msra.mxu0 0
        %2282 = vmatpush.bf16.msra.mxu0 %v2270
        %2283 = vmatpush.bf16.msra.mxu0 %v2269
        %2284 = vmatmul.bf16.gmra.mxu0 %v2274
        %v2285 = vpop.f32.mrf.mxu0
        %v2286 = vadd.f32 0.0, %v2285
        %v2287 = vpop.f32.mrf.mxu0
        %2288 = vdwg.mxu0
        %v2289 = vperm.slane %v2286, 0
        %v2290 = vperm.slane %v2286, 1
        %v2295 = vunpack.c.l.b16 %v2218
        %v2296 = vunpack.c.l.b16 %v2219
        %v2297 = vunpack.c.l.b16 %v2220
        %v2298 = vunpack.c.l.b16 %v2221
        %v2299 = vpack.c.b16 %v2296, %v2295
        %v2300 = vpack.c.b16 %v2298, %v2297
        %v2304 = vsel %vm1023, %v2251, 0
        %v2307 = vsel %vm1023, %v2252, 0
        %v2310 = vsel %vm1023, %v2253, 0
        %v2313 = vsel %vm1023, %v2254, 0
        %v2316 = vsel %vm1023, %v2255, 0
        %v2319 = vsel %vm1023, %v2256, 0
        %v2322 = vsel %vm1023, %v2257, 0
        %v2325 = vsel %vm1023, %v2258, 0
        %2327 = vmatpush.bf16.msra.mxu0 0
        %2328 = vmatpush.bf16.msra.mxu0 0
        %2329 = vmatpush.bf16.msra.mxu0 0
        %2330 = vmatpush.bf16.msra.mxu0 0
        %2331 = vmatpush.bf16.msra.mxu0 0
        %2332 = vmatpush.bf16.msra.mxu0 0
        %2333 = vmatpush.bf16.msra.mxu0 %v2300
        %2334 = vmatpush.bf16.msra.mxu0 %v2299
        %2335 = vmatmul.bf16.gmra.mxu0 %v2304
        %v2336 = vpop.f32.mrf.mxu0
        %v2337 = vadd.f32 %v2289, %v2336
        %v2338 = vpop.f32.mrf.mxu0
        %v2339 = vadd.f32 %v2289, %v2338
        %2340 = vmatmul.bf16.gmra.mxu0 %v2307
        %v2341 = vpop.f32.mrf.mxu0
        %v2342 = vadd.f32 %v2289, %v2341
        %v2343 = vpop.f32.mrf.mxu0
        %v2344 = vadd.f32 %v2289, %v2343
        %2345 = vmatmul.bf16.gmra.mxu0 %v2310
        %v2346 = vpop.f32.mrf.mxu0
        %v2347 = vadd.f32 %v2289, %v2346
        %v2348 = vpop.f32.mrf.mxu0
        %v2349 = vadd.f32 %v2289, %v2348
        %2350 = vmatmul.bf16.gmra.mxu0 %v2313
        %v2351 = vpop.f32.mrf.mxu0
        %v2352 = vadd.f32 %v2289, %v2351
        %v2353 = vpop.f32.mrf.mxu0
        %v2354 = vadd.f32 %v2289, %v2353
        %2355 = vmatmul.bf16.gmra.mxu0 %v2316
        %v2356 = vpop.f32.mrf.mxu0
        %v2357 = vadd.f32 %v2290, %v2356
        %v2358 = vpop.f32.mrf.mxu0
        %v2359 = vadd.f32 %v2290, %v2358
        %2360 = vmatmul.bf16.gmra.mxu0 %v2319
        %v2361 = vpop.f32.mrf.mxu0
        %v2362 = vadd.f32 %v2290, %v2361
        %v2363 = vpop.f32.mrf.mxu0
        %v2364 = vadd.f32 %v2290, %v2363
        %2365 = vmatmul.bf16.gmra.mxu0 %v2322
        %v2366 = vpop.f32.mrf.mxu0
        %v2367 = vadd.f32 %v2290, %v2366
        %v2368 = vpop.f32.mrf.mxu0
        %v2369 = vadd.f32 %v2290, %v2368
        %2370 = vmatmul.bf16.gmra.mxu0 %v2325
        %v2371 = vpop.f32.mrf.mxu0
        %v2372 = vadd.f32 %v2290, %v2371
        %v2373 = vpop.f32.mrf.mxu0
        %v2374 = vadd.f32 %v2290, %v2373
        %2375 = vdwg.mxu0
        %s2376 = scalar_lea.vmem %s6, 6
        %v2377 = vld [vmem:[%s2376] sm:$0x1]
        %v2379 = vperm.slane %v2377, 0
        %v2381 = vadd.f32 %v2337, %v2379
        %v2382 = vadd.f32 %v2339, %v2379
        %v2383 = vadd.f32 %v2342, %v2379
        %v2384 = vadd.f32 %v2344, %v2379
        %v2385 = vadd.f32 %v2347, %v2379
        %v2386 = vadd.f32 %v2349, %v2379
        %v2387 = vadd.f32 %v2352, %v2379
        %v2388 = vadd.f32 %v2354, %v2379
        %v2389 = vadd.f32 %v2357, %v2379
        %v2390 = vadd.f32 %v2359, %v2379
        %v2391 = vadd.f32 %v2362, %v2379
        %v2392 = vadd.f32 %v2364, %v2379
        %v2393 = vadd.f32 %v2367, %v2379
        %v2394 = vadd.f32 %v2369, %v2379
        %v2395 = vadd.f32 %v2372, %v2379
        %v2396 = vadd.f32 %v2374, %v2379
        %v2397 = vmax.f32 %v2381, 0.0
        %v2398 = vmax.f32 %v2382, 0.0
        %v2399 = vmax.f32 %v2383, 0.0
        %v2400 = vmax.f32 %v2384, 0.0
        %v2401 = vmax.f32 %v2385, 0.0
        %v2402 = vmax.f32 %v2386, 0.0
        %v2403 = vmax.f32 %v2387, 0.0
        %v2404 = vmax.f32 %v2388, 0.0
        %v2405 = vmax.f32 %v2389, 0.0
        %v2406 = vmax.f32 %v2390, 0.0
        %v2407 = vmax.f32 %v2391, 0.0
        %v2408 = vmax.f32 %v2392, 0.0
        %v2409 = vmax.f32 %v2393, 0.0
        %v2410 = vmax.f32 %v2394, 0.0
        %v2411 = vmax.f32 %v2395, 0.0
        %v2412 = vmax.f32 %v2396, 0.0
        %v2413 = vpack.c.bf16 %v2398, %v2397
        %v2414 = vpack.c.bf16 %v2400, %v2399
        %v2415 = vpack.c.bf16 %v2402, %v2401
        %v2416 = vpack.c.bf16 %v2404, %v2403
        %v2417 = vpack.c.bf16 %v2406, %v2405
        %v2418 = vpack.c.bf16 %v2408, %v2407
        %v2419 = vpack.c.bf16 %v2410, %v2409
        %v2420 = vpack.c.bf16 %v2412, %v2411
        %s2421 = scalar_lea.vmem %s4, 48
        %v2422 = vld [vmem:[%s2421] sm:$0xf]
        %v2423 = vld [vmem:[%s2421 + $0x4] sm:$0xf]
        %v2424 = vld [vmem:[%s2421 + $0x8] sm:$0xf]
        %v2425 = vld [vmem:[%s2421 + $0xc] sm:$0xf]
        %s2426 = scalar_lea.vmem %s6, 7
        %v2427 = vld [vmem:[%s2426] sm:$0x1]
        %v2429 = vperm.slane %v2427, 0
        %v2435 = vunpack.c.l.b16 %v2422
        %v2436 = vunpack.c.l.b16 %v2423
        %v2437 = vunpack.c.l.b16 %v2424
        %v2438 = vunpack.c.l.b16 %v2425
        %v2439 = vpack.c.b16 %v2436, %v2435
        %v2440 = vpack.c.b16 %v2438, %v2437
        %v2444 = vsel %vm1023, %v2413, 0
        %v2447 = vsel %vm1023, %v2414, 0
        %v2450 = vsel %vm1023, %v2415, 0
        %v2453 = vsel %vm1023, %v2416, 0
        %v2456 = vsel %vm1023, %v2417, 0
        %v2459 = vsel %vm1023, %v2418, 0
        %v2462 = vsel %vm1023, %v2419, 0
        %v2465 = vsel %vm1023, %v2420, 0
        %2467 = vmatpush.bf16.msra.mxu0 0
        %2468 = vmatpush.bf16.msra.mxu0 0
        %2469 = vmatpush.bf16.msra.mxu0 0
        %2470 = vmatpush.bf16.msra.mxu0 0
        %2471 = vmatpush.bf16.msra.mxu0 0
        %2472 = vmatpush.bf16.msra.mxu0 0
        %2473 = vmatpush.bf16.msra.mxu0 %v2440
        %2474 = vmatpush.bf16.msra.mxu0 %v2439
        %2475 = vmatmul.bf16.gmra.mxu0 %v2444
        %v2476 = vpop.f32.mrf.mxu0
        %v2477 = vadd.f32 %v2429, %v2476
        %v2478 = vpop.f32.mrf.mxu0
        %v2479 = vadd.f32 %v2429, %v2478
        %2480 = vmatmul.bf16.gmra.mxu0 %v2447
        %v2481 = vpop.f32.mrf.mxu0
        %v2482 = vadd.f32 %v2429, %v2481
        %v2483 = vpop.f32.mrf.mxu0
        %v2484 = vadd.f32 %v2429, %v2483
        %2485 = vmatmul.bf16.gmra.mxu0 %v2450
        %v2486 = vpop.f32.mrf.mxu0
        %v2487 = vadd.f32 %v2429, %v2486
        %v2488 = vpop.f32.mrf.mxu0
        %v2489 = vadd.f32 %v2429, %v2488
        %2490 = vmatmul.bf16.gmra.mxu0 %v2453
        %v2491 = vpop.f32.mrf.mxu0
        %v2492 = vadd.f32 %v2429, %v2491
        %v2493 = vpop.f32.mrf.mxu0
        %v2494 = vadd.f32 %v2429, %v2493
        %2495 = vmatmul.bf16.gmra.mxu0 %v2456
        %v2496 = vpop.f32.mrf.mxu0
        %v2497 = vadd.f32 %v2429, %v2496
        %v2498 = vpop.f32.mrf.mxu0
        %v2499 = vadd.f32 %v2429, %v2498
        %2500 = vmatmul.bf16.gmra.mxu0 %v2459
        %v2501 = vpop.f32.mrf.mxu0
        %v2502 = vadd.f32 %v2429, %v2501
        %v2503 = vpop.f32.mrf.mxu0
        %v2504 = vadd.f32 %v2429, %v2503
        %2505 = vmatmul.bf16.gmra.mxu0 %v2462
        %v2506 = vpop.f32.mrf.mxu0
        %v2507 = vadd.f32 %v2429, %v2506
        %v2508 = vpop.f32.mrf.mxu0
        %v2509 = vadd.f32 %v2429, %v2508
        %2510 = vmatmul.bf16.gmra.mxu0 %v2465
        %v2511 = vpop.f32.mrf.mxu0
        %v2512 = vadd.f32 %v2429, %v2511
        %v2513 = vpop.f32.mrf.mxu0
        %v2514 = vadd.f32 %v2429, %v2513
        %2515 = vdwg.mxu0
        %v2516 = vpack.c.bf16 %v2159, %v2158
        %v2517 = vpack.c.bf16 %v2161, %v2160
        %v2518 = vpack.c.bf16 %v2163, %v2162
        %v2519 = vpack.c.bf16 %v2165, %v2164
        %v2520 = vpack.c.bf16 %v2167, %v2166
        %v2521 = vpack.c.bf16 %v2169, %v2168
        %v2522 = vpack.c.bf16 %v2171, %v2170
        %v2523 = vpack.c.bf16 %v2173, %v2172
        %v2524 = vpack.c.bf16 %v2216, %v2216
        %v2529 = vunpack.c.l.b16 %v2231
        %v2530 = vunpack.c.l.b16 %v2232
        %v2531 = vunpack.c.l.b16 %v2233
        %v2532 = vunpack.c.l.b16 %v2234
        %v2533 = vpack.c.b16 %v2530, %v2529
        %v2534 = vpack.c.b16 %v2532, %v2531
        %v2538 = vsel %vm1023, %v2524, 0
        %2540 = vmatpush.bf16.msra.mxu0 0
        %2541 = vmatpush.bf16.msra.mxu0 0
        %2542 = vmatpush.bf16.msra.mxu0 0
        %2543 = vmatpush.bf16.msra.mxu0 0
        %2544 = vmatpush.bf16.msra.mxu0 0
        %2545 = vmatpush.bf16.msra.mxu0 0
        %2546 = vmatpush.bf16.msra.mxu0 %v2534
        %2547 = vmatpush.bf16.msra.mxu0 %v2533
        %2548 = vmatmul.bf16.gmra.mxu0 %v2538
        %v2549 = vpop.f32.mrf.mxu0
        %v2550 = vadd.f32 0.0, %v2549
        %v2551 = vpop.f32.mrf.mxu0
        %2552 = vdwg.mxu0
        %v2553 = vperm.slane %v2550, 0
        %v2554 = vperm.slane %v2550, 1
        %v2559 = vunpack.c.l.b16 %v2227
        %v2560 = vunpack.c.l.b16 %v2228
        %v2561 = vunpack.c.l.b16 %v2229
        %v2562 = vunpack.c.l.b16 %v2230
        %v2563 = vpack.c.b16 %v2560, %v2559
        %v2564 = vpack.c.b16 %v2562, %v2561
        %v2568 = vsel %vm1023, %v2516, 0
        %v2571 = vsel %vm1023, %v2517, 0
        %v2574 = vsel %vm1023, %v2518, 0
        %v2577 = vsel %vm1023, %v2519, 0
        %v2580 = vsel %vm1023, %v2520, 0
        %v2583 = vsel %vm1023, %v2521, 0
        %v2586 = vsel %vm1023, %v2522, 0
        %v2589 = vsel %vm1023, %v2523, 0
        %2591 = vmatpush.bf16.msra.mxu0 0
        %2592 = vmatpush.bf16.msra.mxu0 0
        %2593 = vmatpush.bf16.msra.mxu0 0
        %2594 = vmatpush.bf16.msra.mxu0 0
        %2595 = vmatpush.bf16.msra.mxu0 0
        %2596 = vmatpush.bf16.msra.mxu0 0
        %2597 = vmatpush.bf16.msra.mxu0 %v2564
        %2598 = vmatpush.bf16.msra.mxu0 %v2563
        %2599 = vmatmul.bf16.gmra.mxu0 %v2568
        %v2600 = vpop.f32.mrf.mxu0
        %v2601 = vadd.f32 %v2553, %v2600
        %v2602 = vpop.f32.mrf.mxu0
        %v2603 = vadd.f32 %v2553, %v2602
        %2604 = vmatmul.bf16.gmra.mxu0 %v2571
        %v2605 = vpop.f32.mrf.mxu0
        %v2606 = vadd.f32 %v2553, %v2605
        %v2607 = vpop.f32.mrf.mxu0
        %v2608 = vadd.f32 %v2553, %v2607
        %2609 = vmatmul.bf16.gmra.mxu0 %v2574
        %v2610 = vpop.f32.mrf.mxu0
        %v2611 = vadd.f32 %v2553, %v2610
        %v2612 = vpop.f32.mrf.mxu0
        %v2613 = vadd.f32 %v2553, %v2612
        %2614 = vmatmul.bf16.gmra.mxu0 %v2577
        %v2615 = vpop.f32.mrf.mxu0
        %v2616 = vadd.f32 %v2553, %v2615
        %v2617 = vpop.f32.mrf.mxu0
        %v2618 = vadd.f32 %v2553, %v2617
        %2619 = vmatmul.bf16.gmra.mxu0 %v2580
        %v2620 = vpop.f32.mrf.mxu0
        %v2621 = vadd.f32 %v2554, %v2620
        %v2622 = vpop.f32.mrf.mxu0
        %v2623 = vadd.f32 %v2554, %v2622
        %2624 = vmatmul.bf16.gmra.mxu0 %v2583
        %v2625 = vpop.f32.mrf.mxu0
        %v2626 = vadd.f32 %v2554, %v2625
        %v2627 = vpop.f32.mrf.mxu0
        %v2628 = vadd.f32 %v2554, %v2627
        %2629 = vmatmul.bf16.gmra.mxu0 %v2586
        %v2630 = vpop.f32.mrf.mxu0
        %v2631 = vadd.f32 %v2554, %v2630
        %v2632 = vpop.f32.mrf.mxu0
        %v2633 = vadd.f32 %v2554, %v2632
        %2634 = vmatmul.bf16.gmra.mxu0 %v2589
        %v2635 = vpop.f32.mrf.mxu0
        %v2636 = vadd.f32 %v2554, %v2635
        %v2637 = vpop.f32.mrf.mxu0
        %v2638 = vadd.f32 %v2554, %v2637
        %2639 = vdwg.mxu0
        %v2640 = vadd.f32 %v2601, %v2477
        %v2641 = vadd.f32 %v2603, %v2479
        %v2642 = vadd.f32 %v2606, %v2482
        %v2643 = vadd.f32 %v2608, %v2484
        %v2644 = vadd.f32 %v2611, %v2487
        %v2645 = vadd.f32 %v2613, %v2489
        %v2646 = vadd.f32 %v2616, %v2492
        %v2647 = vadd.f32 %v2618, %v2494
        %v2648 = vadd.f32 %v2621, %v2497
        %v2649 = vadd.f32 %v2623, %v2499
        %v2650 = vadd.f32 %v2626, %v2502
        %v2651 = vadd.f32 %v2628, %v2504
        %v2652 = vadd.f32 %v2631, %v2507
        %v2653 = vadd.f32 %v2633, %v2509
        %v2654 = vadd.f32 %v2636, %v2512
        %v2655 = vadd.f32 %v2638, %v2514
        %v2656 = vsel %vm1023, %v2640, -inf
        %v2657 = vsel %vm1023, %v2641, -inf
        %v2658 = vsel %vm1023, %v2642, -inf
        %v2659 = vsel %vm1023, %v2643, -inf
        %v2660 = vsel %vm1023, %v2644, -inf
        %v2661 = vmax.f32 %v2656, %v2660
        %v2662 = vsel %vm1023, %v2645, -inf
        %v2663 = vmax.f32 %v2657, %v2662
        %v2664 = vsel %vm1023, %v2646, -inf
        %v2665 = vmax.f32 %v2658, %v2664
        %v2666 = vsel %vm1023, %v2647, -inf
        %v2667 = vmax.f32 %v2659, %v2666
        %v2668 = vmax.f32 %v2661, %v2663
        %v2669 = vmax.f32 %v2665, %v2667
        %v2670 = vmax.f32 %v2668, %v2669
        %v2671 = vrot.slane %v2670, 4
        %v2672 = vmax.f32 %v2670, %v2671
        %v2673 = vrot.slane %v2672, 2
        %v2674 = vmax.f32 %v2672, %v2673
        %v2675 = vrot.slane %v2674, 1
        %v2676 = vmax.f32 %v2674, %v2675
        %v2677 = vsel %vm1023, %v2648, -inf
        %v2678 = vsel %vm1023, %v2649, -inf
        %v2679 = vsel %vm1023, %v2650, -inf
        %v2680 = vsel %vm1023, %v2651, -inf
        %v2681 = vsel %vm1023, %v2652, -inf
        %v2682 = vmax.f32 %v2677, %v2681
        %v2683 = vsel %vm1023, %v2653, -inf
        %v2684 = vmax.f32 %v2678, %v2683
        %v2685 = vsel %vm1023, %v2654, -inf
        %v2686 = vmax.f32 %v2679, %v2685
        %v2687 = vsel %vm1023, %v2655, -inf
        %v2688 = vmax.f32 %v2680, %v2687
        %v2689 = vmax.f32 %v2682, %v2684
        %v2690 = vmax.f32 %v2686, %v2688
        %v2691 = vmax.f32 %v2689, %v2690
        %v2692 = vrot.slane %v2691, 4
        %v2693 = vmax.f32 %v2691, %v2692
        %v2694 = vrot.slane %v2693, 2
        %v2695 = vmax.f32 %v2693, %v2694
        %v2696 = vrot.slane %v2695, 1
        %v2697 = vmax.f32 %v2695, %v2696
        %v2698 = vsel %vm378, %v2676, %v2697
        %s2699 = scalar_lea.vmem %s3, 128
        %v2700 = vld [vmem:[%s2699] sm:$0xf]
        %v2701 = vld [vmem:[%s2699 + $0x4] sm:$0xf]
        %v2702 = vld [vmem:[%s2699 + $0x8] sm:$0xf]
        %v2703 = vld [vmem:[%s2699 + $0xc] sm:$0xf]
        %v2704 = vld [vmem:[%s2699 + $0x10] sm:$0xf]
        %v2705 = vld [vmem:[%s2699 + $0x14] sm:$0xf]
        %v2706 = vld [vmem:[%s2699 + $0x18] sm:$0xf]
        %v2707 = vld [vmem:[%s2699 + $0x1c] sm:$0xf]
        %s2708 = scalar_lea.vmem %s5, 128
        %v2709 = vld [vmem:[%s2708] sm:$0xf]
        %v2710 = vld [vmem:[%s2708 + $0x4] sm:$0xf]
        %v2711 = vld [vmem:[%s2708 + $0x8] sm:$0xf]
        %v2712 = vld [vmem:[%s2708 + $0xc] sm:$0xf]
        %v2713 = vld [vmem:[%s2708 + $0x10] sm:$0xf]
        %v2714 = vld [vmem:[%s2708 + $0x14] sm:$0xf]
        %v2715 = vld [vmem:[%s2708 + $0x18] sm:$0xf]
        %v2716 = vld [vmem:[%s2708 + $0x1c] sm:$0xf]
        %v2717 = vmax.f32 %v2640, 0.0
        %v2718 = vmax.f32 %v2641, 0.0
        %v2719 = vmax.f32 %v2642, 0.0
        %v2720 = vmax.f32 %v2643, 0.0
        %v2721 = vmax.f32 %v2644, 0.0
        %v2722 = vmax.f32 %v2645, 0.0
        %v2723 = vmax.f32 %v2646, 0.0
        %v2724 = vmax.f32 %v2647, 0.0
        %v2725 = vmax.f32 %v2648, 0.0
        %v2726 = vmax.f32 %v2649, 0.0
        %v2727 = vmax.f32 %v2650, 0.0
        %v2728 = vmax.f32 %v2651, 0.0
        %v2729 = vmax.f32 %v2652, 0.0
        %v2730 = vmax.f32 %v2653, 0.0
        %v2731 = vmax.f32 %v2654, 0.0
        %v2732 = vmax.f32 %v2655, 0.0
        %v2733 = vpack.c.bf16 %v2718, %v2717
        %v2734 = vpack.c.bf16 %v2720, %v2719
        %v2735 = vpack.c.bf16 %v2722, %v2721
        %v2736 = vpack.c.bf16 %v2724, %v2723
        %v2737 = vpack.c.bf16 %v2726, %v2725
        %v2738 = vpack.c.bf16 %v2728, %v2727
        %v2739 = vpack.c.bf16 %v2730, %v2729
        %v2740 = vpack.c.bf16 %v2732, %v2731
        %v2741 = vmax.f32 %v2698, 0.0
        %v2742 = vpack.c.bf16 %v2741, %v2741
        %v2747 = vunpack.c.l.b16 %v2704
        %v2748 = vunpack.c.l.b16 %v2705
        %v2749 = vunpack.c.l.b16 %v2706
        %v2750 = vunpack.c.l.b16 %v2707
        %v2751 = vpack.c.b16 %v2748, %v2747
        %v2752 = vpack.c.b16 %v2750, %v2749
        %v2756 = vsel %vm1023, %v2742, 0
        %2758 = vmatpush.bf16.msra.mxu0 0
        %2759 = vmatpush.bf16.msra.mxu0 0
        %2760 = vmatpush.bf16.msra.mxu0 0
        %2761 = vmatpush.bf16.msra.mxu0 0
        %2762 = vmatpush.bf16.msra.mxu0 0
        %2763 = vmatpush.bf16.msra.mxu0 0
        %2764 = vmatpush.bf16.msra.mxu0 %v2752
        %2765 = vmatpush.bf16.msra.mxu0 %v2751
        %2766 = vmatmul.bf16.gmra.mxu0 %v2756
        %v2767 = vpop.f32.mrf.mxu0
        %v2768 = vadd.f32 0.0, %v2767
        %v2769 = vpop.f32.mrf.mxu0
        %2770 = vdwg.mxu0
        %v2771 = vperm.slane %v2768, 0
        %v2772 = vperm.slane %v2768, 1
        %v2777 = vunpack.c.l.b16 %v2700
        %v2778 = vunpack.c.l.b16 %v2701
        %v2779 = vunpack.c.l.b16 %v2702
        %v2780 = vunpack.c.l.b16 %v2703
        %v2781 = vpack.c.b16 %v2778, %v2777
        %v2782 = vpack.c.b16 %v2780, %v2779
        %v2786 = vsel %vm1023, %v2733, 0
        %v2789 = vsel %vm1023, %v2734, 0
        %v2792 = vsel %vm1023, %v2735, 0
        %v2795 = vsel %vm1023, %v2736, 0
        %v2798 = vsel %vm1023, %v2737, 0
        %v2801 = vsel %vm1023, %v2738, 0
        %v2804 = vsel %vm1023, %v2739, 0
        %v2807 = vsel %vm1023, %v2740, 0
        %2809 = vmatpush.bf16.msra.mxu0 0
        %2810 = vmatpush.bf16.msra.mxu0 0
        %2811 = vmatpush.bf16.msra.mxu0 0
        %2812 = vmatpush.bf16.msra.mxu0 0
        %2813 = vmatpush.bf16.msra.mxu0 0
        %2814 = vmatpush.bf16.msra.mxu0 0
        %2815 = vmatpush.bf16.msra.mxu0 %v2782
        %2816 = vmatpush.bf16.msra.mxu0 %v2781
        %2817 = vmatmul.bf16.gmra.mxu0 %v2786
        %v2818 = vpop.f32.mrf.mxu0
        %v2819 = vadd.f32 %v2771, %v2818
        %v2820 = vpop.f32.mrf.mxu0
        %v2821 = vadd.f32 %v2771, %v2820
        %2822 = vmatmul.bf16.gmra.mxu0 %v2789
        %v2823 = vpop.f32.mrf.mxu0
        %v2824 = vadd.f32 %v2771, %v2823
        %v2825 = vpop.f32.mrf.mxu0
        %v2826 = vadd.f32 %v2771, %v2825
        %2827 = vmatmul.bf16.gmra.mxu0 %v2792
        %v2828 = vpop.f32.mrf.mxu0
        %v2829 = vadd.f32 %v2771, %v2828
        %v2830 = vpop.f32.mrf.mxu0
        %v2831 = vadd.f32 %v2771, %v2830
        %2832 = vmatmul.bf16.gmra.mxu0 %v2795
        %v2833 = vpop.f32.mrf.mxu0
        %v2834 = vadd.f32 %v2771, %v2833
        %v2835 = vpop.f32.mrf.mxu0
        %v2836 = vadd.f32 %v2771, %v2835
        %2837 = vmatmul.bf16.gmra.mxu0 %v2798
        %v2838 = vpop.f32.mrf.mxu0
        %v2839 = vadd.f32 %v2772, %v2838
        %v2840 = vpop.f32.mrf.mxu0
        %v2841 = vadd.f32 %v2772, %v2840
        %2842 = vmatmul.bf16.gmra.mxu0 %v2801
        %v2843 = vpop.f32.mrf.mxu0
        %v2844 = vadd.f32 %v2772, %v2843
        %v2845 = vpop.f32.mrf.mxu0
        %v2846 = vadd.f32 %v2772, %v2845
        %2847 = vmatmul.bf16.gmra.mxu0 %v2804
        %v2848 = vpop.f32.mrf.mxu0
        %v2849 = vadd.f32 %v2772, %v2848
        %v2850 = vpop.f32.mrf.mxu0
        %v2851 = vadd.f32 %v2772, %v2850
        %2852 = vmatmul.bf16.gmra.mxu0 %v2807
        %v2853 = vpop.f32.mrf.mxu0
        %v2854 = vadd.f32 %v2772, %v2853
        %v2855 = vpop.f32.mrf.mxu0
        %v2856 = vadd.f32 %v2772, %v2855
        %2857 = vdwg.mxu0
        %s2858 = scalar_lea.vmem %s6, 8
        %v2859 = vld [vmem:[%s2858] sm:$0x1]
        %v2861 = vperm.slane %v2859, 0
        %v2863 = vadd.f32 %v2819, %v2861
        %v2864 = vadd.f32 %v2821, %v2861
        %v2865 = vadd.f32 %v2824, %v2861
        %v2866 = vadd.f32 %v2826, %v2861
        %v2867 = vadd.f32 %v2829, %v2861
        %v2868 = vadd.f32 %v2831, %v2861
        %v2869 = vadd.f32 %v2834, %v2861
        %v2870 = vadd.f32 %v2836, %v2861
        %v2871 = vadd.f32 %v2839, %v2861
        %v2872 = vadd.f32 %v2841, %v2861
        %v2873 = vadd.f32 %v2844, %v2861
        %v2874 = vadd.f32 %v2846, %v2861
        %v2875 = vadd.f32 %v2849, %v2861
        %v2876 = vadd.f32 %v2851, %v2861
        %v2877 = vadd.f32 %v2854, %v2861
        %v2878 = vadd.f32 %v2856, %v2861
        %v2879 = vmax.f32 %v2863, 0.0
        %v2880 = vmax.f32 %v2864, 0.0
        %v2881 = vmax.f32 %v2865, 0.0
        %v2882 = vmax.f32 %v2866, 0.0
        %v2883 = vmax.f32 %v2867, 0.0
        %v2884 = vmax.f32 %v2868, 0.0
        %v2885 = vmax.f32 %v2869, 0.0
        %v2886 = vmax.f32 %v2870, 0.0
        %v2887 = vmax.f32 %v2871, 0.0
        %v2888 = vmax.f32 %v2872, 0.0
        %v2889 = vmax.f32 %v2873, 0.0
        %v2890 = vmax.f32 %v2874, 0.0
        %v2891 = vmax.f32 %v2875, 0.0
        %v2892 = vmax.f32 %v2876, 0.0
        %v2893 = vmax.f32 %v2877, 0.0
        %v2894 = vmax.f32 %v2878, 0.0
        %v2895 = vpack.c.bf16 %v2880, %v2879
        %v2896 = vpack.c.bf16 %v2882, %v2881
        %v2897 = vpack.c.bf16 %v2884, %v2883
        %v2898 = vpack.c.bf16 %v2886, %v2885
        %v2899 = vpack.c.bf16 %v2888, %v2887
        %v2900 = vpack.c.bf16 %v2890, %v2889
        %v2901 = vpack.c.bf16 %v2892, %v2891
        %v2902 = vpack.c.bf16 %v2894, %v2893
        %s2903 = scalar_lea.vmem %s4, 64
        %v2904 = vld [vmem:[%s2903] sm:$0xf]
        %v2905 = vld [vmem:[%s2903 + $0x4] sm:$0xf]
        %v2906 = vld [vmem:[%s2903 + $0x8] sm:$0xf]
        %v2907 = vld [vmem:[%s2903 + $0xc] sm:$0xf]
        %s2908 = scalar_lea.vmem %s6, 9
        %v2909 = vld [vmem:[%s2908] sm:$0x1]
        %v2911 = vperm.slane %v2909, 0
        %v2917 = vunpack.c.l.b16 %v2904
        %v2918 = vunpack.c.l.b16 %v2905
        %v2919 = vunpack.c.l.b16 %v2906
        %v2920 = vunpack.c.l.b16 %v2907
        %v2921 = vpack.c.b16 %v2918, %v2917
        %v2922 = vpack.c.b16 %v2920, %v2919
        %v2926 = vsel %vm1023, %v2895, 0
        %v2929 = vsel %vm1023, %v2896, 0
        %v2932 = vsel %vm1023, %v2897, 0
        %v2935 = vsel %vm1023, %v2898, 0
        %v2938 = vsel %vm1023, %v2899, 0
        %v2941 = vsel %vm1023, %v2900, 0
        %v2944 = vsel %vm1023, %v2901, 0
        %v2947 = vsel %vm1023, %v2902, 0
        %2949 = vmatpush.bf16.msra.mxu0 0
        %2950 = vmatpush.bf16.msra.mxu0 0
        %2951 = vmatpush.bf16.msra.mxu0 0
        %2952 = vmatpush.bf16.msra.mxu0 0
        %2953 = vmatpush.bf16.msra.mxu0 0
        %2954 = vmatpush.bf16.msra.mxu0 0
        %2955 = vmatpush.bf16.msra.mxu0 %v2922
        %2956 = vmatpush.bf16.msra.mxu0 %v2921
        %2957 = vmatmul.bf16.gmra.mxu0 %v2926
        %v2958 = vpop.f32.mrf.mxu0
        %v2959 = vadd.f32 %v2911, %v2958
        %v2960 = vpop.f32.mrf.mxu0
        %v2961 = vadd.f32 %v2911, %v2960
        %2962 = vmatmul.bf16.gmra.mxu0 %v2929
        %v2963 = vpop.f32.mrf.mxu0
        %v2964 = vadd.f32 %v2911, %v2963
        %v2965 = vpop.f32.mrf.mxu0
        %v2966 = vadd.f32 %v2911, %v2965
        %2967 = vmatmul.bf16.gmra.mxu0 %v2932
        %v2968 = vpop.f32.mrf.mxu0
        %v2969 = vadd.f32 %v2911, %v2968
        %v2970 = vpop.f32.mrf.mxu0
        %v2971 = vadd.f32 %v2911, %v2970
        %2972 = vmatmul.bf16.gmra.mxu0 %v2935
        %v2973 = vpop.f32.mrf.mxu0
        %v2974 = vadd.f32 %v2911, %v2973
        %v2975 = vpop.f32.mrf.mxu0
        %v2976 = vadd.f32 %v2911, %v2975
        %2977 = vmatmul.bf16.gmra.mxu0 %v2938
        %v2978 = vpop.f32.mrf.mxu0
        %v2979 = vadd.f32 %v2911, %v2978
        %v2980 = vpop.f32.mrf.mxu0
        %v2981 = vadd.f32 %v2911, %v2980
        %2982 = vmatmul.bf16.gmra.mxu0 %v2941
        %v2983 = vpop.f32.mrf.mxu0
        %v2984 = vadd.f32 %v2911, %v2983
        %v2985 = vpop.f32.mrf.mxu0
        %v2986 = vadd.f32 %v2911, %v2985
        %2987 = vmatmul.bf16.gmra.mxu0 %v2944
        %v2988 = vpop.f32.mrf.mxu0
        %v2989 = vadd.f32 %v2911, %v2988
        %v2990 = vpop.f32.mrf.mxu0
        %v2991 = vadd.f32 %v2911, %v2990
        %2992 = vmatmul.bf16.gmra.mxu0 %v2947
        %v2993 = vpop.f32.mrf.mxu0
        %v2994 = vadd.f32 %v2911, %v2993
        %v2995 = vpop.f32.mrf.mxu0
        %v2996 = vadd.f32 %v2911, %v2995
        %2997 = vdwg.mxu0
        %v2998 = vpack.c.bf16 %v2641, %v2640
        %v2999 = vpack.c.bf16 %v2643, %v2642
        %v3000 = vpack.c.bf16 %v2645, %v2644
        %v3001 = vpack.c.bf16 %v2647, %v2646
        %v3002 = vpack.c.bf16 %v2649, %v2648
        %v3003 = vpack.c.bf16 %v2651, %v2650
        %v3004 = vpack.c.bf16 %v2653, %v2652
        %v3005 = vpack.c.bf16 %v2655, %v2654
        %v3006 = vpack.c.bf16 %v2698, %v2698
        %v3011 = vunpack.c.l.b16 %v2713
        %v3012 = vunpack.c.l.b16 %v2714
        %v3013 = vunpack.c.l.b16 %v2715
        %v3014 = vunpack.c.l.b16 %v2716
        %v3015 = vpack.c.b16 %v3012, %v3011
        %v3016 = vpack.c.b16 %v3014, %v3013
        %v3020 = vsel %vm1023, %v3006, 0
        %3022 = vmatpush.bf16.msra.mxu0 0
        %3023 = vmatpush.bf16.msra.mxu0 0
        %3024 = vmatpush.bf16.msra.mxu0 0
        %3025 = vmatpush.bf16.msra.mxu0 0
        %3026 = vmatpush.bf16.msra.mxu0 0
        %3027 = vmatpush.bf16.msra.mxu0 0
        %3028 = vmatpush.bf16.msra.mxu0 %v3016
        %3029 = vmatpush.bf16.msra.mxu0 %v3015
        %3030 = vmatmul.bf16.gmra.mxu0 %v3020
        %v3031 = vpop.f32.mrf.mxu0
        %v3032 = vadd.f32 0.0, %v3031
        %v3033 = vpop.f32.mrf.mxu0
        %3034 = vdwg.mxu0
        %v3035 = vperm.slane %v3032, 0
        %v3036 = vperm.slane %v3032, 1
        %v3041 = vunpack.c.l.b16 %v2709
        %v3042 = vunpack.c.l.b16 %v2710
        %v3043 = vunpack.c.l.b16 %v2711
        %v3044 = vunpack.c.l.b16 %v2712
        %v3045 = vpack.c.b16 %v3042, %v3041
        %v3046 = vpack.c.b16 %v3044, %v3043
        %v3050 = vsel %vm1023, %v2998, 0
        %v3053 = vsel %vm1023, %v2999, 0
        %v3056 = vsel %vm1023, %v3000, 0
        %v3059 = vsel %vm1023, %v3001, 0
        %v3062 = vsel %vm1023, %v3002, 0
        %v3065 = vsel %vm1023, %v3003, 0
        %v3068 = vsel %vm1023, %v3004, 0
        %v3071 = vsel %vm1023, %v3005, 0
        %3073 = vmatpush.bf16.msra.mxu0 0
        %3074 = vmatpush.bf16.msra.mxu0 0
        %3075 = vmatpush.bf16.msra.mxu0 0
        %3076 = vmatpush.bf16.msra.mxu0 0
        %3077 = vmatpush.bf16.msra.mxu0 0
        %3078 = vmatpush.bf16.msra.mxu0 0
        %3079 = vmatpush.bf16.msra.mxu0 %v3046
        %3080 = vmatpush.bf16.msra.mxu0 %v3045
        %3081 = vmatmul.bf16.gmra.mxu0 %v3050
        %v3082 = vpop.f32.mrf.mxu0
        %v3083 = vadd.f32 %v3035, %v3082
        %v3084 = vpop.f32.mrf.mxu0
        %v3085 = vadd.f32 %v3035, %v3084
        %3086 = vmatmul.bf16.gmra.mxu0 %v3053
        %v3087 = vpop.f32.mrf.mxu0
        %v3088 = vadd.f32 %v3035, %v3087
        %v3089 = vpop.f32.mrf.mxu0
        %v3090 = vadd.f32 %v3035, %v3089
        %3091 = vmatmul.bf16.gmra.mxu0 %v3056
        %v3092 = vpop.f32.mrf.mxu0
        %v3093 = vadd.f32 %v3035, %v3092
        %v3094 = vpop.f32.mrf.mxu0
        %v3095 = vadd.f32 %v3035, %v3094
        %3096 = vmatmul.bf16.gmra.mxu0 %v3059
        %v3097 = vpop.f32.mrf.mxu0
        %v3098 = vadd.f32 %v3035, %v3097
        %v3099 = vpop.f32.mrf.mxu0
        %v3100 = vadd.f32 %v3035, %v3099
        %3101 = vmatmul.bf16.gmra.mxu0 %v3062
        %v3102 = vpop.f32.mrf.mxu0
        %v3103 = vadd.f32 %v3036, %v3102
        %v3104 = vpop.f32.mrf.mxu0
        %v3105 = vadd.f32 %v3036, %v3104
        %3106 = vmatmul.bf16.gmra.mxu0 %v3065
        %v3107 = vpop.f32.mrf.mxu0
        %v3108 = vadd.f32 %v3036, %v3107
        %v3109 = vpop.f32.mrf.mxu0
        %v3110 = vadd.f32 %v3036, %v3109
        %3111 = vmatmul.bf16.gmra.mxu0 %v3068
        %v3112 = vpop.f32.mrf.mxu0
        %v3113 = vadd.f32 %v3036, %v3112
        %v3114 = vpop.f32.mrf.mxu0
        %v3115 = vadd.f32 %v3036, %v3114
        %3116 = vmatmul.bf16.gmra.mxu0 %v3071
        %v3117 = vpop.f32.mrf.mxu0
        %v3118 = vadd.f32 %v3036, %v3117
        %v3119 = vpop.f32.mrf.mxu0
        %v3120 = vadd.f32 %v3036, %v3119
        %3121 = vdwg.mxu0
        %v3122 = vadd.f32 %v3083, %v2959
        %v3123 = vadd.f32 %v3085, %v2961
        %v3124 = vadd.f32 %v3088, %v2964
        %v3125 = vadd.f32 %v3090, %v2966
        %v3126 = vadd.f32 %v3093, %v2969
        %v3127 = vadd.f32 %v3095, %v2971
        %v3128 = vadd.f32 %v3098, %v2974
        %v3129 = vadd.f32 %v3100, %v2976
        %v3130 = vadd.f32 %v3103, %v2979
        %v3131 = vadd.f32 %v3105, %v2981
        %v3132 = vadd.f32 %v3108, %v2984
        %v3133 = vadd.f32 %v3110, %v2986
        %v3134 = vadd.f32 %v3113, %v2989
        %v3135 = vadd.f32 %v3115, %v2991
        %v3136 = vadd.f32 %v3118, %v2994
        %v3137 = vadd.f32 %v3120, %v2996
        %v3138 = vsel %vm1023, %v3122, -inf
        %v3139 = vsel %vm1023, %v3123, -inf
        %v3140 = vsel %vm1023, %v3124, -inf
        %v3141 = vsel %vm1023, %v3125, -inf
        %v3142 = vsel %vm1023, %v3126, -inf
        %v3143 = vmax.f32 %v3138, %v3142
        %v3144 = vsel %vm1023, %v3127, -inf
        %v3145 = vmax.f32 %v3139, %v3144
        %v3146 = vsel %vm1023, %v3128, -inf
        %v3147 = vmax.f32 %v3140, %v3146
        %v3148 = vsel %vm1023, %v3129, -inf
        %v3149 = vmax.f32 %v3141, %v3148
        %v3150 = vmax.f32 %v3143, %v3145
        %v3151 = vmax.f32 %v3147, %v3149
        %v3152 = vmax.f32 %v3150, %v3151
        %v3153 = vrot.slane %v3152, 4
        %v3154 = vmax.f32 %v3152, %v3153
        %v3155 = vrot.slane %v3154, 2
        %v3156 = vmax.f32 %v3154, %v3155
        %v3157 = vrot.slane %v3156, 1
        %v3158 = vmax.f32 %v3156, %v3157
        %v3159 = vsel %vm1023, %v3130, -inf
        %v3160 = vsel %vm1023, %v3131, -inf
        %v3161 = vsel %vm1023, %v3132, -inf
        %v3162 = vsel %vm1023, %v3133, -inf
        %v3163 = vsel %vm1023, %v3134, -inf
        %v3164 = vmax.f32 %v3159, %v3163
        %v3165 = vsel %vm1023, %v3135, -inf
        %v3166 = vmax.f32 %v3160, %v3165
        %v3167 = vsel %vm1023, %v3136, -inf
        %v3168 = vmax.f32 %v3161, %v3167
        %v3169 = vsel %vm1023, %v3137, -inf
        %v3170 = vmax.f32 %v3162, %v3169
        %v3171 = vmax.f32 %v3164, %v3166
        %v3172 = vmax.f32 %v3168, %v3170
        %v3173 = vmax.f32 %v3171, %v3172
        %v3174 = vrot.slane %v3173, 4
        %v3175 = vmax.f32 %v3173, %v3174
        %v3176 = vrot.slane %v3175, 2
        %v3177 = vmax.f32 %v3175, %v3176
        %v3178 = vrot.slane %v3177, 1
        %v3179 = vmax.f32 %v3177, %v3178
        %v3180 = vsel %vm378, %v3158, %v3179
        %v3181 = vmax.f32 %v3180, 0.0
        %v3182 = vpack.c.bf16 %v3181, %v3181
        %v3183 = vld [vmem:[%s7] sm:$0xf]
        %v3184 = vld [vmem:[%s7 + $0x4] sm:$0xf]
        %v3185 = vld [vmem:[%s7 + $0x8] sm:$0xf]
        %v3186 = vld [vmem:[%s7 + $0xc] sm:$0xf]
        %v3187 = vld [vmem:[%s8] sm:$0x1]
        %v3189 = vperm.slane %v3187, 0
        %v3195 = vunpack.c.l.b16 %v3183
        %v3196 = vunpack.c.l.b16 %v3184
        %v3197 = vunpack.c.l.b16 %v3185
        %v3198 = vunpack.c.l.b16 %v3186
        %v3199 = vpack.c.b16 %v3196, %v3195
        %v3200 = vpack.c.b16 %v3198, %v3197
        %v3204 = vsel %vm1023, %v3182, 0
        %3206 = vmatpush.bf16.msra.mxu0 0
        %3207 = vmatpush.bf16.msra.mxu0 0
        %3208 = vmatpush.bf16.msra.mxu0 0
        %3209 = vmatpush.bf16.msra.mxu0 0
        %3210 = vmatpush.bf16.msra.mxu0 0
        %3211 = vmatpush.bf16.msra.mxu0 0
        %3212 = vmatpush.bf16.msra.mxu0 %v3200
        %3213 = vmatpush.bf16.msra.mxu0 %v3199
        %3214 = vmatmul.bf16.gmra.mxu0 %v3204
        %v3215 = vpop.f32.mrf.mxu0
        %v3216 = vadd.f32 %v3189, %v3215
        %v3217 = vpop.f32.mrf.mxu0
        %3218 = vdwg.mxu0
        %3219 = vst [vmem:[%s328] sm:$0x3] %v3216
        %s3220 = sand.u32 %s225, 1
        %s3221 = scalar_lea.sflag [#allocation3], %s3220
        %s3222 = sand.u32 %s225, 1
        %s3223 = smul.addr %s3222, 2
        %s3224 = scalar_lea.vmem [#allocation2], %s3223
        // Predicated region
        $region57: #{tpu_custom_call.1} parent=55 // pred_check
          %p3225 = pneg %p235
        $region58: #{tpu_custom_call.1} parent=55 // pred_check_branch
          %3227 = sbr.rel (%p3225) target = $region60
        $region59: #{tpu_custom_call.1} parent=55 // pred_region
          %3229 = vsyncadd %s3221, 0
          %s3230 = smul.addr %s23, 2
          %s3231 = scalar_lea.hbm %s9, %s3230
          %s3233 = sshll.u32 %s3224, 4
          %s3234 = int_to_ptr.vmem [resolvable:$true] %s3233
          %s3235 = sshll.u32 %s3231, 4
          %s3236 = int_to_ptr.hbm [resolvable:$true] %s3235
          %3238 = dma.vmem_to_hbm [thread:$0]  %s3234, 32, %s3236, %s3221
        $region60: #{tpu_custom_call.1} parent=55 // pred_fallthru
          _
      $region56: #{tpu_custom_call.1} parent=5 // pred_fallthru
        _
      %p3239 = scmp.le.s32.totalorder 2, %s18
      // Predicated region
      $region61: #{tpu_custom_call.1} parent=5 // pred_check
        %p3240 = pneg %p3239
      $region62: #{tpu_custom_call.1} parent=5 // pred_check_branch
        %3242 = sbr.rel (%p3240) target = $region64
      $region63: #{tpu_custom_call.1} parent=5 // pred_region
        %s3243 = ssub.s32 %s18, 2
        // Predicated region
        $region65: #{tpu_custom_call.1} parent=63 // pred_check
          %p3244 = pneg %p241
        $region66: #{tpu_custom_call.1} parent=63 // pred_check_branch
          %3246 = sbr.rel (%p3244) target = $region68
        $region67: #{tpu_custom_call.1} parent=63 // pred_region
          %s3247 = sand.u32 %s226, 1
          %s3248 = scalar_lea.sflag [#allocation3], %s3247
          %s3249 = sand.u32 %s226, 1
          %s3250 = smul.addr %s3249, 2
          %s3251 = scalar_lea.vmem [#allocation2], %s3250
          %3253 = dma.done %s3248, 32
        $region68: #{tpu_custom_call.1} parent=63 // pred_fallthru
          _
      $region64: #{tpu_custom_call.1} parent=5 // pred_fallthru
        _
    $region6: #{tpu_custom_call.1} parent=1 // loop_footer
      %s22 = sadd.s32 1, %s18
    $region7: #{tpu_custom_call.1} parent=1 // loop_footer_branch
      %17 = sbr.rel target = $region3
    $region8: #{tpu_custom_call.1} parent=1 // loop_exit
      _
    %3254 = vsyncpa [#allocation3], 1
    %s3255 = scalar_lea.sflag [#allocation3], 1
    %3256 = vsyncpa %s3255, 1

</llo_original>
